<compile_context>
chip_gen: v5e
topology: v5e:2x2
jax: 0.10.0
libtpu: 0.0.40
codegen_flags: <defaults>
</compile_context>

<pallas_src>
import functools

import jax
import jax.numpy as jnp
from jax.experimental import pallas as pl
from jax.experimental.pallas import tpu as pltpu

CONV_OUT = 100      # DyGrEncoder hard-codes conv_out_channels = 100.
C_PAD = 128         # conv/GRU channel dim padded to one full 128-lane tile.
# MXU input precision for all matmuls (f32 accumulation everywhere). Set to jnp.float32
# for bit-exact math vs the torch reference.
MXU_DTYPE = jnp.bfloat16


def _round_up(x, m):
    return ((x + m - 1) // m) * m


def _ggc_kernel(a_ref, xk_ref, hprev_ref, wconv_ref,
                w_rz_m_ref, w_rz_h_ref, b_rz_ref,
                w_in_n_ref, b_in_n_ref, w_hn_n_ref, b_hn_n_ref,
                *rest, with_head):
    """One GatedGraphConv layer (mean aggr) + GRUCell; optionally + LSTM + linear head.

    Grid = (row tiles [parallel], K tiles [arbitrary reduction over the adjacency]).
    """
    if with_head:
        (lstm_wx_ref, lstm_wh_ref, lstm_b_ref, h0_ref, c0_ref, lin_w_ref, lin_b_ref,
         out_ref, hout_ref, cout_ref, acc_ref) = rest
    else:
        xout_ref, acc_ref = rest

    k = pl.program_id(1)
    num_k = pl.num_programs(1)
    c_pad = acc_ref.shape[1]
    mxu_dt = wconv_ref.dtype

    # ---- streamed mean aggregation, reassociated: acc(i) = sum_k A[i,k] @ x[k] ----
    @pl.when(k == 0)
    def _zero_acc():
        acc_ref[...] = jnp.zeros_like(acc_ref)

    acc_ref[...] += jnp.dot(a_ref[...], xk_ref[...], preferred_element_type=jnp.float32)

    # ---- last K tile: apply conv weight once, then GRU (+ LSTM + head), f32 math ----
    @pl.when(k == num_k - 1)
    def _finalize():
        h_prev = hprev_ref[...]                           # f32 GRU hidden (== current x)
        h_mx = h_prev.astype(mxu_dt)
        m = jnp.dot(acc_ref[...].astype(mxu_dt), wconv_ref[...],
                    preferred_element_type=jnp.float32)   # (A @ x) @ W_l
        m_mx = m.astype(mxu_dt)

        # GRUCell(input=m, hidden=h_prev): r/z via two summed matmuls (no concat);
        # gate slices land on 128-lane boundaries (c_pad == 128).
        rz = jax.nn.sigmoid(
            jnp.dot(m_mx, w_rz_m_ref[...], preferred_element_type=jnp.float32)
            + jnp.dot(h_mx, w_rz_h_ref[...], preferred_element_type=jnp.float32)
            + b_rz_ref[...])
        r = rz[:, :c_pad]
        z = rz[:, c_pad:]
        n = jnp.tanh(
            jnp.dot(m_mx, w_in_n_ref[...], preferred_element_type=jnp.float32)
            + b_in_n_ref[...]
            + r * (jnp.dot(h_mx, w_hn_n_ref[...], preferred_element_type=jnp.float32)
                   + b_hn_n_ref[...]))
        x_new = (1.0 - z) * n + z * h_prev

        if with_head:
            h0 = h0_ref[...]
            c0 = c0_ref[...]
            f_pad = h0.shape[1]
            # LSTM (seq_len=1): gates = x @ W_ih + h0 @ W_hh + (b_ih + b_hh), no concat.
            gates = (jnp.dot(x_new.astype(mxu_dt), lstm_wx_ref[...],
                             preferred_element_type=jnp.float32)
                     + jnp.dot(h0.astype(mxu_dt), lstm_wh_ref[...],
                               preferred_element_type=jnp.float32)
                     + lstm_b_ref[...])
            i_g = jax.nn.sigmoid(gates[:, 0 * f_pad:1 * f_pad])
            f_g = jax.nn.sigmoid(gates[:, 1 * f_pad:2 * f_pad])
            g_g = jnp.tanh(gates[:, 2 * f_pad:3 * f_pad])
            o_g = jax.nn.sigmoid(gates[:, 3 * f_pad:4 * f_pad])
            c_new = f_g * c0 + i_g * g_g
            h_new = o_g * jnp.tanh(c_new)
            hout_ref[...] = h_new
            cout_ref[...] = c_new
            o = jnp.maximum(h_new, 0.0)
            out_ref[...] = (jnp.dot(o.astype(mxu_dt), lin_w_ref[...],
                                    preferred_element_type=jnp.float32)
                            + lin_b_ref[...])
        else:
            xout_ref[...] = x_new


@functools.partial(jax.jit, static_argnames=("n_nodes", "n_target"))
def dygr_encoder_forward(x, edge_index, edge_weight, h_0, c_0, params, *,
                         n_nodes, n_target):
    """DyGrEncoderModel.forward: returns (h, h_n, c_n) for one graph snapshot."""
    N = n_nodes
    T = n_target
    F = h_0.shape[-1]
    CP = C_PAD
    FP = params["lstm_w_h"].shape[0]
    TP = params["lin_w"].shape[1]
    num_conv = params["conv_w"].shape[0]
    mx = params["conv_w"].dtype
    # TODO(synk): multi-layer LSTM (num_lstm > 1) not implemented; uses h_0[0]/c_0[0].

    # --- tiling: fine (128) N-pad granularity, large streaming K tile when it divides ---
    N_PAD = _round_up(N, 128)
    TILE_M = 256 if N_PAD % 256 == 0 else 128
    TILE_K = 128
    for t in (2048, 1024, 512, 256):
        if N_PAD % t == 0:
            TILE_K = t
            break
    grid = (N_PAD // TILE_M, N_PAD // TILE_K)

    # --- host-side glue: pad features/state, densify + row-normalize, bf16 streams ---
    x_f32 = jnp.zeros((N_PAD, CP), jnp.float32).at[:N, :x.shape[1]].set(
        x.astype(jnp.float32))
    # TODO(synk): for large or temporally-static graphs, cache A across timesteps or
    # feed a CSR edge list via scalar prefetch instead of this O(N^2) scatter per call.
    src, dst = edge_index[0], edge_index[1]
    A = jnp.zeros((N_PAD, N_PAD), jnp.float32).at[dst, src].add(
        edge_weight.astype(jnp.float32))
    deg = jnp.zeros((N_PAD,), jnp.float32).at[dst].add(1.0)
    A = (A / jnp.maximum(deg, 1.0)[:, None]).astype(mx)   # bf16 -> halves A DMA bytes

    h0 = jnp.zeros((N_PAD, FP), jnp.float32).at[:N, :F].set(h_0[0].astype(jnp.float32))
    c0 = jnp.zeros((N_PAD, FP), jnp.float32).at[:N, :F].set(c_0[0].astype(jnp.float32))

    # --- BlockSpecs ---
    def _const(shape):
        return pl.BlockSpec(shape, lambda i, k: (0,) * len(shape))

    a_spec = pl.BlockSpec((TILE_M, TILE_K), lambda i, k: (i, k))   # streamed adjacency
    xk_spec = pl.BlockSpec((TILE_K, CP), lambda i, k: (k, 0))      # K-tiled node feats
    row_cp = pl.BlockSpec((TILE_M, CP), lambda i, k: (i, 0))
    row_fp = pl.BlockSpec((TILE_M, FP), lambda i, k: (i, 0))
    row_tp = pl.BlockSpec((TILE_M, TP), lambda i, k: (i, 0))

    gru_specs = [
        _const((CP, CP)),           # conv weight, layer l
        _const((CP, 2 * CP)),       # GRU r/z, input part
        _const((CP, 2 * CP)),       # GRU r/z, hidden part
        _const((1, 2 * CP)),
        _const((CP, CP)),           # GRU n, input part
        _const((1, CP)),
        _const((CP, CP)),           # GRU n, hidden part
        _const((1, CP)),
    ]
    head_specs = [
        _const((CP, 4 * FP)),       # LSTM W_ih (fused gate columns)
        _const((FP, 4 * FP)),       # LSTM W_hh
        _const((1, 4 * FP)),
        row_fp,                     # h0 row tile
        row_fp,                     # c0 row tile
        _const((FP, TP)),           # linear head
        _const((1, TP)),
    ]

    # --- VMEM budget from the tiled footprint + headroom (well under v7x's 64 MiB) ---
    est = (2 * TILE_M * TILE_K * 2 + 2 * TILE_K * CP * 2 + 2 * TILE_M * CP * 4
           + TILE_M * CP * 4
           + 2 * 2 * (CP * CP + 2 * (CP * 2 * CP) + 2 * (CP * CP)
                      + CP * 4 * FP + FP * 4 * FP + FP * TP)
           + 4 * TILE_M * FP * 4
           + 2 * TILE_M * (TP + 2 * FP + CP) * 4
           + 64 * 1024)
    vmem_limit = int(min(48 * 1024 * 1024, max(16 * 1024 * 1024, 2 * est)))
    cparams = pltpu.CompilerParams(
        dimension_semantics=("parallel", "arbitrary"), vmem_limit_bytes=vmem_limit)

    gru_weights = (params["gru_w_rz_m"], params["gru_w_rz_h"], params["gru_b_rz"],
                   params["gru_w_in_n"], params["gru_b_in_n"],
                   params["gru_w_hn_n"], params["gru_b_hn_n"])
    head_weights = (params["lstm_w_x"], params["lstm_w_h"], params["lstm_b"],
                    h0, c0, params["lin_w"], params["lin_b"])

    mid_call = pl.pallas_call(
        functools.partial(_ggc_kernel, with_head=False),
        out_shape=jax.ShapeDtypeStruct((N_PAD, CP), jnp.float32),
        grid_spec=pltpu.PrefetchScalarGridSpec(
            num_scalar_prefetch=0, grid=grid,
            in_specs=[a_spec, xk_spec, row_cp] + gru_specs,
            out_specs=row_cp,
            scratch_shapes=[pltpu.VMEM((TILE_M, CP), jnp.float32)]),
        compiler_params=cparams,
    )
    head_call = pl.pallas_call(
        functools.partial(_ggc_kernel, with_head=True),
        out_shape=(jax.ShapeDtypeStruct((N_PAD, TP), jnp.float32),
                   jax.ShapeDtypeStruct((N_PAD, FP), jnp.float32),
                   jax.ShapeDtypeStruct((N_PAD, FP), jnp.float32)),
        grid_spec=pltpu.PrefetchScalarGridSpec(
            num_scalar_prefetch=0, grid=grid,
            in_specs=[a_spec, xk_spec, row_cp] + gru_specs + head_specs,
            out_specs=(row_tp, row_fp, row_fp),
            scratch_shapes=[pltpu.VMEM((TILE_M, CP), jnp.float32)]),
        compiler_params=cparams,
        input_output_aliases={14: 1, 15: 2},   # h0 -> h_n, c0 -> c_n (in-place state)
    )

    # Conv layers: one pallas_call each (row axis stays "parallel" on every layer);
    # last layer also runs the LSTM + linear head inside the kernel.
    x_cur = x_f32
    for l in range(num_conv - 1):
        x_cur = mid_call(A, x_cur.astype(mx), x_cur, params["conv_w"][l], *gru_weights)
    out, h_new, c_new = head_call(A, x_cur.astype(mx), x_cur,
                                  params["conv_w"][num_conv - 1],
                                  *gru_weights, *head_weights)

    # Slice padding away; restore torch LSTM state shape (num_layers=1, N, F).
    return out[:N, :T], h_new[:N, :F][None, :, :], c_new[:N, :F][None, :, :]


def init_torch_params(key, node_features, n_target, num_conv=1):
    """Random parameters in PyTorch's native layouts (for semantic traceability)."""
    C, F, T = CONV_OUT, node_features, n_target
    ks = jax.random.split(key, 11)
    s = 0.1
    return {
        "conv_weight":    s * jax.random.normal(ks[0], (num_conv, C, C), jnp.float32),
        "gru_weight_ih":  s * jax.random.normal(ks[1], (3 * C, C), jnp.float32),
        "gru_weight_hh":  s * jax.random.normal(ks[2], (3 * C, C), jnp.float32),
        "gru_bias_ih":    s * jax.random.normal(ks[3], (3 * C,), jnp.float32),
        "gru_bias_hh":    s * jax.random.normal(ks[4], (3 * C,), jnp.float32),
        "lstm_weight_ih": s * jax.random.normal(ks[5], (4 * F, C), jnp.float32),
        "lstm_weight_hh": s * jax.random.normal(ks[6], (4 * F, F), jnp.float32),
        "lstm_bias_ih":   s * jax.random.normal(ks[7], (4 * F,), jnp.float32),
        "lstm_bias_hh":   s * jax.random.normal(ks[8], (4 * F,), jnp.float32),
        "lin_weight":     s * jax.random.normal(ks[9], (T, F), jnp.float32),
        "lin_bias":       s * jax.random.normal(ks[10], (T,), jnp.float32),
    }


def pack_params(tp, node_features, n_target):
    """Torch-layout weights -> padded / split / bf16 kernel layout (done once)."""
    C, CP = CONV_OUT, C_PAD
    F = node_features
    FP = _round_up(max(F, 1), 128)
    T = n_target
    TP = _round_up(max(T, 1), 128)
    num_conv = tp["conv_weight"].shape[0]
    mx = MXU_DTYPE

    conv_w = jnp.zeros((num_conv, CP, CP), jnp.float32).at[:, :C, :C].set(
        tp["conv_weight"])

    # GRUCell, torch gate order (r, z, n) along the first axis of weight_ih / weight_hh.
    wih, whh = tp["gru_weight_ih"], tp["gru_weight_hh"]
    bih, bhh = tp["gru_bias_ih"], tp["gru_bias_hh"]
    gate = lambda w, g: w[g * C:(g + 1) * C, :].T            # -> (C_in, C)
    w_rz_m = jnp.zeros((CP, 2 * CP), jnp.float32)
    w_rz_m = w_rz_m.at[:C, 0:C].set(gate(wih, 0)).at[:C, CP:CP + C].set(gate(wih, 1))
    w_rz_h = jnp.zeros((CP, 2 * CP), jnp.float32)
    w_rz_h = w_rz_h.at[:C, 0:C].set(gate(whh, 0)).at[:C, CP:CP + C].set(gate(whh, 1))
    b_rz = jnp.zeros((1, 2 * CP), jnp.float32)
    b_rz = b_rz.at[0, 0:C].set(bih[0:C] + bhh[0:C])
    b_rz = b_rz.at[0, CP:CP + C].set(bih[C:2 * C] + bhh[C:2 * C])
    w_in_n = jnp.zeros((CP, CP), jnp.float32).at[:C, :C].set(gate(wih, 2))
    b_in_n = jnp.zeros((1, CP), jnp.float32).at[0, :C].set(bih[2 * C:3 * C])
    w_hn_n = jnp.zeros((CP, CP), jnp.float32).at[:C, :C].set(gate(whh, 2))
    b_hn_n = jnp.zeros((1, CP), jnp.float32).at[0, :C].set(bhh[2 * C:3 * C])

    # LSTM (layer 0), torch gate order (i, f, g, o); W_ih / W_hh kept separate (no concat
    # in-kernel), each gate padded to a 128-lane column block.
    lwih, lwhh = tp["lstm_weight_ih"], tp["lstm_weight_hh"]
    lb = tp["lstm_bias_ih"] + tp["lstm_bias_hh"]
    lstm_wx = jnp.zeros((CP, 4 * FP), jnp.float32)
    lstm_wh = jnp.zeros((FP, 4 * FP), jnp.float32)
    lstm_b = jnp.zeros((1, 4 * FP), jnp.float32)
    for g in range(4):
        lstm_wx = lstm_wx.at[:C, g * FP:g * FP + F].set(lwih[g * F:(g + 1) * F, :].T)
        lstm_wh = lstm_wh.at[:F, g * FP:g * FP + F].set(lwhh[g * F:(g + 1) * F, :].T)
        lstm_b = lstm_b.at[0, g * FP:g * FP + F].set(lb[g * F:(g + 1) * F])

    lin_w = jnp.zeros((FP, TP), jnp.float32).at[:F, :T].set(tp["lin_weight"].T)
    lin_b = jnp.zeros((1, TP), jnp.float32).at[0, :T].set(tp["lin_bias"])

    return {
        "conv_w": conv_w.astype(mx),
        "gru_w_rz_m": w_rz_m.astype(mx), "gru_w_rz_h": w_rz_h.astype(mx),
        "gru_b_rz": b_rz,
        "gru_w_in_n": w_in_n.astype(mx), "gru_b_in_n": b_in_n,
        "gru_w_hn_n": w_hn_n.astype(mx), "gru_b_hn_n": b_hn_n,
        "lstm_w_x": lstm_wx.astype(mx), "lstm_w_h": lstm_wh.astype(mx),
        "lstm_b": lstm_b,
        "lin_w": lin_w.astype(mx), "lin_b": lin_b,
    }


def reference_forward(x, edge_index, edge_weight, h_0, c_0, tp):
    """Pure-JAX f32 reference mirroring the torch module (for validation)."""
    C = CONV_OUT
    N = x.shape[0]
    F = h_0.shape[-1]
    num_conv = tp["conv_weight"].shape[0]
    h = jnp.zeros((N, C), jnp.float32).at[:, :x.shape[1]].set(x)
    src, dst = edge_index[0], edge_index[1]
    A = jnp.zeros((N, N), jnp.float32).at[dst, src].add(edge_weight)
    deg = jnp.zeros((N,), jnp.float32).at[dst].add(1.0)
    A = A / jnp.maximum(deg, 1.0)[:, None]
    wih, whh = tp["gru_weight_ih"], tp["gru_weight_hh"]
    bih, bhh = tp["gru_bias_ih"], tp["gru_bias_hh"]
    for l in range(num_conv):
        m = A @ (h @ tp["conv_weight"][l])
        gi = m @ wih.T + bih
        gh = h @ whh.T + bhh
        r = jax.nn.sigmoid(gi[:, :C] + gh[:, :C])
        z = jax.nn.sigmoid(gi[:, C:2 * C] + gh[:, C:2 * C])
        n = jnp.tanh(gi[:, 2 * C:] + r * gh[:, 2 * C:])
        h = (1.0 - z) * n + z * h
    lwih, lwhh = tp["lstm_weight_ih"], tp["lstm_weight_hh"]
    lb = tp["lstm_bias_ih"] + tp["lstm_bias_hh"]
    h0, c0 = h_0[0], c_0[0]
    gates = h @ lwih.T + h0 @ lwhh.T + lb
    i_g = jax.nn.sigmoid(gates[:, 0 * F:1 * F])
    f_g = jax.nn.sigmoid(gates[:, 1 * F:2 * F])
    g_g = jnp.tanh(gates[:, 2 * F:3 * F])
    o_g = jax.nn.sigmoid(gates[:, 3 * F:4 * F])
    c_n = f_g * c0 + i_g * g_g
    h_n = o_g * jnp.tanh(c_n)
    out = jnp.maximum(h_n, 0.0) @ tp["lin_weight"].T + tp["lin_bias"]
    return out, h_n[None], c_n[None]


if __name__ == "__main__":
    def make_example(key, node_features, node_count, n_target, num_conv):
        k_par, k_x, k_w, k_h, k_c = jax.random.split(key, 5)
        tp = init_torch_params(k_par, node_features, n_target, num_conv)
        params = pack_params(tp, node_features, n_target)
        x = jax.random.normal(k_x, (node_count, node_features), jnp.float32)
        idx = jnp.arange(node_count)
        src = jnp.concatenate([idx, (idx + 1) % node_count])
        dst = jnp.concatenate([(idx + 1) % node_count, idx])
        edge_index = jnp.stack([src, dst]).astype(jnp.int32)             # (2, E)
        edge_weight = jax.random.uniform(k_w, (edge_index.shape[1],), jnp.float32) + 0.5
        h_0 = jax.random.normal(k_h, (1, node_count, node_features), jnp.float32)
        c_0 = jax.random.normal(k_c, (1, node_count, node_features), jnp.float32)
        return tp, params, x, edge_index, edge_weight, h_0, c_0

    key = jax.random.PRNGKey(0)
    k1, k2 = jax.random.split(key)
    TOL = 3e-2   # bf16 MXU inputs (f32 accumulation) vs f32 reference

    # Case 1: module defaults (num_conv=1, num_lstm=1), tiny graph -> single-tile grid.
    node_features, node_count, n_target = 4, 16, 2
    tp, params, x, ei, ew, h_0, c_0 = make_example(k1, node_features, node_count,
                                                   n_target, num_conv=1)
    h, h_n, c_n = dygr_encoder_forward(x, ei, ew, h_0, c_0, params,
                                       n_nodes=node_count, n_target=n_target)
    jax.block_until_ready((h, h_n, c_n))
    assert h.shape == (node_count, n_target)
    assert h_n.shape == (1, node_count, node_features)
    assert c_n.shape == (1, node_count, node_features)
    rh, rhn, rcn = reference_forward(x, ei, ew, h_0, c_0, tp)
    assert bool(jnp.all(jnp.isfinite(h)))
    assert bool(jnp.allclose(h, rh, atol=TOL))
    assert bool(jnp.allclose(h_n, rhn, atol=TOL))
    assert bool(jnp.allclose(c_n, rcn, atol=TOL))

    # Case 2: num_conv=2 + non-trivial tiling (N=300 -> N_PAD=384, 3x3 grid).
    node_features, node_count, n_target = 4, 300, 2
    tp, params, x, ei, ew, h_0, c_0 = make_example(k2, node_features, node_count,
                                                   n_target, num_conv=2)
    h, h_n, c_n = dygr_encoder_forward(x, ei, ew, h_0, c_0, params,
                                       n_nodes=node_count, n_target=n_target)
    jax.block_until_ready((h, h_n, c_n))
    rh, rhn, rcn = reference_forward(x, ei, ew, h_0, c_0, tp)
    assert h.shape == (node_count, n_target)
    assert bool(jnp.all(jnp.isfinite(h)))
    assert bool(jnp.allclose(h, rh, atol=TOL))
    assert bool(jnp.allclose(h_n, rhn, atol=TOL))
    assert bool(jnp.allclose(c_n, rcn, atol=TOL))

    print("KERNEL_OK")
</pallas_src>

<mosaic_0001>
module attributes {stable_mosaic.version = 11 : i64} {
  func.func @_ggc_kernel(%arg0: i32, %arg1: i32, %arg2: memref<128x128xbf16, #tpu.memory_space<vmem>>, %arg3: memref<128x128xbf16, #tpu.memory_space<vmem>>, %arg4: memref<128x128xf32, #tpu.memory_space<vmem>>, %arg5: memref<128x128xbf16, #tpu.memory_space<vmem>>, %arg6: memref<128x256xbf16, #tpu.memory_space<vmem>>, %arg7: memref<128x256xbf16, #tpu.memory_space<vmem>>, %arg8: memref<1x256xf32, #tpu.memory_space<vmem>>, %arg9: memref<128x128xbf16, #tpu.memory_space<vmem>>, %arg10: memref<1x128xf32, #tpu.memory_space<vmem>>, %arg11: memref<128x128xbf16, #tpu.memory_space<vmem>>, %arg12: memref<1x128xf32, #tpu.memory_space<vmem>>, %arg13: memref<128x512xbf16, #tpu.memory_space<vmem>>, %arg14: memref<128x512xbf16, #tpu.memory_space<vmem>>, %arg15: memref<1x512xf32, #tpu.memory_space<vmem>>, %arg16: memref<128x128xf32, #tpu.memory_space<vmem>>, %arg17: memref<128x128xf32, #tpu.memory_space<vmem>>, %arg18: memref<128x128xbf16, #tpu.memory_space<vmem>>, %arg19: memref<1x128xf32, #tpu.memory_space<vmem>>, %arg20: memref<128x128xf32, #tpu.memory_space<vmem>>, %arg21: memref<128x128xf32, #tpu.memory_space<vmem>>, %arg22: memref<128x128xf32, #tpu.memory_space<vmem>>, %arg23: memref<128x128xf32, #tpu.memory_space<vmem>>) attributes {dimension_semantics = [#tpu.dimension_semantics<parallel>, #tpu.dimension_semantics<arbitrary>], iteration_bounds = array<i64: 1, 1>, scalar_prefetch = 0 : i64, scratch_operands = 1 : i64, tpu.core_type = #tpu.core_type<tc>, window_params = [{transform_indices = @transform_0, window_bounds = array<i64: 128, 128>}, {transform_indices = @transform_1, window_bounds = array<i64: 128, 128>}, {transform_indices = @transform_2, window_bounds = array<i64: 128, 128>}, {pipeline_mode = #tpu.pipeline_mode<synchronous>, transform_indices = @transform_3, window_bounds = array<i64: 128, 128>}, {pipeline_mode = #tpu.pipeline_mode<synchronous>, transform_indices = @transform_4, window_bounds = array<i64: 128, 256>}, {pipeline_mode = #tpu.pipeline_mode<synchronous>, transform_indices = @transform_5, window_bounds = array<i64: 128, 256>}, {pipeline_mode = #tpu.pipeline_mode<synchronous>, transform_indices = @transform_6, window_bounds = array<i64: 1, 256>}, {pipeline_mode = #tpu.pipeline_mode<synchronous>, transform_indices = @transform_7, window_bounds = array<i64: 128, 128>}, {pipeline_mode = #tpu.pipeline_mode<synchronous>, transform_indices = @transform_8, window_bounds = array<i64: 1, 128>}, {pipeline_mode = #tpu.pipeline_mode<synchronous>, transform_indices = @transform_9, window_bounds = array<i64: 128, 128>}, {pipeline_mode = #tpu.pipeline_mode<synchronous>, transform_indices = @transform_10, window_bounds = array<i64: 1, 128>}, {pipeline_mode = #tpu.pipeline_mode<synchronous>, transform_indices = @transform_11, window_bounds = array<i64: 128, 512>}, {pipeline_mode = #tpu.pipeline_mode<synchronous>, transform_indices = @transform_12, window_bounds = array<i64: 128, 512>}, {pipeline_mode = #tpu.pipeline_mode<synchronous>, transform_indices = @transform_13, window_bounds = array<i64: 1, 512>}, {transform_indices = @transform_14, window_bounds = array<i64: 128, 128>}, {transform_indices = @transform_15, window_bounds = array<i64: 128, 128>}, {pipeline_mode = #tpu.pipeline_mode<synchronous>, transform_indices = @transform_16, window_bounds = array<i64: 128, 128>}, {pipeline_mode = #tpu.pipeline_mode<synchronous>, transform_indices = @transform_17, window_bounds = array<i64: 1, 128>}, {transform_indices = @transform_18, window_bounds = array<i64: 128, 128>}, {transform_indices = @transform_19, window_bounds = array<i64: 128, 128>}, {transform_indices = @transform_20, window_bounds = array<i64: 128, 128>}]} {
    %c0_i32 = arith.constant 0 : i32
    %0 = arith.cmpi eq, %arg1, %c0_i32 : i32
    %1 = arith.extui %0 : i1 to i32
    %c0_i32_0 = arith.constant 0 : i32
    %2 = arith.cmpi ne, %1, %c0_i32_0 : i32
    scf.if %2 {
      %cst_10 = arith.constant 0.000000e+00 : f32
      %12 = vector.broadcast %cst_10 : f32 to vector<128x128xf32>
      %c0_11 = arith.constant 0 : index
      %c0_12 = arith.constant 0 : index
      %13 = vector.load %arg23[%c0_11, %c0_12] : memref<128x128xf32, #tpu.memory_space<vmem>>, vector<128x128xf32>
      tpu.vector_store %arg23[%c0_11, %c0_12], %12 {strides = array<i32>} : memref<128x128xf32, #tpu.memory_space<vmem>>, vector<128x128xf32>,
    } else {
    }
    %c0 = arith.constant 0 : index
    %c0_1 = arith.constant 0 : index
    %3 = vector.load %arg23[%c0, %c0_1] : memref<128x128xf32, #tpu.memory_space<vmem>>, vector<128x128xf32>
    %c0_2 = arith.constant 0 : index
    %c0_3 = arith.constant 0 : index
    %4 = vector.load %arg2[%c0_2, %c0_3] : memref<128x128xbf16, #tpu.memory_space<vmem>>, vector<128x128xbf16>
    %c0_4 = arith.constant 0 : index
    %c0_5 = arith.constant 0 : index
    %5 = vector.load %arg3[%c0_4, %c0_5] : memref<128x128xbf16, #tpu.memory_space<vmem>>, vector<128x128xbf16>
    %cst = arith.constant dense<0.000000e+00> : vector<128x128xf32>
    %6 = tpu.matmul %4, %5, %cst {dimension_numbers = #tpu.dot_dimension_numbers<[1], [0], [0], [1], [0, 0, 1, 1], [], []>} : vector<128x128xbf16>, vector<128x128xbf16>, vector<128x128xf32> -> vector<128x128xf32>
    %7 = arith.addf %3, %6 : vector<128x128xf32>
    %c0_6 = arith.constant 0 : index
    %c0_7 = arith.constant 0 : index
    %8 = vector.load %arg23[%c0_6, %c0_7] : memref<128x128xf32, #tpu.memory_space<vmem>>, vector<128x128xf32>
    tpu.vector_store %arg23[%c0_6, %c0_7], %7 {strides = array<i32>} : memref<128x128xf32, #tpu.memory_space<vmem>>, vector<128x128xf32>,
    %c0_i32_8 = arith.constant 0 : i32
    %9 = arith.cmpi eq, %arg1, %c0_i32_8 : i32
    %10 = arith.extui %9 : i1 to i32
    %c0_i32_9 = arith.constant 0 : i32
    %11 = arith.cmpi ne, %10, %c0_i32_9 : i32
    scf.if %11 {
      %c0_10 = arith.constant 0 : index
      %c0_11 = arith.constant 0 : index
      %12 = vector.load %arg4[%c0_10, %c0_11] : memref<128x128xf32, #tpu.memory_space<vmem>>, vector<128x128xf32>
      %13 = arith.truncf %12 : vector<128x128xf32> to vector<128x128xbf16>
      %c0_12 = arith.constant 0 : index
      %c0_13 = arith.constant 0 : index
      %14 = vector.load %arg23[%c0_12, %c0_13] : memref<128x128xf32, #tpu.memory_space<vmem>>, vector<128x128xf32>
      %15 = arith.truncf %14 : vector<128x128xf32> to vector<128x128xbf16>
      %c0_14 = arith.constant 0 : index
      %c0_15 = arith.constant 0 : index
      %16 = vector.load %arg5[%c0_14, %c0_15] : memref<128x128xbf16, #tpu.memory_space<vmem>>, vector<128x128xbf16>
      %cst_16 = arith.constant dense<0.000000e+00> : vector<128x128xf32>
      %17 = tpu.matmul %15, %16, %cst_16 {dimension_numbers = #tpu.dot_dimension_numbers<[1], [0], [0], [1], [0, 0, 1, 1], [], []>} : vector<128x128xbf16>, vector<128x128xbf16>, vector<128x128xf32> -> vector<128x128xf32>
      %18 = arith.truncf %17 : vector<128x128xf32> to vector<128x128xbf16>
      %c0_17 = arith.constant 0 : index
      %c0_18 = arith.constant 0 : index
      %19 = vector.load %arg6[%c0_17, %c0_18] : memref<128x256xbf16, #tpu.memory_space<vmem>>, vector<128x256xbf16>
      %cst_19 = arith.constant dense<0.000000e+00> : vector<128x256xf32>
      %20 = tpu.matmul %18, %19, %cst_19 {dimension_numbers = #tpu.dot_dimension_numbers<[1], [0], [0], [1], [0, 0, 1, 1], [], []>} : vector<128x128xbf16>, vector<128x256xbf16>, vector<128x256xf32> -> vector<128x256xf32>
      %c0_20 = arith.constant 0 : index
      %c0_21 = arith.constant 0 : index
      %21 = vector.load %arg7[%c0_20, %c0_21] : memref<128x256xbf16, #tpu.memory_space<vmem>>, vector<128x256xbf16>
      %cst_22 = arith.constant dense<0.000000e+00> : vector<128x256xf32>
      %22 = tpu.matmul %13, %21, %cst_22 {dimension_numbers = #tpu.dot_dimension_numbers<[1], [0], [0], [1], [0, 0, 1, 1], [], []>} : vector<128x128xbf16>, vector<128x256xbf16>, vector<128x256xf32> -> vector<128x256xf32>
      %23 = arith.addf %20, %22 : vector<128x256xf32>
      %c0_23 = arith.constant 0 : index
      %c0_24 = arith.constant 0 : index
      %24 = vector.load %arg8[%c0_23, %c0_24] : memref<1x256xf32, #tpu.memory_space<vmem>>, vector<1x256xf32>
      %25 = vector.broadcast %24 : vector<1x256xf32> to vector<128x256xf32>
      %26 = arith.addf %23, %25 : vector<128x256xf32>
      %27 = arith.negf %26 : vector<128x256xf32>
      %28 = math.exp %27 : vector<128x256xf32>
      %cst_25 = arith.constant 1.000000e+00 : f32
      %29 = vector.broadcast %cst_25 : f32 to vector<128x256xf32>
      %30 = arith.addf %29, %28 : vector<128x256xf32>
      %31 = arith.divf %29, %30 : vector<128x256xf32>
      %32 = vector.extract_strided_slice %31 {offsets = [0, 0], sizes = [128, 128], strides = [1, 1]} : vector<128x256xf32> to vector<128x128xf32>
      %33 = vector.extract_strided_slice %31 {offsets = [0, 128], sizes = [128, 128], strides = [1, 1]} : vector<128x256xf32> to vector<128x128xf32>
      %c0_26 = arith.constant 0 : index
      %c0_27 = arith.constant 0 : index
      %34 = vector.load %arg9[%c0_26, %c0_27] : memref<128x128xbf16, #tpu.memory_space<vmem>>, vector<128x128xbf16>
      %cst_28 = arith.constant dense<0.000000e+00> : vector<128x128xf32>
      %35 = tpu.matmul %18, %34, %cst_28 {dimension_numbers = #tpu.dot_dimension_numbers<[1], [0], [0], [1], [0, 0, 1, 1], [], []>} : vector<128x128xbf16>, vector<128x128xbf16>, vector<128x128xf32> -> vector<128x128xf32>
      %c0_29 = arith.constant 0 : index
      %c0_30 = arith.constant 0 : index
      %36 = vector.load %arg10[%c0_29, %c0_30] : memref<1x128xf32, #tpu.memory_space<vmem>>, vector<1x128xf32>
      %37 = vector.broadcast %36 : vector<1x128xf32> to vector<128x128xf32>
      %38 = arith.addf %35, %37 : vector<128x128xf32>
      %c0_31 = arith.constant 0 : index
      %c0_32 = arith.constant 0 : index
      %39 = vector.load %arg11[%c0_31, %c0_32] : memref<128x128xbf16, #tpu.memory_space<vmem>>, vector<128x128xbf16>
      %cst_33 = arith.constant dense<0.000000e+00> : vector<128x128xf32>
      %40 = tpu.matmul %13, %39, %cst_33 {dimension_numbers = #tpu.dot_dimension_numbers<[1], [0], [0], [1], [0, 0, 1, 1], [], []>} : vector<128x128xbf16>, vector<128x128xbf16>, vector<128x128xf32> -> vector<128x128xf32>
      %c0_34 = arith.constant 0 : index
      %c0_35 = arith.constant 0 : index
      %41 = vector.load %arg12[%c0_34, %c0_35] : memref<1x128xf32, #tpu.memory_space<vmem>>, vector<1x128xf32>
      %42 = vector.broadcast %41 : vector<1x128xf32> to vector<128x128xf32>
      %43 = arith.addf %40, %42 : vector<128x128xf32>
      %44 = arith.mulf %32, %43 : vector<128x128xf32>
      %45 = arith.addf %38, %44 : vector<128x128xf32>
      %46 = math.tanh %45 : vector<128x128xf32>
      %cst_36 = arith.constant 1.000000e+00 : f32
      %47 = vector.broadcast %cst_36 : f32 to vector<128x128xf32>
      %48 = arith.subf %47, %33 : vector<128x128xf32>
      %49 = arith.mulf %48, %46 : vector<128x128xf32>
      %50 = arith.mulf %33, %12 : vector<128x128xf32>
      %51 = arith.addf %49, %50 : vector<128x128xf32>
      %c0_37 = arith.constant 0 : index
      %c0_38 = arith.constant 0 : index
      %52 = vector.load %arg16[%c0_37, %c0_38] : memref<128x128xf32, #tpu.memory_space<vmem>>, vector<128x128xf32>
      %c0_39 = arith.constant 0 : index
      %c0_40 = arith.constant 0 : index
      %53 = vector.load %arg17[%c0_39, %c0_40] : memref<128x128xf32, #tpu.memory_space<vmem>>, vector<128x128xf32>
      %54 = arith.truncf %51 : vector<128x128xf32> to vector<128x128xbf16>
      %c0_41 = arith.constant 0 : index
      %c0_42 = arith.constant 0 : index
      %55 = vector.load %arg13[%c0_41, %c0_42] : memref<128x512xbf16, #tpu.memory_space<vmem>>, vector<128x512xbf16>
      %cst_43 = arith.constant dense<0.000000e+00> : vector<128x512xf32>
      %56 = tpu.matmul %54, %55, %cst_43 {dimension_numbers = #tpu.dot_dimension_numbers<[1], [0], [0], [1], [0, 0, 1, 1], [], []>} : vector<128x128xbf16>, vector<128x512xbf16>, vector<128x512xf32> -> vector<128x512xf32>
      %57 = arith.truncf %52 : vector<128x128xf32> to vector<128x128xbf16>
      %c0_44 = arith.constant 0 : index
      %c0_45 = arith.constant 0 : index
      %58 = vector.load %arg14[%c0_44, %c0_45] : memref<128x512xbf16, #tpu.memory_space<vmem>>, vector<128x512xbf16>
      %cst_46 = arith.constant dense<0.000000e+00> : vector<128x512xf32>
      %59 = tpu.matmul %57, %58, %cst_46 {dimension_numbers = #tpu.dot_dimension_numbers<[1], [0], [0], [1], [0, 0, 1, 1], [], []>} : vector<128x128xbf16>, vector<128x512xbf16>, vector<128x512xf32> -> vector<128x512xf32>
      %60 = arith.addf %56, %59 : vector<128x512xf32>
      %c0_47 = arith.constant 0 : index
      %c0_48 = arith.constant 0 : index
      %61 = vector.load %arg15[%c0_47, %c0_48] : memref<1x512xf32, #tpu.memory_space<vmem>>, vector<1x512xf32>
      %62 = vector.broadcast %61 : vector<1x512xf32> to vector<128x512xf32>
      %63 = arith.addf %60, %62 : vector<128x512xf32>
      %64 = vector.extract_strided_slice %63 {offsets = [0, 0], sizes = [128, 128], strides = [1, 1]} : vector<128x512xf32> to vector<128x128xf32>
      %65 = arith.negf %64 : vector<128x128xf32>
      %66 = math.exp %65 : vector<128x128xf32>
      %cst_49 = arith.constant 1.000000e+00 : f32
      %67 = vector.broadcast %cst_49 : f32 to vector<128x128xf32>
      %68 = arith.addf %67, %66 : vector<128x128xf32>
      %69 = arith.divf %67, %68 : vector<128x128xf32>
      %70 = vector.extract_strided_slice %63 {offsets = [0, 128], sizes = [128, 128], strides = [1, 1]} : vector<128x512xf32> to vector<128x128xf32>
      %71 = arith.negf %70 : vector<128x128xf32>
      %72 = math.exp %71 : vector<128x128xf32>
      %cst_50 = arith.constant 1.000000e+00 : f32
      %73 = vector.broadcast %cst_50 : f32 to vector<128x128xf32>
      %74 = arith.addf %73, %72 : vector<128x128xf32>
      %75 = arith.divf %73, %74 : vector<128x128xf32>
      %76 = vector.extract_strided_slice %63 {offsets = [0, 256], sizes = [128, 128], strides = [1, 1]} : vector<128x512xf32> to vector<128x128xf32>
      %77 = math.tanh %76 : vector<128x128xf32>
      %78 = vector.extract_strided_slice %63 {offsets = [0, 384], sizes = [128, 128], strides = [1, 1]} : vector<128x512xf32> to vector<128x128xf32>
      %79 = arith.negf %78 : vector<128x128xf32>
      %80 = math.exp %79 : vector<128x128xf32>
      %cst_51 = arith.constant 1.000000e+00 : f32
      %81 = vector.broadcast %cst_51 : f32 to vector<128x128xf32>
      %82 = arith.addf %81, %80 : vector<128x128xf32>
      %83 = arith.divf %81, %82 : vector<128x128xf32>
      %84 = arith.mulf %75, %53 : vector<128x128xf32>
      %85 = arith.mulf %69, %77 : vector<128x128xf32>
      %86 = arith.addf %84, %85 : vector<128x128xf32>
      %87 = math.tanh %86 : vector<128x128xf32>
      %88 = arith.mulf %83, %87 : vector<128x128xf32>
      %c0_52 = arith.constant 0 : index
      %c0_53 = arith.constant 0 : index
      %89 = vector.load %arg21[%c0_52, %c0_53] : memref<128x128xf32, #tpu.memory_space<vmem>>, vector<128x128xf32>
      tpu.vector_store %arg21[%c0_52, %c0_53], %88 {strides = array<i32>} : memref<128x128xf32, #tpu.memory_space<vmem>>, vector<128x128xf32>,
      %c0_54 = arith.constant 0 : index
      %c0_55 = arith.constant 0 : index
      %90 = vector.load %arg22[%c0_54, %c0_55] : memref<128x128xf32, #tpu.memory_space<vmem>>, vector<128x128xf32>
      tpu.vector_store %arg22[%c0_54, %c0_55], %86 {strides = array<i32>} : memref<128x128xf32, #tpu.memory_space<vmem>>, vector<128x128xf32>,
      %cst_56 = arith.constant 0.000000e+00 : f32
      %91 = vector.broadcast %cst_56 : f32 to vector<128x128xf32>
      %92 = arith.maximumf %88, %91 : vector<128x128xf32>
      %93 = arith.truncf %92 : vector<128x128xf32> to vector<128x128xbf16>
      %c0_57 = arith.constant 0 : index
      %c0_58 = arith.constant 0 : index
      %94 = vector.load %arg18[%c0_57, %c0_58] : memref<128x128xbf16, #tpu.memory_space<vmem>>, vector<128x128xbf16>
      %cst_59 = arith.constant dense<0.000000e+00> : vector<128x128xf32>
      %95 = tpu.matmul %93, %94, %cst_59 {dimension_numbers = #tpu.dot_dimension_numbers<[1], [0], [0], [1], [0, 0, 1, 1], [], []>} : vector<128x128xbf16>, vector<128x128xbf16>, vector<128x128xf32> -> vector<128x128xf32>
      %c0_60 = arith.constant 0 : index
      %c0_61 = arith.constant 0 : index
      %96 = vector.load %arg19[%c0_60, %c0_61] : memref<1x128xf32, #tpu.memory_space<vmem>>, vector<1x128xf32>
      %97 = vector.broadcast %96 : vector<1x128xf32> to vector<128x128xf32>
      %98 = arith.addf %95, %97 : vector<128x128xf32>
      %c0_62 = arith.constant 0 : index
      %c0_63 = arith.constant 0 : index
      %99 = vector.load %arg20[%c0_62, %c0_63] : memref<128x128xf32, #tpu.memory_space<vmem>>, vector<128x128xf32>
      tpu.vector_store %arg20[%c0_62, %c0_63], %98 {strides = array<i32>} : memref<128x128xf32, #tpu.memory_space<vmem>>, vector<128x128xf32>,
    } else {
    }
    return
  }
  func.func @transform_0(%arg0: i32, %arg1: i32) -> (i32, i32) {
    %c0_i32 = arith.constant 0 : i32
    return %arg0, %arg1 : i32, i32
  }
  func.func @transform_1(%arg0: i32, %arg1: i32) -> (i32, i32) {
    %c0_i32 = arith.constant 0 : i32
    %c0_i32_0 = arith.constant 0 : i32
    return %arg1, %c0_i32 : i32, i32
  }
  func.func @transform_2(%arg0: i32, %arg1: i32) -> (i32, i32) {
    %c0_i32 = arith.constant 0 : i32
    %c0_i32_0 = arith.constant 0 : i32
    return %arg0, %c0_i32 : i32, i32
  }
  func.func @transform_3(%arg0: i32, %arg1: i32) -> (i32, i32) {
    %c0_i32 = arith.constant 0 : i32
    %c0_i32_0 = arith.constant 0 : i32
    %c0_i32_1 = arith.constant 0 : i32
    return %c0_i32, %c0_i32_0 : i32, i32
  }
  func.func @transform_4(%arg0: i32, %arg1: i32) -> (i32, i32) {
    %c0_i32 = arith.constant 0 : i32
    %c0_i32_0 = arith.constant 0 : i32
    %c0_i32_1 = arith.constant 0 : i32
    return %c0_i32, %c0_i32_0 : i32, i32
  }
  func.func @transform_5(%arg0: i32, %arg1: i32) -> (i32, i32) {
    %c0_i32 = arith.constant 0 : i32
    %c0_i32_0 = arith.constant 0 : i32
    %c0_i32_1 = arith.constant 0 : i32
    return %c0_i32, %c0_i32_0 : i32, i32
  }
  func.func @transform_6(%arg0: i32, %arg1: i32) -> (i32, i32) {
    %c0_i32 = arith.constant 0 : i32
    %c0_i32_0 = arith.constant 0 : i32
    %c0_i32_1 = arith.constant 0 : i32
    return %c0_i32, %c0_i32_0 : i32, i32
  }
  func.func @transform_7(%arg0: i32, %arg1: i32) -> (i32, i32) {
    %c0_i32 = arith.constant 0 : i32
    %c0_i32_0 = arith.constant 0 : i32
    %c0_i32_1 = arith.constant 0 : i32
    return %c0_i32, %c0_i32_0 : i32, i32
  }
  func.func @transform_8(%arg0: i32, %arg1: i32) -> (i32, i32) {
    %c0_i32 = arith.constant 0 : i32
    %c0_i32_0 = arith.constant 0 : i32
    %c0_i32_1 = arith.constant 0 : i32
    return %c0_i32, %c0_i32_0 : i32, i32
  }
  func.func @transform_9(%arg0: i32, %arg1: i32) -> (i32, i32) {
    %c0_i32 = arith.constant 0 : i32
    %c0_i32_0 = arith.constant 0 : i32
    %c0_i32_1 = arith.constant 0 : i32
    return %c0_i32, %c0_i32_0 : i32, i32
  }
  func.func @transform_10(%arg0: i32, %arg1: i32) -> (i32, i32) {
    %c0_i32 = arith.constant 0 : i32
    %c0_i32_0 = arith.constant 0 : i32
    %c0_i32_1 = arith.constant 0 : i32
    return %c0_i32, %c0_i32_0 : i32, i32
  }
  func.func @transform_11(%arg0: i32, %arg1: i32) -> (i32, i32) {
    %c0_i32 = arith.constant 0 : i32
    %c0_i32_0 = arith.constant 0 : i32
    %c0_i32_1 = arith.constant 0 : i32
    return %c0_i32, %c0_i32_0 : i32, i32
  }
  func.func @transform_12(%arg0: i32, %arg1: i32) -> (i32, i32) {
    %c0_i32 = arith.constant 0 : i32
    %c0_i32_0 = arith.constant 0 : i32
    %c0_i32_1 = arith.constant 0 : i32
    return %c0_i32, %c0_i32_0 : i32, i32
  }
  func.func @transform_13(%arg0: i32, %arg1: i32) -> (i32, i32) {
    %c0_i32 = arith.constant 0 : i32
    %c0_i32_0 = arith.constant 0 : i32
    %c0_i32_1 = arith.constant 0 : i32
    return %c0_i32, %c0_i32_0 : i32, i32
  }
  func.func @transform_14(%arg0: i32, %arg1: i32) -> (i32, i32) {
    %c0_i32 = arith.constant 0 : i32
    %c0_i32_0 = arith.constant 0 : i32
    return %arg0, %c0_i32 : i32, i32
  }
  func.func @transform_15(%arg0: i32, %arg1: i32) -> (i32, i32) {
    %c0_i32 = arith.constant 0 : i32
    %c0_i32_0 = arith.constant 0 : i32
    return %arg0, %c0_i32 : i32, i32
  }
  func.func @transform_16(%arg0: i32, %arg1: i32) -> (i32, i32) {
    %c0_i32 = arith.constant 0 : i32
    %c0_i32_0 = arith.constant 0 : i32
    %c0_i32_1 = arith.constant 0 : i32
    return %c0_i32, %c0_i32_0 : i32, i32
  }
  func.func @transform_17(%arg0: i32, %arg1: i32) -> (i32, i32) {
    %c0_i32 = arith.constant 0 : i32
    %c0_i32_0 = arith.constant 0 : i32
    %c0_i32_1 = arith.constant 0 : i32
    return %c0_i32, %c0_i32_0 : i32, i32
  }
  func.func @transform_18(%arg0: i32, %arg1: i32) -> (i32, i32) {
    %c0_i32 = arith.constant 0 : i32
    %c0_i32_0 = arith.constant 0 : i32
    return %arg0, %c0_i32 : i32, i32
  }
  func.func @transform_19(%arg0: i32, %arg1: i32) -> (i32, i32) {
    %c0_i32 = arith.constant 0 : i32
    %c0_i32_0 = arith.constant 0 : i32
    return %arg0, %c0_i32 : i32, i32
  }
  func.func @transform_20(%arg0: i32, %arg1: i32) -> (i32, i32) {
    %c0_i32 = arith.constant 0 : i32
    %c0_i32_0 = arith.constant 0 : i32
    return %arg0, %c0_i32 : i32, i32
  }
}

</mosaic_0001>

<llo_original>
// kernel: dygr_encoder_forward.1
$region0: #{dygr_encoder_forward.1}
  #allocation0 [shape = 'u32[]', space=smem, size = 0x4, offset = 0x4, fixed_abs, tag = 'smem constant byte address 0x4 - core index']
  #allocation1 [shape = 'u32[72,128]{1,0:T(1,128)}', space=vmem, size = 0x9000, scoped, tag = 'internal scratch']
  #allocation2 [shape = 'f32[128,128]{1,0:T(8,128)}', space=vmem, size = 0x10000, scoped, tag = 'scratch operand']
  %s0 = inlined_call_operand.vmem [shape: bf16[128,128], index: 0, kind: input, shape index: {}]
  %s1 = inlined_call_operand.vmem [shape: bf16[128,128], index: 1, kind: input, shape index: {}]
  %s2 = inlined_call_operand.vmem [shape: f32[128,128], index: 2, kind: input, shape index: {}]
  %s3 = inlined_call_operand.vmem [shape: bf16[128,128], index: 3, kind: input, shape index: {}]
  %s4 = inlined_call_operand.vmem [shape: bf16[128,256], index: 4, kind: input, shape index: {}]
  %s5 = inlined_call_operand.vmem [shape: bf16[128,256], index: 5, kind: input, shape index: {}]
  %s6 = inlined_call_operand.vmem [shape: f32[1,256], index: 6, kind: input, shape index: {}]
  %s7 = inlined_call_operand.vmem [shape: bf16[128,128], index: 7, kind: input, shape index: {}]
  %s8 = inlined_call_operand.vmem [shape: f32[1,128], index: 8, kind: input, shape index: {}]
  %s9 = inlined_call_operand.vmem [shape: bf16[128,128], index: 9, kind: input, shape index: {}]
  %s10 = inlined_call_operand.vmem [shape: f32[1,128], index: 10, kind: input, shape index: {}]
  %s11 = inlined_call_operand.vmem [shape: bf16[128,512], index: 11, kind: input, shape index: {}]
  %s12 = inlined_call_operand.vmem [shape: bf16[128,512], index: 12, kind: input, shape index: {}]
  %s13 = inlined_call_operand.vmem [shape: f32[1,512], index: 13, kind: input, shape index: {}]
  %s14 = inlined_call_operand.vmem [shape: f32[128,128], index: 14, kind: input, shape index: {}, may-alias: {14,19}]
  %s15 = inlined_call_operand.vmem [shape: f32[128,128], index: 15, kind: input, shape index: {}, may-alias: {15,20}]
  %s16 = inlined_call_operand.vmem [shape: bf16[128,128], index: 16, kind: input, shape index: {}]
  %s17 = inlined_call_operand.vmem [shape: f32[1,128], index: 17, kind: input, shape index: {}]
  %s18 = inlined_call_operand.vmem [shape: f32[128,128], index: 18, kind: output, shape index: {0}]
  %s19 = inlined_call_operand.vmem [shape: f32[128,128], index: 19, kind: output, shape index: {1}, may-alias: {14,19}]
  %s20 = inlined_call_operand.vmem [shape: f32[128,128], index: 20, kind: output, shape index: {2}, may-alias: {15,20}]
  %21 = xla_tuple %s18, %s19, %s20
  %s22 = sld [smem:[#allocation0]]
  $region106: #{dygr_encoder_forward.1} parent=0
    _
  %s24 = ssub.s32 1, %s22
  %s25 = scalar_select 0, %s24, %s22
  // Predicated region
  $region2: #{dygr_encoder_forward.1} parent=0 // pred_check
    _
  $region3: #{dygr_encoder_forward.1} parent=0 // pred_check_branch
    %27 = sbr.rel (0) target = $region5
  $region4: #{dygr_encoder_forward.1} parent=0 // pred_region
    _
  $region5: #{dygr_encoder_forward.1} parent=0 // pred_fallthru
    _
  // Predicated region
  $region6: #{dygr_encoder_forward.1} parent=0 // pred_check
    _
  $region7: #{dygr_encoder_forward.1} parent=0 // pred_check_branch
    %29 = sbr.rel (0) target = $region9
  $region8: #{dygr_encoder_forward.1} parent=0 // pred_region
    _
  $region9: #{dygr_encoder_forward.1} parent=0 // pred_fallthru
    _
  // Predicated region
  $region10: #{dygr_encoder_forward.1} parent=0 // pred_check
    _
  $region11: #{dygr_encoder_forward.1} parent=0 // pred_check_branch
    %31 = sbr.rel (0) target = $region13
  $region12: #{dygr_encoder_forward.1} parent=0 // pred_region
    _
  $region13: #{dygr_encoder_forward.1} parent=0 // pred_fallthru
    _
  // Predicated region
  $region14: #{dygr_encoder_forward.1} parent=0 // pred_check
    _
  $region15: #{dygr_encoder_forward.1} parent=0 // pred_check_branch
    %33 = sbr.rel (0) target = $region17
  $region16: #{dygr_encoder_forward.1} parent=0 // pred_region
    _
  $region17: #{dygr_encoder_forward.1} parent=0 // pred_fallthru
    _
  // Predicated region
  $region18: #{dygr_encoder_forward.1} parent=0 // pred_check
    _
  $region19: #{dygr_encoder_forward.1} parent=0 // pred_check_branch
    %35 = sbr.rel (0) target = $region21
  $region20: #{dygr_encoder_forward.1} parent=0 // pred_region
    _
  $region21: #{dygr_encoder_forward.1} parent=0 // pred_fallthru
    _
  // Predicated region
  $region22: #{dygr_encoder_forward.1} parent=0 // pred_check
    _
  $region23: #{dygr_encoder_forward.1} parent=0 // pred_check_branch
    %37 = sbr.rel (0) target = $region25
  $region24: #{dygr_encoder_forward.1} parent=0 // pred_region
    _
  $region25: #{dygr_encoder_forward.1} parent=0 // pred_fallthru
    _
  // Predicated region
  $region26: #{dygr_encoder_forward.1} parent=0 // pred_check
    _
  $region27: #{dygr_encoder_forward.1} parent=0 // pred_check_branch
    %39 = sbr.rel (0) target = $region29
  $region28: #{dygr_encoder_forward.1} parent=0 // pred_region
    _
  $region29: #{dygr_encoder_forward.1} parent=0 // pred_fallthru
    _
  // Predicated region
  $region30: #{dygr_encoder_forward.1} parent=0 // pred_check
    _
  $region31: #{dygr_encoder_forward.1} parent=0 // pred_check_branch
    %41 = sbr.rel (0) target = $region33
  $region32: #{dygr_encoder_forward.1} parent=0 // pred_region
    _
  $region33: #{dygr_encoder_forward.1} parent=0 // pred_fallthru
    _
  // Predicated region
  $region34: #{dygr_encoder_forward.1} parent=0 // pred_check
    _
  $region35: #{dygr_encoder_forward.1} parent=0 // pred_check_branch
    %43 = sbr.rel (0) target = $region37
  $region36: #{dygr_encoder_forward.1} parent=0 // pred_region
    _
  $region37: #{dygr_encoder_forward.1} parent=0 // pred_fallthru
    _
  // Predicated region
  $region38: #{dygr_encoder_forward.1} parent=0 // pred_check
    _
  $region39: #{dygr_encoder_forward.1} parent=0 // pred_check_branch
    %45 = sbr.rel (0) target = $region41
  $region40: #{dygr_encoder_forward.1} parent=0 // pred_region
    _
  $region41: #{dygr_encoder_forward.1} parent=0 // pred_fallthru
    _
  // Predicated region
  $region42: #{dygr_encoder_forward.1} parent=0 // pred_check
    _
  $region43: #{dygr_encoder_forward.1} parent=0 // pred_check_branch
    %47 = sbr.rel (0) target = $region45
  $region44: #{dygr_encoder_forward.1} parent=0 // pred_region
    _
  $region45: #{dygr_encoder_forward.1} parent=0 // pred_fallthru
    _
  // Predicated region
  $region46: #{dygr_encoder_forward.1} parent=0 // pred_check
    _
  $region47: #{dygr_encoder_forward.1} parent=0 // pred_check_branch
    %49 = sbr.rel (0) target = $region49
  $region48: #{dygr_encoder_forward.1} parent=0 // pred_region
    _
  $region49: #{dygr_encoder_forward.1} parent=0 // pred_fallthru
    _
  // Predicated region
  $region50: #{dygr_encoder_forward.1} parent=0 // pred_check
    _
  $region51: #{dygr_encoder_forward.1} parent=0 // pred_check_branch
    %51 = sbr.rel (0) target = $region53
  $region52: #{dygr_encoder_forward.1} parent=0 // pred_region
    _
  $region53: #{dygr_encoder_forward.1} parent=0 // pred_fallthru
    _
  // Predicated region
  $region54: #{dygr_encoder_forward.1} parent=0 // pred_check
    _
  $region55: #{dygr_encoder_forward.1} parent=0 // pred_check_branch
    %53 = sbr.rel (0) target = $region57
  $region56: #{dygr_encoder_forward.1} parent=0 // pred_region
    _
  $region57: #{dygr_encoder_forward.1} parent=0 // pred_fallthru
    _
  // Predicated region
  $region58: #{dygr_encoder_forward.1} parent=0 // pred_check
    _
  $region59: #{dygr_encoder_forward.1} parent=0 // pred_check_branch
    %55 = sbr.rel (0) target = $region61
  $region60: #{dygr_encoder_forward.1} parent=0 // pred_region
    _
  $region61: #{dygr_encoder_forward.1} parent=0 // pred_fallthru
    _
  // Predicated region
  $region62: #{dygr_encoder_forward.1} parent=0 // pred_check
    _
  $region63: #{dygr_encoder_forward.1} parent=0 // pred_check_branch
    %57 = sbr.rel (0) target = $region65
  $region64: #{dygr_encoder_forward.1} parent=0 // pred_region
    _
  $region65: #{dygr_encoder_forward.1} parent=0 // pred_fallthru
    _
  // Predicated region
  $region66: #{dygr_encoder_forward.1} parent=0 // pred_check
    _
  $region67: #{dygr_encoder_forward.1} parent=0 // pred_check_branch
    %59 = sbr.rel (0) target = $region69
  $region68: #{dygr_encoder_forward.1} parent=0 // pred_region
    _
  $region69: #{dygr_encoder_forward.1} parent=0 // pred_fallthru
    _
  // Predicated region
  $region70: #{dygr_encoder_forward.1} parent=0 // pred_check
    _
  $region71: #{dygr_encoder_forward.1} parent=0 // pred_check_branch
    %61 = sbr.rel (0) target = $region73
  $region72: #{dygr_encoder_forward.1} parent=0 // pred_region
    _
  $region73: #{dygr_encoder_forward.1} parent=0 // pred_fallthru
    _
  %p62 = scmp.eq.s32.totalorder 0, 0
  // Predicated region
  $region74: #{dygr_encoder_forward.1} parent=0 // pred_check
    %p63 = pneg %p62
  $region75: #{dygr_encoder_forward.1} parent=0 // pred_check_branch
    %65 = sbr.rel (%p63) target = $region77
  $region76: #{dygr_encoder_forward.1} parent=0 // pred_region
    %66 = vst [vmem:[#allocation2] sm:$0xff] 0.0
    %67 = vst [vmem:[#allocation2 + $0x8] sm:$0xff] 0.0
    %68 = vst [vmem:[#allocation2 + $0x10] sm:$0xff] 0.0
    %69 = vst [vmem:[#allocation2 + $0x18] sm:$0xff] 0.0
    %70 = vst [vmem:[#allocation2 + $0x20] sm:$0xff] 0.0
    %71 = vst [vmem:[#allocation2 + $0x28] sm:$0xff] 0.0
    %72 = vst [vmem:[#allocation2 + $0x30] sm:$0xff] 0.0
    %73 = vst [vmem:[#allocation2 + $0x38] sm:$0xff] 0.0
    %74 = vst [vmem:[#allocation2 + $0x40] sm:$0xff] 0.0
    %75 = vst [vmem:[#allocation2 + $0x48] sm:$0xff] 0.0
    %76 = vst [vmem:[#allocation2 + $0x50] sm:$0xff] 0.0
    %77 = vst [vmem:[#allocation2 + $0x58] sm:$0xff] 0.0
    %78 = vst [vmem:[#allocation2 + $0x60] sm:$0xff] 0.0
    %79 = vst [vmem:[#allocation2 + $0x68] sm:$0xff] 0.0
    %80 = vst [vmem:[#allocation2 + $0x70] sm:$0xff] 0.0
    %81 = vst [vmem:[#allocation2 + $0x78] sm:$0xff] 0.0
  $region77: #{dygr_encoder_forward.1} parent=0 // pred_fallthru
    _
  %v82 = vld [vmem:[#allocation2] sm:$0xff]
  %v83 = vld [vmem:[#allocation2 + $0x8] sm:$0xff]
  %v84 = vld [vmem:[#allocation2 + $0x10] sm:$0xff]
  %v85 = vld [vmem:[#allocation2 + $0x18] sm:$0xff]
  %v86 = vld [vmem:[#allocation2 + $0x20] sm:$0xff]
  %v87 = vld [vmem:[#allocation2 + $0x28] sm:$0xff]
  %v88 = vld [vmem:[#allocation2 + $0x30] sm:$0xff]
  %v89 = vld [vmem:[#allocation2 + $0x38] sm:$0xff]
  %v90 = vld [vmem:[#allocation2 + $0x40] sm:$0xff]
  %v91 = vld [vmem:[#allocation2 + $0x48] sm:$0xff]
  %v92 = vld [vmem:[#allocation2 + $0x50] sm:$0xff]
  %v93 = vld [vmem:[#allocation2 + $0x58] sm:$0xff]
  %v94 = vld [vmem:[#allocation2 + $0x60] sm:$0xff]
  %v95 = vld [vmem:[#allocation2 + $0x68] sm:$0xff]
  %v96 = vld [vmem:[#allocation2 + $0x70] sm:$0xff]
  %v97 = vld [vmem:[#allocation2 + $0x78] sm:$0xff]
  %v98 = vld [vmem:[%s0] sm:$0xf]
  %v99 = vld [vmem:[%s0 + $0x4] sm:$0xf]
  %v100 = vld [vmem:[%s0 + $0x8] sm:$0xf]
  %v101 = vld [vmem:[%s0 + $0xc] sm:$0xf]
  %v102 = vld [vmem:[%s0 + $0x10] sm:$0xf]
  %v103 = vld [vmem:[%s0 + $0x14] sm:$0xf]
  %v104 = vld [vmem:[%s0 + $0x18] sm:$0xf]
  %v105 = vld [vmem:[%s0 + $0x1c] sm:$0xf]
  %v106 = vld [vmem:[%s0 + $0x20] sm:$0xf]
  %v107 = vld [vmem:[%s0 + $0x24] sm:$0xf]
  %v108 = vld [vmem:[%s0 + $0x28] sm:$0xf]
  %v109 = vld [vmem:[%s0 + $0x2c] sm:$0xf]
  %v110 = vld [vmem:[%s0 + $0x30] sm:$0xf]
  %v111 = vld [vmem:[%s0 + $0x34] sm:$0xf]
  %v112 = vld [vmem:[%s0 + $0x38] sm:$0xf]
  %v113 = vld [vmem:[%s0 + $0x3c] sm:$0xf]
  %v114 = vld [vmem:[%s1] sm:$0xf]
  %v115 = vld [vmem:[%s1 + $0x4] sm:$0xf]
  %v116 = vld [vmem:[%s1 + $0x8] sm:$0xf]
  %v117 = vld [vmem:[%s1 + $0xc] sm:$0xf]
  %v118 = vld [vmem:[%s1 + $0x10] sm:$0xf]
  %v119 = vld [vmem:[%s1 + $0x14] sm:$0xf]
  %v120 = vld [vmem:[%s1 + $0x18] sm:$0xf]
  %v121 = vld [vmem:[%s1 + $0x1c] sm:$0xf]
  %v122 = vld [vmem:[%s1 + $0x20] sm:$0xf]
  %v123 = vld [vmem:[%s1 + $0x24] sm:$0xf]
  %v124 = vld [vmem:[%s1 + $0x28] sm:$0xf]
  %v125 = vld [vmem:[%s1 + $0x2c] sm:$0xf]
  %v126 = vld [vmem:[%s1 + $0x30] sm:$0xf]
  %v127 = vld [vmem:[%s1 + $0x34] sm:$0xf]
  %v128 = vld [vmem:[%s1 + $0x38] sm:$0xf]
  %v129 = vld [vmem:[%s1 + $0x3c] sm:$0xf]
  %v146 = vunpack.c.l.b16 %v98
  %v147 = vunpack.c.l.b16 %v99
  %v148 = vunpack.c.l.b16 %v100
  %v149 = vunpack.c.l.b16 %v101
  %v150 = vunpack.c.l.b16 %v102
  %v151 = vunpack.c.l.b16 %v103
  %v152 = vunpack.c.l.b16 %v104
  %v153 = vunpack.c.l.b16 %v105
  %v154 = vunpack.c.l.b16 %v106
  %v155 = vunpack.c.l.b16 %v107
  %v156 = vunpack.c.l.b16 %v108
  %v157 = vunpack.c.l.b16 %v109
  %v158 = vunpack.c.l.b16 %v110
  %v159 = vunpack.c.l.b16 %v111
  %v160 = vunpack.c.l.b16 %v112
  %v161 = vunpack.c.l.b16 %v113
  %v162 = vpack.c.b16 %v147, %v146
  %v163 = vpack.c.b16 %v149, %v148
  %v164 = vpack.c.b16 %v151, %v150
  %v165 = vpack.c.b16 %v153, %v152
  %v166 = vpack.c.b16 %v155, %v154
  %v167 = vpack.c.b16 %v157, %v156
  %v168 = vpack.c.b16 %v159, %v158
  %v169 = vpack.c.b16 %v161, %v160
  %v194 = vunpack.c.l.b16 %v114
  %v195 = vunpack.c.l.b16 %v115
  %v196 = vunpack.c.l.b16 %v116
  %v197 = vunpack.c.l.b16 %v117
  %v198 = vunpack.c.l.b16 %v118
  %v199 = vunpack.c.l.b16 %v119
  %v200 = vunpack.c.l.b16 %v120
  %v201 = vunpack.c.l.b16 %v121
  %v202 = vunpack.c.l.b16 %v122
  %v203 = vunpack.c.l.b16 %v123
  %v204 = vunpack.c.l.b16 %v124
  %v205 = vunpack.c.l.b16 %v125
  %v206 = vunpack.c.l.b16 %v126
  %v207 = vunpack.c.l.b16 %v127
  %v208 = vunpack.c.l.b16 %v128
  %v209 = vunpack.c.l.b16 %v129
  %v210 = vpack.c.b16 %v195, %v194
  %v211 = vpack.c.b16 %v197, %v196
  %v212 = vpack.c.b16 %v199, %v198
  %v213 = vpack.c.b16 %v201, %v200
  %v214 = vpack.c.b16 %v203, %v202
  %v215 = vpack.c.b16 %v205, %v204
  %v216 = vpack.c.b16 %v207, %v206
  %v217 = vpack.c.b16 %v209, %v208
  %226 = vmatpush.bf16.msra.mxu0 %v217
  %227 = vmatpush.bf16.msra.mxu0 %v216
  %228 = vmatpush.bf16.msra.mxu0 %v215
  %229 = vmatpush.bf16.msra.mxu0 %v214
  %230 = vmatpush.bf16.msra.mxu0 %v213
  %231 = vmatpush.bf16.msra.mxu0 %v212
  %232 = vmatpush.bf16.msra.mxu0 %v211
  %233 = vmatpush.bf16.msra.mxu0 %v210
  %234 = vmatmul.bf16.gmra.mxu0 %v162
  %v235 = vpop.f32.mrf.mxu0
  %v236 = vadd.f32 0.0, %v235
  %v237 = vpop.f32.mrf.mxu0
  %v238 = vadd.f32 0.0, %v237
  %239 = vmatmul.bf16.gmra.mxu0 %v163
  %v240 = vpop.f32.mrf.mxu0
  %v241 = vadd.f32 0.0, %v240
  %v242 = vpop.f32.mrf.mxu0
  %v243 = vadd.f32 0.0, %v242
  %244 = vmatmul.bf16.gmra.mxu0 %v164
  %v245 = vpop.f32.mrf.mxu0
  %v246 = vadd.f32 0.0, %v245
  %v247 = vpop.f32.mrf.mxu0
  %v248 = vadd.f32 0.0, %v247
  %249 = vmatmul.bf16.gmra.mxu0 %v165
  %v250 = vpop.f32.mrf.mxu0
  %v251 = vadd.f32 0.0, %v250
  %v252 = vpop.f32.mrf.mxu0
  %v253 = vadd.f32 0.0, %v252
  %254 = vmatmul.bf16.gmra.mxu0 %v166
  %v255 = vpop.f32.mrf.mxu0
  %v256 = vadd.f32 0.0, %v255
  %v257 = vpop.f32.mrf.mxu0
  %v258 = vadd.f32 0.0, %v257
  %259 = vmatmul.bf16.gmra.mxu0 %v167
  %v260 = vpop.f32.mrf.mxu0
  %v261 = vadd.f32 0.0, %v260
  %v262 = vpop.f32.mrf.mxu0
  %v263 = vadd.f32 0.0, %v262
  %264 = vmatmul.bf16.gmra.mxu0 %v168
  %v265 = vpop.f32.mrf.mxu0
  %v266 = vadd.f32 0.0, %v265
  %v267 = vpop.f32.mrf.mxu0
  %v268 = vadd.f32 0.0, %v267
  %269 = vmatmul.bf16.gmra.mxu0 %v169
  %v270 = vpop.f32.mrf.mxu0
  %v271 = vadd.f32 0.0, %v270
  %v272 = vpop.f32.mrf.mxu0
  %v273 = vadd.f32 0.0, %v272
  %274 = vdwg.mxu0
  %v275 = vadd.f32 %v82, %v236
  %v276 = vadd.f32 %v83, %v238
  %v277 = vadd.f32 %v84, %v241
  %v278 = vadd.f32 %v85, %v243
  %v279 = vadd.f32 %v86, %v246
  %v280 = vadd.f32 %v87, %v248
  %v281 = vadd.f32 %v88, %v251
  %v282 = vadd.f32 %v89, %v253
  %v283 = vadd.f32 %v90, %v256
  %v284 = vadd.f32 %v91, %v258
  %v285 = vadd.f32 %v92, %v261
  %v286 = vadd.f32 %v93, %v263
  %v287 = vadd.f32 %v94, %v266
  %v288 = vadd.f32 %v95, %v268
  %v289 = vadd.f32 %v96, %v271
  %v290 = vadd.f32 %v97, %v273
  %291 = vst [vmem:[#allocation2] sm:$0xff] %v275
  %292 = vst [vmem:[#allocation2 + $0x8] sm:$0xff] %v276
  %293 = vst [vmem:[#allocation2 + $0x10] sm:$0xff] %v277
  %294 = vst [vmem:[#allocation2 + $0x18] sm:$0xff] %v278
  %295 = vst [vmem:[#allocation2 + $0x20] sm:$0xff] %v279
  %296 = vst [vmem:[#allocation2 + $0x28] sm:$0xff] %v280
  %297 = vst [vmem:[#allocation2 + $0x30] sm:$0xff] %v281
  %298 = vst [vmem:[#allocation2 + $0x38] sm:$0xff] %v282
  %299 = vst [vmem:[#allocation2 + $0x40] sm:$0xff] %v283
  %300 = vst [vmem:[#allocation2 + $0x48] sm:$0xff] %v284
  %301 = vst [vmem:[#allocation2 + $0x50] sm:$0xff] %v285
  %302 = vst [vmem:[#allocation2 + $0x58] sm:$0xff] %v286
  %303 = vst [vmem:[#allocation2 + $0x60] sm:$0xff] %v287
  %304 = vst [vmem:[#allocation2 + $0x68] sm:$0xff] %v288
  %305 = vst [vmem:[#allocation2 + $0x70] sm:$0xff] %v289
  %306 = vst [vmem:[#allocation2 + $0x78] sm:$0xff] %v290
  // Predicated region
  $region78: #{dygr_encoder_forward.1} parent=0 // pred_check
    %p307 = pneg %p62
  $region79: #{dygr_encoder_forward.1} parent=0 // pred_check_branch
    %309 = sbr.rel (%p307) target = $region81
  $region80: #{dygr_encoder_forward.1} parent=0 // pred_region
    %v310 = vld [vmem:[%s2] sm:$0xff]
    %v311 = vld [vmem:[%s2 + $0x8] sm:$0xff]
    %v312 = vld [vmem:[%s2 + $0x10] sm:$0xff]
    %v313 = vld [vmem:[%s2 + $0x18] sm:$0xff]
    %v314 = vld [vmem:[%s2 + $0x20] sm:$0xff]
    %v315 = vld [vmem:[%s2 + $0x28] sm:$0xff]
    %v316 = vld [vmem:[%s2 + $0x30] sm:$0xff]
    %v317 = vld [vmem:[%s2 + $0x38] sm:$0xff]
    %v318 = vld [vmem:[%s2 + $0x40] sm:$0xff]
    %v319 = vld [vmem:[%s2 + $0x48] sm:$0xff]
    %v320 = vld [vmem:[%s2 + $0x50] sm:$0xff]
    %v321 = vld [vmem:[%s2 + $0x58] sm:$0xff]
    %v322 = vld [vmem:[%s2 + $0x60] sm:$0xff]
    %v323 = vld [vmem:[%s2 + $0x68] sm:$0xff]
    %v324 = vld [vmem:[%s2 + $0x70] sm:$0xff]
    %v325 = vld [vmem:[%s2 + $0x78] sm:$0xff]
    %v326 = vpack.c.bf16 %v311, %v310
    %v327 = vpack.c.bf16 %v313, %v312
    %v328 = vpack.c.bf16 %v315, %v314
    %v329 = vpack.c.bf16 %v317, %v316
    %v330 = vpack.c.bf16 %v319, %v318
    %v331 = vpack.c.bf16 %v321, %v320
    %v332 = vpack.c.bf16 %v323, %v322
    %v333 = vpack.c.bf16 %v325, %v324
    %v334 = vld [vmem:[#allocation2] sm:$0xff]
    %v335 = vld [vmem:[#allocation2 + $0x8] sm:$0xff]
    %v336 = vld [vmem:[#allocation2 + $0x10] sm:$0xff]
    %v337 = vld [vmem:[#allocation2 + $0x18] sm:$0xff]
    %v338 = vld [vmem:[#allocation2 + $0x20] sm:$0xff]
    %v339 = vld [vmem:[#allocation2 + $0x28] sm:$0xff]
    %v340 = vld [vmem:[#allocation2 + $0x30] sm:$0xff]
    %v341 = vld [vmem:[#allocation2 + $0x38] sm:$0xff]
    %v342 = vld [vmem:[#allocation2 + $0x40] sm:$0xff]
    %v343 = vld [vmem:[#allocation2 + $0x48] sm:$0xff]
    %v344 = vld [vmem:[#allocation2 + $0x50] sm:$0xff]
    %v345 = vld [vmem:[#allocation2 + $0x58] sm:$0xff]
    %v346 = vld [vmem:[#allocation2 + $0x60] sm:$0xff]
    %v347 = vld [vmem:[#allocation2 + $0x68] sm:$0xff]
    %v348 = vld [vmem:[#allocation2 + $0x70] sm:$0xff]
    %v349 = vld [vmem:[#allocation2 + $0x78] sm:$0xff]
    %v350 = vpack.c.bf16 %v335, %v334
    %v351 = vpack.c.bf16 %v337, %v336
    %v352 = vpack.c.bf16 %v339, %v338
    %v353 = vpack.c.bf16 %v341, %v340
    %v354 = vpack.c.bf16 %v343, %v342
    %v355 = vpack.c.bf16 %v345, %v344
    %v356 = vpack.c.bf16 %v347, %v346
    %v357 = vpack.c.bf16 %v349, %v348
    %v358 = vld [vmem:[%s3] sm:$0xf]
    %v359 = vld [vmem:[%s3 + $0x4] sm:$0xf]
    %v360 = vld [vmem:[%s3 + $0x8] sm:$0xf]
    %v361 = vld [vmem:[%s3 + $0xc] sm:$0xf]
    %v362 = vld [vmem:[%s3 + $0x10] sm:$0xf]
    %v363 = vld [vmem:[%s3 + $0x14] sm:$0xf]
    %v364 = vld [vmem:[%s3 + $0x18] sm:$0xf]
    %v365 = vld [vmem:[%s3 + $0x1c] sm:$0xf]
    %v366 = vld [vmem:[%s3 + $0x20] sm:$0xf]
    %v367 = vld [vmem:[%s3 + $0x24] sm:$0xf]
    %v368 = vld [vmem:[%s3 + $0x28] sm:$0xf]
    %v369 = vld [vmem:[%s3 + $0x2c] sm:$0xf]
    %v370 = vld [vmem:[%s3 + $0x30] sm:$0xf]
    %v371 = vld [vmem:[%s3 + $0x34] sm:$0xf]
    %v372 = vld [vmem:[%s3 + $0x38] sm:$0xf]
    %v373 = vld [vmem:[%s3 + $0x3c] sm:$0xf]
    %v390 = vunpack.c.l.b16 %v358
    %v391 = vunpack.c.l.b16 %v359
    %v392 = vunpack.c.l.b16 %v360
    %v393 = vunpack.c.l.b16 %v361
    %v394 = vunpack.c.l.b16 %v362
    %v395 = vunpack.c.l.b16 %v363
    %v396 = vunpack.c.l.b16 %v364
    %v397 = vunpack.c.l.b16 %v365
    %v398 = vunpack.c.l.b16 %v366
    %v399 = vunpack.c.l.b16 %v367
    %v400 = vunpack.c.l.b16 %v368
    %v401 = vunpack.c.l.b16 %v369
    %v402 = vunpack.c.l.b16 %v370
    %v403 = vunpack.c.l.b16 %v371
    %v404 = vunpack.c.l.b16 %v372
    %v405 = vunpack.c.l.b16 %v373
    %v406 = vpack.c.b16 %v391, %v390
    %v407 = vpack.c.b16 %v393, %v392
    %v408 = vpack.c.b16 %v395, %v394
    %v409 = vpack.c.b16 %v397, %v396
    %v410 = vpack.c.b16 %v399, %v398
    %v411 = vpack.c.b16 %v401, %v400
    %v412 = vpack.c.b16 %v403, %v402
    %v413 = vpack.c.b16 %v405, %v404
    %422 = vmatpush.bf16.msra.mxu0 %v413
    %423 = vmatpush.bf16.msra.mxu0 %v412
    %424 = vmatpush.bf16.msra.mxu0 %v411
    %425 = vmatpush.bf16.msra.mxu0 %v410
    %426 = vmatpush.bf16.msra.mxu0 %v409
    %427 = vmatpush.bf16.msra.mxu0 %v408
    %428 = vmatpush.bf16.msra.mxu0 %v407
    %429 = vmatpush.bf16.msra.mxu0 %v406
    %430 = vmatmul.bf16.gmra.mxu0 %v350
    %v431 = vpop.f32.mrf.mxu0
    %v432 = vadd.f32 0.0, %v431
    %v433 = vpop.f32.mrf.mxu0
    %v434 = vadd.f32 0.0, %v433
    %435 = vmatmul.bf16.gmra.mxu0 %v351
    %v436 = vpop.f32.mrf.mxu0
    %v437 = vadd.f32 0.0, %v436
    %v438 = vpop.f32.mrf.mxu0
    %v439 = vadd.f32 0.0, %v438
    %440 = vmatmul.bf16.gmra.mxu0 %v352
    %v441 = vpop.f32.mrf.mxu0
    %v442 = vadd.f32 0.0, %v441
    %v443 = vpop.f32.mrf.mxu0
    %v444 = vadd.f32 0.0, %v443
    %445 = vmatmul.bf16.gmra.mxu0 %v353
    %v446 = vpop.f32.mrf.mxu0
    %v447 = vadd.f32 0.0, %v446
    %v448 = vpop.f32.mrf.mxu0
    %v449 = vadd.f32 0.0, %v448
    %450 = vmatmul.bf16.gmra.mxu0 %v354
    %v451 = vpop.f32.mrf.mxu0
    %v452 = vadd.f32 0.0, %v451
    %v453 = vpop.f32.mrf.mxu0
    %v454 = vadd.f32 0.0, %v453
    %455 = vmatmul.bf16.gmra.mxu0 %v355
    %v456 = vpop.f32.mrf.mxu0
    %v457 = vadd.f32 0.0, %v456
    %v458 = vpop.f32.mrf.mxu0
    %v459 = vadd.f32 0.0, %v458
    %460 = vmatmul.bf16.gmra.mxu0 %v356
    %v461 = vpop.f32.mrf.mxu0
    %v462 = vadd.f32 0.0, %v461
    %v463 = vpop.f32.mrf.mxu0
    %v464 = vadd.f32 0.0, %v463
    %465 = vmatmul.bf16.gmra.mxu0 %v357
    %v466 = vpop.f32.mrf.mxu0
    %v467 = vadd.f32 0.0, %v466
    %v468 = vpop.f32.mrf.mxu0
    %v469 = vadd.f32 0.0, %v468
    %470 = vdwg.mxu0
    %v471 = vpack.c.bf16 %v434, %v432
    %v472 = vpack.c.bf16 %v439, %v437
    %v473 = vpack.c.bf16 %v444, %v442
    %v474 = vpack.c.bf16 %v449, %v447
    %v475 = vpack.c.bf16 %v454, %v452
    %v476 = vpack.c.bf16 %v459, %v457
    %v477 = vpack.c.bf16 %v464, %v462
    %v478 = vpack.c.bf16 %v469, %v467
    %v479 = vld [vmem:[%s4] sm:$0xff]
    %v480 = vld [vmem:[%s4 + $0x8] sm:$0xff]
    %v481 = vld [vmem:[%s4 + $0x10] sm:$0xff]
    %v482 = vld [vmem:[%s4 + $0x18] sm:$0xff]
    %v483 = vld [vmem:[%s4 + $0x20] sm:$0xff]
    %v484 = vld [vmem:[%s4 + $0x28] sm:$0xff]
    %v485 = vld [vmem:[%s4 + $0x30] sm:$0xff]
    %v486 = vld [vmem:[%s4 + $0x38] sm:$0xff]
    %v487 = vld [vmem:[%s4 + $0x40] sm:$0xff]
    %v488 = vld [vmem:[%s4 + $0x48] sm:$0xff]
    %v489 = vld [vmem:[%s4 + $0x50] sm:$0xff]
    %v490 = vld [vmem:[%s4 + $0x58] sm:$0xff]
    %v491 = vld [vmem:[%s4 + $0x60] sm:$0xff]
    %v492 = vld [vmem:[%s4 + $0x68] sm:$0xff]
    %v493 = vld [vmem:[%s4 + $0x70] sm:$0xff]
    %v494 = vld [vmem:[%s4 + $0x78] sm:$0xff]
    %v495 = vld [vmem:[%s5] sm:$0xff]
    %v496 = vld [vmem:[%s5 + $0x8] sm:$0xff]
    %v497 = vld [vmem:[%s5 + $0x10] sm:$0xff]
    %v498 = vld [vmem:[%s5 + $0x18] sm:$0xff]
    %v499 = vld [vmem:[%s5 + $0x20] sm:$0xff]
    %v500 = vld [vmem:[%s5 + $0x28] sm:$0xff]
    %v501 = vld [vmem:[%s5 + $0x30] sm:$0xff]
    %v502 = vld [vmem:[%s5 + $0x38] sm:$0xff]
    %v503 = vld [vmem:[%s5 + $0x40] sm:$0xff]
    %v504 = vld [vmem:[%s5 + $0x48] sm:$0xff]
    %v505 = vld [vmem:[%s5 + $0x50] sm:$0xff]
    %v506 = vld [vmem:[%s5 + $0x58] sm:$0xff]
    %v507 = vld [vmem:[%s5 + $0x60] sm:$0xff]
    %v508 = vld [vmem:[%s5 + $0x68] sm:$0xff]
    %v509 = vld [vmem:[%s5 + $0x70] sm:$0xff]
    %v510 = vld [vmem:[%s5 + $0x78] sm:$0xff]
    %v527 = vunpack.c.l.b16 %v495
    %v528 = vunpack.c.h.b16 %v495
    %v529 = vunpack.c.l.b16 %v496
    %v530 = vunpack.c.h.b16 %v496
    %v531 = vunpack.c.l.b16 %v497
    %v532 = vunpack.c.h.b16 %v497
    %v533 = vunpack.c.l.b16 %v498
    %v534 = vunpack.c.h.b16 %v498
    %v535 = vunpack.c.l.b16 %v499
    %v536 = vunpack.c.h.b16 %v499
    %v537 = vunpack.c.l.b16 %v500
    %v538 = vunpack.c.h.b16 %v500
    %v539 = vunpack.c.l.b16 %v501
    %v540 = vunpack.c.h.b16 %v501
    %v541 = vunpack.c.l.b16 %v502
    %v542 = vunpack.c.h.b16 %v502
    %v543 = vunpack.c.l.b16 %v503
    %v544 = vunpack.c.h.b16 %v503
    %v545 = vunpack.c.l.b16 %v504
    %v546 = vunpack.c.h.b16 %v504
    %v547 = vunpack.c.l.b16 %v505
    %v548 = vunpack.c.h.b16 %v505
    %v549 = vunpack.c.l.b16 %v506
    %v550 = vunpack.c.h.b16 %v506
    %v551 = vunpack.c.l.b16 %v507
    %v552 = vunpack.c.h.b16 %v507
    %v553 = vunpack.c.l.b16 %v508
    %v554 = vunpack.c.h.b16 %v508
    %v555 = vunpack.c.l.b16 %v509
    %v556 = vunpack.c.h.b16 %v509
    %v557 = vunpack.c.l.b16 %v510
    %v558 = vunpack.c.h.b16 %v510
    %v559 = vpack.c.b16 %v529, %v527
    %v560 = vpack.c.b16 %v530, %v528
    %v561 = vpack.c.b16 %v533, %v531
    %v562 = vpack.c.b16 %v534, %v532
    %v563 = vpack.c.b16 %v537, %v535
    %v564 = vpack.c.b16 %v538, %v536
    %v565 = vpack.c.b16 %v541, %v539
    %v566 = vpack.c.b16 %v542, %v540
    %v567 = vpack.c.b16 %v545, %v543
    %v568 = vpack.c.b16 %v546, %v544
    %v569 = vpack.c.b16 %v549, %v547
    %v570 = vpack.c.b16 %v550, %v548
    %v571 = vpack.c.b16 %v553, %v551
    %v572 = vpack.c.b16 %v554, %v552
    %v573 = vpack.c.b16 %v557, %v555
    %v574 = vpack.c.b16 %v558, %v556
    %591 = vmatpush.bf16.msra.mxu0 %v573
    %592 = vmatpush.bf16.msra.mxu0 %v571
    %593 = vmatpush.bf16.msra.mxu0 %v569
    %594 = vmatpush.bf16.msra.mxu0 %v567
    %595 = vmatpush.bf16.msra.mxu0 %v565
    %596 = vmatpush.bf16.msra.mxu0 %v563
    %597 = vmatpush.bf16.msra.mxu0 %v561
    %598 = vmatpush.bf16.msra.mxu0 %v559
    %599 = vmatmul.bf16.gmra.mxu0 %v326
    %v600 = vpop.f32.mrf.mxu0
    %v601 = vadd.f32 0.0, %v600
    %v602 = vpop.f32.mrf.mxu0
    %v603 = vadd.f32 0.0, %v602
    %604 = vmatmul.bf16.gmra.mxu0 %v327
    %v605 = vpop.f32.mrf.mxu0
    %v606 = vadd.f32 0.0, %v605
    %v607 = vpop.f32.mrf.mxu0
    %v608 = vadd.f32 0.0, %v607
    %609 = vmatmul.bf16.gmra.mxu0 %v328
    %v610 = vpop.f32.mrf.mxu0
    %v611 = vadd.f32 0.0, %v610
    %v612 = vpop.f32.mrf.mxu0
    %v613 = vadd.f32 0.0, %v612
    %614 = vmatmul.bf16.gmra.mxu0 %v329
    %v615 = vpop.f32.mrf.mxu0
    %v616 = vadd.f32 0.0, %v615
    %v617 = vpop.f32.mrf.mxu0
    %v618 = vadd.f32 0.0, %v617
    %619 = vmatmul.bf16.gmra.mxu0 %v330
    %v620 = vpop.f32.mrf.mxu0
    %v621 = vadd.f32 0.0, %v620
    %v622 = vpop.f32.mrf.mxu0
    %v623 = vadd.f32 0.0, %v622
    %624 = vmatmul.bf16.gmra.mxu0 %v331
    %v625 = vpop.f32.mrf.mxu0
    %v626 = vadd.f32 0.0, %v625
    %v627 = vpop.f32.mrf.mxu0
    %v628 = vadd.f32 0.0, %v627
    %629 = vmatmul.bf16.gmra.mxu0 %v332
    %v630 = vpop.f32.mrf.mxu0
    %v631 = vadd.f32 0.0, %v630
    %v632 = vpop.f32.mrf.mxu0
    %v633 = vadd.f32 0.0, %v632
    %634 = vmatmul.bf16.gmra.mxu0 %v333
    %v635 = vpop.f32.mrf.mxu0
    %v636 = vadd.f32 0.0, %v635
    %v637 = vpop.f32.mrf.mxu0
    %v638 = vadd.f32 0.0, %v637
    %639 = vdwg.mxu0
    %640 = vmatpush.bf16.msra.mxu0 %v574
    %641 = vmatpush.bf16.msra.mxu0 %v572
    %642 = vmatpush.bf16.msra.mxu0 %v570
    %643 = vmatpush.bf16.msra.mxu0 %v568
    %644 = vmatpush.bf16.msra.mxu0 %v566
    %645 = vmatpush.bf16.msra.mxu0 %v564
    %646 = vmatpush.bf16.msra.mxu0 %v562
    %647 = vmatpush.bf16.msra.mxu0 %v560
    %648 = vmatmul.bf16.gmra.mxu0 %v326
    %v649 = vpop.f32.mrf.mxu0
    %v650 = vadd.f32 0.0, %v649
    %v651 = vpop.f32.mrf.mxu0
    %v652 = vadd.f32 0.0, %v651
    %653 = vmatmul.bf16.gmra.mxu0 %v327
    %v654 = vpop.f32.mrf.mxu0
    %v655 = vadd.f32 0.0, %v654
    %v656 = vpop.f32.mrf.mxu0
    %v657 = vadd.f32 0.0, %v656
    %658 = vmatmul.bf16.gmra.mxu0 %v328
    %v659 = vpop.f32.mrf.mxu0
    %v660 = vadd.f32 0.0, %v659
    %v661 = vpop.f32.mrf.mxu0
    %v662 = vadd.f32 0.0, %v661
    %663 = vmatmul.bf16.gmra.mxu0 %v329
    %v664 = vpop.f32.mrf.mxu0
    %v665 = vadd.f32 0.0, %v664
    %v666 = vpop.f32.mrf.mxu0
    %v667 = vadd.f32 0.0, %v666
    %668 = vmatmul.bf16.gmra.mxu0 %v330
    %v669 = vpop.f32.mrf.mxu0
    %v670 = vadd.f32 0.0, %v669
    %v671 = vpop.f32.mrf.mxu0
    %v672 = vadd.f32 0.0, %v671
    %673 = vmatmul.bf16.gmra.mxu0 %v331
    %v674 = vpop.f32.mrf.mxu0
    %v675 = vadd.f32 0.0, %v674
    %v676 = vpop.f32.mrf.mxu0
    %v677 = vadd.f32 0.0, %v676
    %678 = vmatmul.bf16.gmra.mxu0 %v332
    %v679 = vpop.f32.mrf.mxu0
    %v680 = vadd.f32 0.0, %v679
    %v681 = vpop.f32.mrf.mxu0
    %v682 = vadd.f32 0.0, %v681
    %683 = vmatmul.bf16.gmra.mxu0 %v333
    %v684 = vpop.f32.mrf.mxu0
    %v685 = vadd.f32 0.0, %v684
    %v686 = vpop.f32.mrf.mxu0
    %v687 = vadd.f32 0.0, %v686
    %688 = vdwg.mxu0
    %v705 = vunpack.c.l.b16 %v479
    %v706 = vunpack.c.h.b16 %v479
    %v707 = vunpack.c.l.b16 %v480
    %v708 = vunpack.c.h.b16 %v480
    %v709 = vunpack.c.l.b16 %v481
    %v710 = vunpack.c.h.b16 %v481
    %v711 = vunpack.c.l.b16 %v482
    %v712 = vunpack.c.h.b16 %v482
    %v713 = vunpack.c.l.b16 %v483
    %v714 = vunpack.c.h.b16 %v483
    %v715 = vunpack.c.l.b16 %v484
    %v716 = vunpack.c.h.b16 %v484
    %v717 = vunpack.c.l.b16 %v485
    %v718 = vunpack.c.h.b16 %v485
    %v719 = vunpack.c.l.b16 %v486
    %v720 = vunpack.c.h.b16 %v486
    %v721 = vunpack.c.l.b16 %v487
    %v722 = vunpack.c.h.b16 %v487
    %v723 = vunpack.c.l.b16 %v488
    %v724 = vunpack.c.h.b16 %v488
    %v725 = vunpack.c.l.b16 %v489
    %v726 = vunpack.c.h.b16 %v489
    %v727 = vunpack.c.l.b16 %v490
    %v728 = vunpack.c.h.b16 %v490
    %v729 = vunpack.c.l.b16 %v491
    %v730 = vunpack.c.h.b16 %v491
    %v731 = vunpack.c.l.b16 %v492
    %v732 = vunpack.c.h.b16 %v492
    %v733 = vunpack.c.l.b16 %v493
    %v734 = vunpack.c.h.b16 %v493
    %v735 = vunpack.c.l.b16 %v494
    %v736 = vunpack.c.h.b16 %v494
    %v737 = vpack.c.b16 %v707, %v705
    %v738 = vpack.c.b16 %v708, %v706
    %v739 = vpack.c.b16 %v711, %v709
    %v740 = vpack.c.b16 %v712, %v710
    %v741 = vpack.c.b16 %v715, %v713
    %v742 = vpack.c.b16 %v716, %v714
    %v743 = vpack.c.b16 %v719, %v717
    %v744 = vpack.c.b16 %v720, %v718
    %v745 = vpack.c.b16 %v723, %v721
    %v746 = vpack.c.b16 %v724, %v722
    %v747 = vpack.c.b16 %v727, %v725
    %v748 = vpack.c.b16 %v728, %v726
    %v749 = vpack.c.b16 %v731, %v729
    %v750 = vpack.c.b16 %v732, %v730
    %v751 = vpack.c.b16 %v735, %v733
    %v752 = vpack.c.b16 %v736, %v734
    %769 = vmatpush.bf16.msra.mxu0 %v751
    %770 = vmatpush.bf16.msra.mxu0 %v749
    %771 = vmatpush.bf16.msra.mxu0 %v747
    %772 = vmatpush.bf16.msra.mxu0 %v745
    %773 = vmatpush.bf16.msra.mxu0 %v743
    %774 = vmatpush.bf16.msra.mxu0 %v741
    %775 = vmatpush.bf16.msra.mxu0 %v739
    %776 = vmatpush.bf16.msra.mxu0 %v737
    %777 = vmatmul.bf16.gmra.mxu0 %v471
    %v778 = vpop.f32.mrf.mxu0
    %v779 = vadd.f32 %v601, %v778
    %v780 = vpop.f32.mrf.mxu0
    %v781 = vadd.f32 %v603, %v780
    %782 = vmatmul.bf16.gmra.mxu0 %v472
    %v783 = vpop.f32.mrf.mxu0
    %v784 = vadd.f32 %v606, %v783
    %v785 = vpop.f32.mrf.mxu0
    %v786 = vadd.f32 %v608, %v785
    %787 = vmatmul.bf16.gmra.mxu0 %v473
    %v788 = vpop.f32.mrf.mxu0
    %v789 = vadd.f32 %v611, %v788
    %v790 = vpop.f32.mrf.mxu0
    %v791 = vadd.f32 %v613, %v790
    %792 = vmatmul.bf16.gmra.mxu0 %v474
    %v793 = vpop.f32.mrf.mxu0
    %v794 = vadd.f32 %v616, %v793
    %v795 = vpop.f32.mrf.mxu0
    %v796 = vadd.f32 %v618, %v795
    %797 = vmatmul.bf16.gmra.mxu0 %v475
    %v798 = vpop.f32.mrf.mxu0
    %v799 = vadd.f32 %v621, %v798
    %v800 = vpop.f32.mrf.mxu0
    %v801 = vadd.f32 %v623, %v800
    %802 = vmatmul.bf16.gmra.mxu0 %v476
    %v803 = vpop.f32.mrf.mxu0
    %v804 = vadd.f32 %v626, %v803
    %v805 = vpop.f32.mrf.mxu0
    %v806 = vadd.f32 %v628, %v805
    %807 = vmatmul.bf16.gmra.mxu0 %v477
    %v808 = vpop.f32.mrf.mxu0
    %v809 = vadd.f32 %v631, %v808
    %v810 = vpop.f32.mrf.mxu0
    %v811 = vadd.f32 %v633, %v810
    %812 = vmatmul.bf16.gmra.mxu0 %v478
    %v813 = vpop.f32.mrf.mxu0
    %v814 = vadd.f32 %v636, %v813
    %v815 = vpop.f32.mrf.mxu0
    %v816 = vadd.f32 %v638, %v815
    %817 = vdwg.mxu0
    %818 = vmatpush.bf16.msra.mxu0 %v752
    %819 = vmatpush.bf16.msra.mxu0 %v750
    %820 = vmatpush.bf16.msra.mxu0 %v748
    %821 = vmatpush.bf16.msra.mxu0 %v746
    %822 = vmatpush.bf16.msra.mxu0 %v744
    %823 = vmatpush.bf16.msra.mxu0 %v742
    %824 = vmatpush.bf16.msra.mxu0 %v740
    %825 = vmatpush.bf16.msra.mxu0 %v738
    %826 = vmatmul.bf16.gmra.mxu0 %v471
    %v827 = vpop.f32.mrf.mxu0
    %v828 = vadd.f32 %v650, %v827
    %v829 = vpop.f32.mrf.mxu0
    %v830 = vadd.f32 %v652, %v829
    %831 = vmatmul.bf16.gmra.mxu0 %v472
    %v832 = vpop.f32.mrf.mxu0
    %v833 = vadd.f32 %v655, %v832
    %v834 = vpop.f32.mrf.mxu0
    %v835 = vadd.f32 %v657, %v834
    %836 = vmatmul.bf16.gmra.mxu0 %v473
    %v837 = vpop.f32.mrf.mxu0
    %v838 = vadd.f32 %v660, %v837
    %v839 = vpop.f32.mrf.mxu0
    %v840 = vadd.f32 %v662, %v839
    %841 = vmatmul.bf16.gmra.mxu0 %v474
    %v842 = vpop.f32.mrf.mxu0
    %v843 = vadd.f32 %v665, %v842
    %v844 = vpop.f32.mrf.mxu0
    %v845 = vadd.f32 %v667, %v844
    %846 = vmatmul.bf16.gmra.mxu0 %v475
    %v847 = vpop.f32.mrf.mxu0
    %v848 = vadd.f32 %v670, %v847
    %v849 = vpop.f32.mrf.mxu0
    %v850 = vadd.f32 %v672, %v849
    %851 = vmatmul.bf16.gmra.mxu0 %v476
    %v852 = vpop.f32.mrf.mxu0
    %v853 = vadd.f32 %v675, %v852
    %v854 = vpop.f32.mrf.mxu0
    %v855 = vadd.f32 %v677, %v854
    %856 = vmatmul.bf16.gmra.mxu0 %v477
    %v857 = vpop.f32.mrf.mxu0
    %v858 = vadd.f32 %v680, %v857
    %v859 = vpop.f32.mrf.mxu0
    %v860 = vadd.f32 %v682, %v859
    %861 = vmatmul.bf16.gmra.mxu0 %v478
    %v862 = vpop.f32.mrf.mxu0
    %v863 = vadd.f32 %v685, %v862
    %v864 = vpop.f32.mrf.mxu0
    %v865 = vadd.f32 %v687, %v864
    %866 = vdwg.mxu0
    %v867 = vld [vmem:[%s6] sm:$0x3]
    %v869 = vperm.slane %v867, 0
    %v870 = vperm.slane %v867, 1
    %v873 = vadd.f32 %v779, %v869
    %v874 = vadd.f32 %v828, %v870
    %v875 = vadd.f32 %v781, %v869
    %v876 = vadd.f32 %v830, %v870
    %v877 = vadd.f32 %v784, %v869
    %v878 = vadd.f32 %v833, %v870
    %v879 = vadd.f32 %v786, %v869
    %v880 = vadd.f32 %v835, %v870
    %v881 = vadd.f32 %v789, %v869
    %v882 = vadd.f32 %v838, %v870
    %v883 = vadd.f32 %v791, %v869
    %v884 = vadd.f32 %v840, %v870
    %v885 = vadd.f32 %v794, %v869
    %v886 = vadd.f32 %v843, %v870
    %v887 = vadd.f32 %v796, %v869
    %v888 = vadd.f32 %v845, %v870
    %v889 = vadd.f32 %v799, %v869
    %v890 = vadd.f32 %v848, %v870
    %v891 = vadd.f32 %v801, %v869
    %v892 = vadd.f32 %v850, %v870
    %v893 = vadd.f32 %v804, %v869
    %v894 = vadd.f32 %v853, %v870
    %v895 = vadd.f32 %v806, %v869
    %v896 = vadd.f32 %v855, %v870
    %v897 = vadd.f32 %v809, %v869
    %v898 = vadd.f32 %v858, %v870
    %v899 = vadd.f32 %v811, %v869
    %v900 = vadd.f32 %v860, %v870
    %v901 = vadd.f32 %v814, %v869
    %v902 = vadd.f32 %v863, %v870
    %v903 = vadd.f32 %v816, %v869
    %v904 = vadd.f32 %v865, %v870
    %v905 = vxor.u32 %v873, 2147483648
    %v906 = vxor.u32 %v874, 2147483648
    %v907 = vxor.u32 %v875, 2147483648
    %v908 = vxor.u32 %v876, 2147483648
    %v909 = vxor.u32 %v877, 2147483648
    %v910 = vxor.u32 %v878, 2147483648
    %v911 = vxor.u32 %v879, 2147483648
    %v912 = vxor.u32 %v880, 2147483648
    %v913 = vxor.u32 %v881, 2147483648
    %v914 = vxor.u32 %v882, 2147483648
    %v915 = vxor.u32 %v883, 2147483648
    %v916 = vxor.u32 %v884, 2147483648
    %v917 = vxor.u32 %v885, 2147483648
    %v918 = vxor.u32 %v886, 2147483648
    %v919 = vxor.u32 %v887, 2147483648
    %v920 = vxor.u32 %v888, 2147483648
    %v921 = vxor.u32 %v889, 2147483648
    %v922 = vxor.u32 %v890, 2147483648
    %v923 = vxor.u32 %v891, 2147483648
    %v924 = vxor.u32 %v892, 2147483648
    %v925 = vxor.u32 %v893, 2147483648
    %v926 = vxor.u32 %v894, 2147483648
    %v927 = vxor.u32 %v895, 2147483648
    %v928 = vxor.u32 %v896, 2147483648
    %v929 = vxor.u32 %v897, 2147483648
    %v930 = vxor.u32 %v898, 2147483648
    %v931 = vxor.u32 %v899, 2147483648
    %v932 = vxor.u32 %v900, 2147483648
    %v933 = vxor.u32 %v901, 2147483648
    %v934 = vxor.u32 %v902, 2147483648
    %v935 = vxor.u32 %v903, 2147483648
    %v936 = vxor.u32 %v904, 2147483648
    %v937 = vmul.f32 %v905, 1.442695
    %v938 = vpow.pop %v937
    %v939 = vmul.f32 %v906, 1.442695
    %v940 = vpow.pop %v939
    %v941 = vmul.f32 %v907, 1.442695
    %v942 = vpow.pop %v941
    %v943 = vmul.f32 %v908, 1.442695
    %v944 = vpow.pop %v943
    %v945 = vmul.f32 %v909, 1.442695
    %v946 = vpow.pop %v945
    %v947 = vmul.f32 %v910, 1.442695
    %v948 = vpow.pop %v947
    %v949 = vmul.f32 %v911, 1.442695
    %v950 = vpow.pop %v949
    %v951 = vmul.f32 %v912, 1.442695
    %v952 = vpow.pop %v951
    %v953 = vmul.f32 %v913, 1.442695
    %v954 = vpow.pop %v953
    %v955 = vmul.f32 %v914, 1.442695
    %v956 = vpow.pop %v955
    %v957 = vmul.f32 %v915, 1.442695
    %v958 = vpow.pop %v957
    %v959 = vmul.f32 %v916, 1.442695
    %v960 = vpow.pop %v959
    %v961 = vmul.f32 %v917, 1.442695
    %v962 = vpow.pop %v961
    %v963 = vmul.f32 %v918, 1.442695
    %v964 = vpow.pop %v963
    %v965 = vmul.f32 %v919, 1.442695
    %v966 = vpow.pop %v965
    %v967 = vmul.f32 %v920, 1.442695
    %v968 = vpow.pop %v967
    %v969 = vmul.f32 %v921, 1.442695
    %v970 = vpow.pop %v969
    %v971 = vmul.f32 %v922, 1.442695
    %v972 = vpow.pop %v971
    %v973 = vmul.f32 %v923, 1.442695
    %v974 = vpow.pop %v973
    %v975 = vmul.f32 %v924, 1.442695
    %v976 = vpow.pop %v975
    %v977 = vmul.f32 %v925, 1.442695
    %v978 = vpow.pop %v977
    %v979 = vmul.f32 %v926, 1.442695
    %v980 = vpow.pop %v979
    %v981 = vmul.f32 %v927, 1.442695
    %v982 = vpow.pop %v981
    %v983 = vmul.f32 %v928, 1.442695
    %v984 = vpow.pop %v983
    %v985 = vmul.f32 %v929, 1.442695
    %v986 = vpow.pop %v985
    %v987 = vmul.f32 %v930, 1.442695
    %v988 = vpow.pop %v987
    %v989 = vmul.f32 %v931, 1.442695
    %v990 = vpow.pop %v989
    %v991 = vmul.f32 %v932, 1.442695
    %v992 = vpow.pop %v991
    %v993 = vmul.f32 %v933, 1.442695
    %v994 = vpow.pop %v993
    %v995 = vmul.f32 %v934, 1.442695
    %v996 = vpow.pop %v995
    %v997 = vmul.f32 %v935, 1.442695
    %v998 = vpow.pop %v997
    %v999 = vmul.f32 %v936, 1.442695
    %v1000 = vpow.pop %v999
    %v1001 = vadd.f32 %v938, 1.0
    %v1002 = vadd.f32 %v940, 1.0
    %v1003 = vadd.f32 %v942, 1.0
    %v1004 = vadd.f32 %v944, 1.0
    %v1005 = vadd.f32 %v946, 1.0
    %v1006 = vadd.f32 %v948, 1.0
    %v1007 = vadd.f32 %v950, 1.0
    %v1008 = vadd.f32 %v952, 1.0
    %v1009 = vadd.f32 %v954, 1.0
    %v1010 = vadd.f32 %v956, 1.0
    %v1011 = vadd.f32 %v958, 1.0
    %v1012 = vadd.f32 %v960, 1.0
    %v1013 = vadd.f32 %v962, 1.0
    %v1014 = vadd.f32 %v964, 1.0
    %v1015 = vadd.f32 %v966, 1.0
    %v1016 = vadd.f32 %v968, 1.0
    %v1017 = vadd.f32 %v970, 1.0
    %v1018 = vadd.f32 %v972, 1.0
    %v1019 = vadd.f32 %v974, 1.0
    %v1020 = vadd.f32 %v976, 1.0
    %v1021 = vadd.f32 %v978, 1.0
    %v1022 = vadd.f32 %v980, 1.0
    %v1023 = vadd.f32 %v982, 1.0
    %v1024 = vadd.f32 %v984, 1.0
    %v1025 = vadd.f32 %v986, 1.0
    %v1026 = vadd.f32 %v988, 1.0
    %v1027 = vadd.f32 %v990, 1.0
    %v1028 = vadd.f32 %v992, 1.0
    %v1029 = vadd.f32 %v994, 1.0
    %v1030 = vadd.f32 %v996, 1.0
    %v1031 = vadd.f32 %v998, 1.0
    %v1032 = vadd.f32 %v1000, 1.0
    %v1033 = vrcp.pop %v1001
    %v1034 = vmul.f32 %v1001, %v1033
    %v1035 = vsub.f32 1.0, %v1034
    %v1036 = vmul.f32 %v1033, %v1035
    %v1037 = vadd.f32 %v1033, %v1036
    %vm1038 = vweird.f32 %v1001
    %vm1039 = vweird.f32 %v1033
    %vm1040 = vmor %vm1038, %vm1039
    %v1041 = vsel %vm1040, %v1033, %v1037
    %v1042 = vand.u32 2147483647, %v1001
    %vm1043 = vcmp.eq.f32.partialorder %v1042, 8.507059e+37
    %v1044 = vand.u32 %v1001, 2147483648
    %v1045 = vor.u32 1.1754944e-38, %v1044
    %v1046 = vsel %vm1043, %v1045, %v1041
    %v1047 = vmul.f32 1.0, %v1046
    %v1048 = vrcp.pop %v1002
    %v1049 = vmul.f32 %v1002, %v1048
    %v1050 = vsub.f32 1.0, %v1049
    %v1051 = vmul.f32 %v1048, %v1050
    %v1052 = vadd.f32 %v1048, %v1051
    %vm1053 = vweird.f32 %v1002
    %vm1054 = vweird.f32 %v1048
    %vm1055 = vmor %vm1053, %vm1054
    %v1056 = vsel %vm1055, %v1048, %v1052
    %v1057 = vand.u32 2147483647, %v1002
    %vm1058 = vcmp.eq.f32.partialorder %v1057, 8.507059e+37
    %v1059 = vand.u32 %v1002, 2147483648
    %v1060 = vor.u32 1.1754944e-38, %v1059
    %v1061 = vsel %vm1058, %v1060, %v1056
    %v1062 = vmul.f32 1.0, %v1061
    %v1063 = vrcp.pop %v1003
    %v1064 = vmul.f32 %v1003, %v1063
    %v1065 = vsub.f32 1.0, %v1064
    %v1066 = vmul.f32 %v1063, %v1065
    %v1067 = vadd.f32 %v1063, %v1066
    %vm1068 = vweird.f32 %v1003
    %vm1069 = vweird.f32 %v1063
    %vm1070 = vmor %vm1068, %vm1069
    %v1071 = vsel %vm1070, %v1063, %v1067
    %v1072 = vand.u32 2147483647, %v1003
    %vm1073 = vcmp.eq.f32.partialorder %v1072, 8.507059e+37
    %v1074 = vand.u32 %v1003, 2147483648
    %v1075 = vor.u32 1.1754944e-38, %v1074
    %v1076 = vsel %vm1073, %v1075, %v1071
    %v1077 = vmul.f32 1.0, %v1076
    %v1078 = vrcp.pop %v1004
    %v1079 = vmul.f32 %v1004, %v1078
    %v1080 = vsub.f32 1.0, %v1079
    %v1081 = vmul.f32 %v1078, %v1080
    %v1082 = vadd.f32 %v1078, %v1081
    %vm1083 = vweird.f32 %v1004
    %vm1084 = vweird.f32 %v1078
    %vm1085 = vmor %vm1083, %vm1084
    %v1086 = vsel %vm1085, %v1078, %v1082
    %v1087 = vand.u32 2147483647, %v1004
    %vm1088 = vcmp.eq.f32.partialorder %v1087, 8.507059e+37
    %v1089 = vand.u32 %v1004, 2147483648
    %v1090 = vor.u32 1.1754944e-38, %v1089
    %v1091 = vsel %vm1088, %v1090, %v1086
    %v1092 = vmul.f32 1.0, %v1091
    %v1093 = vrcp.pop %v1005
    %v1094 = vmul.f32 %v1005, %v1093
    %v1095 = vsub.f32 1.0, %v1094
    %v1096 = vmul.f32 %v1093, %v1095
    %v1097 = vadd.f32 %v1093, %v1096
    %vm1098 = vweird.f32 %v1005
    %vm1099 = vweird.f32 %v1093
    %vm1100 = vmor %vm1098, %vm1099
    %v1101 = vsel %vm1100, %v1093, %v1097
    %v1102 = vand.u32 2147483647, %v1005
    %vm1103 = vcmp.eq.f32.partialorder %v1102, 8.507059e+37
    %v1104 = vand.u32 %v1005, 2147483648
    %v1105 = vor.u32 1.1754944e-38, %v1104
    %v1106 = vsel %vm1103, %v1105, %v1101
    %v1107 = vmul.f32 1.0, %v1106
    %v1108 = vrcp.pop %v1006
    %v1109 = vmul.f32 %v1006, %v1108
    %v1110 = vsub.f32 1.0, %v1109
    %v1111 = vmul.f32 %v1108, %v1110
    %v1112 = vadd.f32 %v1108, %v1111
    %vm1113 = vweird.f32 %v1006
    %vm1114 = vweird.f32 %v1108
    %vm1115 = vmor %vm1113, %vm1114
    %v1116 = vsel %vm1115, %v1108, %v1112
    %v1117 = vand.u32 2147483647, %v1006
    %vm1118 = vcmp.eq.f32.partialorder %v1117, 8.507059e+37
    %v1119 = vand.u32 %v1006, 2147483648
    %v1120 = vor.u32 1.1754944e-38, %v1119
    %v1121 = vsel %vm1118, %v1120, %v1116
    %v1122 = vmul.f32 1.0, %v1121
    %v1123 = vrcp.pop %v1007
    %v1124 = vmul.f32 %v1007, %v1123
    %v1125 = vsub.f32 1.0, %v1124
    %v1126 = vmul.f32 %v1123, %v1125
    %v1127 = vadd.f32 %v1123, %v1126
    %vm1128 = vweird.f32 %v1007
    %vm1129 = vweird.f32 %v1123
    %vm1130 = vmor %vm1128, %vm1129
    %v1131 = vsel %vm1130, %v1123, %v1127
    %v1132 = vand.u32 2147483647, %v1007
    %vm1133 = vcmp.eq.f32.partialorder %v1132, 8.507059e+37
    %v1134 = vand.u32 %v1007, 2147483648
    %v1135 = vor.u32 1.1754944e-38, %v1134
    %v1136 = vsel %vm1133, %v1135, %v1131
    %v1137 = vmul.f32 1.0, %v1136
    %v1138 = vrcp.pop %v1008
    %v1139 = vmul.f32 %v1008, %v1138
    %v1140 = vsub.f32 1.0, %v1139
    %v1141 = vmul.f32 %v1138, %v1140
    %v1142 = vadd.f32 %v1138, %v1141
    %vm1143 = vweird.f32 %v1008
    %vm1144 = vweird.f32 %v1138
    %vm1145 = vmor %vm1143, %vm1144
    %v1146 = vsel %vm1145, %v1138, %v1142
    %v1147 = vand.u32 2147483647, %v1008
    %vm1148 = vcmp.eq.f32.partialorder %v1147, 8.507059e+37
    %v1149 = vand.u32 %v1008, 2147483648
    %v1150 = vor.u32 1.1754944e-38, %v1149
    %v1151 = vsel %vm1148, %v1150, %v1146
    %v1152 = vmul.f32 1.0, %v1151
    %v1153 = vrcp.pop %v1009
    %v1154 = vmul.f32 %v1009, %v1153
    %v1155 = vsub.f32 1.0, %v1154
    %v1156 = vmul.f32 %v1153, %v1155
    %v1157 = vadd.f32 %v1153, %v1156
    %vm1158 = vweird.f32 %v1009
    %vm1159 = vweird.f32 %v1153
    %vm1160 = vmor %vm1158, %vm1159
    %v1161 = vsel %vm1160, %v1153, %v1157
    %v1162 = vand.u32 2147483647, %v1009
    %vm1163 = vcmp.eq.f32.partialorder %v1162, 8.507059e+37
    %v1164 = vand.u32 %v1009, 2147483648
    %v1165 = vor.u32 1.1754944e-38, %v1164
    %v1166 = vsel %vm1163, %v1165, %v1161
    %v1167 = vmul.f32 1.0, %v1166
    %v1168 = vrcp.pop %v1010
    %v1169 = vmul.f32 %v1010, %v1168
    %v1170 = vsub.f32 1.0, %v1169
    %v1171 = vmul.f32 %v1168, %v1170
    %v1172 = vadd.f32 %v1168, %v1171
    %vm1173 = vweird.f32 %v1010
    %vm1174 = vweird.f32 %v1168
    %vm1175 = vmor %vm1173, %vm1174
    %v1176 = vsel %vm1175, %v1168, %v1172
    %v1177 = vand.u32 2147483647, %v1010
    %vm1178 = vcmp.eq.f32.partialorder %v1177, 8.507059e+37
    %v1179 = vand.u32 %v1010, 2147483648
    %v1180 = vor.u32 1.1754944e-38, %v1179
    %v1181 = vsel %vm1178, %v1180, %v1176
    %v1182 = vmul.f32 1.0, %v1181
    %v1183 = vrcp.pop %v1011
    %v1184 = vmul.f32 %v1011, %v1183
    %v1185 = vsub.f32 1.0, %v1184
    %v1186 = vmul.f32 %v1183, %v1185
    %v1187 = vadd.f32 %v1183, %v1186
    %vm1188 = vweird.f32 %v1011
    %vm1189 = vweird.f32 %v1183
    %vm1190 = vmor %vm1188, %vm1189
    %v1191 = vsel %vm1190, %v1183, %v1187
    %v1192 = vand.u32 2147483647, %v1011
    %vm1193 = vcmp.eq.f32.partialorder %v1192, 8.507059e+37
    %v1194 = vand.u32 %v1011, 2147483648
    %v1195 = vor.u32 1.1754944e-38, %v1194
    %v1196 = vsel %vm1193, %v1195, %v1191
    %v1197 = vmul.f32 1.0, %v1196
    %v1198 = vrcp.pop %v1012
    %v1199 = vmul.f32 %v1012, %v1198
    %v1200 = vsub.f32 1.0, %v1199
    %v1201 = vmul.f32 %v1198, %v1200
    %v1202 = vadd.f32 %v1198, %v1201
    %vm1203 = vweird.f32 %v1012
    %vm1204 = vweird.f32 %v1198
    %vm1205 = vmor %vm1203, %vm1204
    %v1206 = vsel %vm1205, %v1198, %v1202
    %v1207 = vand.u32 2147483647, %v1012
    %vm1208 = vcmp.eq.f32.partialorder %v1207, 8.507059e+37
    %v1209 = vand.u32 %v1012, 2147483648
    %v1210 = vor.u32 1.1754944e-38, %v1209
    %v1211 = vsel %vm1208, %v1210, %v1206
    %v1212 = vmul.f32 1.0, %v1211
    %v1213 = vrcp.pop %v1013
    %v1214 = vmul.f32 %v1013, %v1213
    %v1215 = vsub.f32 1.0, %v1214
    %v1216 = vmul.f32 %v1213, %v1215
    %v1217 = vadd.f32 %v1213, %v1216
    %vm1218 = vweird.f32 %v1013
    %vm1219 = vweird.f32 %v1213
    %vm1220 = vmor %vm1218, %vm1219
    %v1221 = vsel %vm1220, %v1213, %v1217
    %v1222 = vand.u32 2147483647, %v1013
    %vm1223 = vcmp.eq.f32.partialorder %v1222, 8.507059e+37
    %v1224 = vand.u32 %v1013, 2147483648
    %v1225 = vor.u32 1.1754944e-38, %v1224
    %v1226 = vsel %vm1223, %v1225, %v1221
    %v1227 = vmul.f32 1.0, %v1226
    %v1228 = vrcp.pop %v1014
    %v1229 = vmul.f32 %v1014, %v1228
    %v1230 = vsub.f32 1.0, %v1229
    %v1231 = vmul.f32 %v1228, %v1230
    %v1232 = vadd.f32 %v1228, %v1231
    %vm1233 = vweird.f32 %v1014
    %vm1234 = vweird.f32 %v1228
    %vm1235 = vmor %vm1233, %vm1234
    %v1236 = vsel %vm1235, %v1228, %v1232
    %v1237 = vand.u32 2147483647, %v1014
    %vm1238 = vcmp.eq.f32.partialorder %v1237, 8.507059e+37
    %v1239 = vand.u32 %v1014, 2147483648
    %v1240 = vor.u32 1.1754944e-38, %v1239
    %v1241 = vsel %vm1238, %v1240, %v1236
    %v1242 = vmul.f32 1.0, %v1241
    %v1243 = vrcp.pop %v1015
    %v1244 = vmul.f32 %v1015, %v1243
    %v1245 = vsub.f32 1.0, %v1244
    %v1246 = vmul.f32 %v1243, %v1245
    %v1247 = vadd.f32 %v1243, %v1246
    %vm1248 = vweird.f32 %v1015
    %vm1249 = vweird.f32 %v1243
    %vm1250 = vmor %vm1248, %vm1249
    %v1251 = vsel %vm1250, %v1243, %v1247
    %v1252 = vand.u32 2147483647, %v1015
    %vm1253 = vcmp.eq.f32.partialorder %v1252, 8.507059e+37
    %v1254 = vand.u32 %v1015, 2147483648
    %v1255 = vor.u32 1.1754944e-38, %v1254
    %v1256 = vsel %vm1253, %v1255, %v1251
    %v1257 = vmul.f32 1.0, %v1256
    %v1258 = vrcp.pop %v1016
    %v1259 = vmul.f32 %v1016, %v1258
    %v1260 = vsub.f32 1.0, %v1259
    %v1261 = vmul.f32 %v1258, %v1260
    %v1262 = vadd.f32 %v1258, %v1261
    %vm1263 = vweird.f32 %v1016
    %vm1264 = vweird.f32 %v1258
    %vm1265 = vmor %vm1263, %vm1264
    %v1266 = vsel %vm1265, %v1258, %v1262
    %v1267 = vand.u32 2147483647, %v1016
    %vm1268 = vcmp.eq.f32.partialorder %v1267, 8.507059e+37
    %v1269 = vand.u32 %v1016, 2147483648
    %v1270 = vor.u32 1.1754944e-38, %v1269
    %v1271 = vsel %vm1268, %v1270, %v1266
    %v1272 = vmul.f32 1.0, %v1271
    %v1273 = vrcp.pop %v1017
    %v1274 = vmul.f32 %v1017, %v1273
    %v1275 = vsub.f32 1.0, %v1274
    %v1276 = vmul.f32 %v1273, %v1275
    %v1277 = vadd.f32 %v1273, %v1276
    %vm1278 = vweird.f32 %v1017
    %vm1279 = vweird.f32 %v1273
    %vm1280 = vmor %vm1278, %vm1279
    %v1281 = vsel %vm1280, %v1273, %v1277
    %v1282 = vand.u32 2147483647, %v1017
    %vm1283 = vcmp.eq.f32.partialorder %v1282, 8.507059e+37
    %v1284 = vand.u32 %v1017, 2147483648
    %v1285 = vor.u32 1.1754944e-38, %v1284
    %v1286 = vsel %vm1283, %v1285, %v1281
    %v1287 = vmul.f32 1.0, %v1286
    %v1288 = vrcp.pop %v1018
    %v1289 = vmul.f32 %v1018, %v1288
    %v1290 = vsub.f32 1.0, %v1289
    %v1291 = vmul.f32 %v1288, %v1290
    %v1292 = vadd.f32 %v1288, %v1291
    %vm1293 = vweird.f32 %v1018
    %vm1294 = vweird.f32 %v1288
    %vm1295 = vmor %vm1293, %vm1294
    %v1296 = vsel %vm1295, %v1288, %v1292
    %v1297 = vand.u32 2147483647, %v1018
    %vm1298 = vcmp.eq.f32.partialorder %v1297, 8.507059e+37
    %v1299 = vand.u32 %v1018, 2147483648
    %v1300 = vor.u32 1.1754944e-38, %v1299
    %v1301 = vsel %vm1298, %v1300, %v1296
    %v1302 = vmul.f32 1.0, %v1301
    %v1303 = vrcp.pop %v1019
    %v1304 = vmul.f32 %v1019, %v1303
    %v1305 = vsub.f32 1.0, %v1304
    %v1306 = vmul.f32 %v1303, %v1305
    %v1307 = vadd.f32 %v1303, %v1306
    %vm1308 = vweird.f32 %v1019
    %vm1309 = vweird.f32 %v1303
    %vm1310 = vmor %vm1308, %vm1309
    %v1311 = vsel %vm1310, %v1303, %v1307
    %v1312 = vand.u32 2147483647, %v1019
    %vm1313 = vcmp.eq.f32.partialorder %v1312, 8.507059e+37
    %v1314 = vand.u32 %v1019, 2147483648
    %v1315 = vor.u32 1.1754944e-38, %v1314
    %v1316 = vsel %vm1313, %v1315, %v1311
    %v1317 = vmul.f32 1.0, %v1316
    %v1318 = vrcp.pop %v1020
    %v1319 = vmul.f32 %v1020, %v1318
    %v1320 = vsub.f32 1.0, %v1319
    %v1321 = vmul.f32 %v1318, %v1320
    %v1322 = vadd.f32 %v1318, %v1321
    %vm1323 = vweird.f32 %v1020
    %vm1324 = vweird.f32 %v1318
    %vm1325 = vmor %vm1323, %vm1324
    %v1326 = vsel %vm1325, %v1318, %v1322
    %v1327 = vand.u32 2147483647, %v1020
    %vm1328 = vcmp.eq.f32.partialorder %v1327, 8.507059e+37
    %v1329 = vand.u32 %v1020, 2147483648
    %v1330 = vor.u32 1.1754944e-38, %v1329
    %v1331 = vsel %vm1328, %v1330, %v1326
    %v1332 = vmul.f32 1.0, %v1331
    %v1333 = vrcp.pop %v1021
    %v1334 = vmul.f32 %v1021, %v1333
    %v1335 = vsub.f32 1.0, %v1334
    %v1336 = vmul.f32 %v1333, %v1335
    %v1337 = vadd.f32 %v1333, %v1336
    %vm1338 = vweird.f32 %v1021
    %vm1339 = vweird.f32 %v1333
    %vm1340 = vmor %vm1338, %vm1339
    %v1341 = vsel %vm1340, %v1333, %v1337
    %v1342 = vand.u32 2147483647, %v1021
    %vm1343 = vcmp.eq.f32.partialorder %v1342, 8.507059e+37
    %v1344 = vand.u32 %v1021, 2147483648
    %v1345 = vor.u32 1.1754944e-38, %v1344
    %v1346 = vsel %vm1343, %v1345, %v1341
    %v1347 = vmul.f32 1.0, %v1346
    %v1348 = vrcp.pop %v1022
    %v1349 = vmul.f32 %v1022, %v1348
    %v1350 = vsub.f32 1.0, %v1349
    %v1351 = vmul.f32 %v1348, %v1350
    %v1352 = vadd.f32 %v1348, %v1351
    %vm1353 = vweird.f32 %v1022
    %vm1354 = vweird.f32 %v1348
    %vm1355 = vmor %vm1353, %vm1354
    %v1356 = vsel %vm1355, %v1348, %v1352
    %v1357 = vand.u32 2147483647, %v1022
    %vm1358 = vcmp.eq.f32.partialorder %v1357, 8.507059e+37
    %v1359 = vand.u32 %v1022, 2147483648
    %v1360 = vor.u32 1.1754944e-38, %v1359
    %v1361 = vsel %vm1358, %v1360, %v1356
    %v1362 = vmul.f32 1.0, %v1361
    %v1363 = vrcp.pop %v1023
    %v1364 = vmul.f32 %v1023, %v1363
    %v1365 = vsub.f32 1.0, %v1364
    %v1366 = vmul.f32 %v1363, %v1365
    %v1367 = vadd.f32 %v1363, %v1366
    %vm1368 = vweird.f32 %v1023
    %vm1369 = vweird.f32 %v1363
    %vm1370 = vmor %vm1368, %vm1369
    %v1371 = vsel %vm1370, %v1363, %v1367
    %v1372 = vand.u32 2147483647, %v1023
    %vm1373 = vcmp.eq.f32.partialorder %v1372, 8.507059e+37
    %v1374 = vand.u32 %v1023, 2147483648
    %v1375 = vor.u32 1.1754944e-38, %v1374
    %v1376 = vsel %vm1373, %v1375, %v1371
    %v1377 = vmul.f32 1.0, %v1376
    %v1378 = vrcp.pop %v1024
    %v1379 = vmul.f32 %v1024, %v1378
    %v1380 = vsub.f32 1.0, %v1379
    %v1381 = vmul.f32 %v1378, %v1380
    %v1382 = vadd.f32 %v1378, %v1381
    %vm1383 = vweird.f32 %v1024
    %vm1384 = vweird.f32 %v1378
    %vm1385 = vmor %vm1383, %vm1384
    %v1386 = vsel %vm1385, %v1378, %v1382
    %v1387 = vand.u32 2147483647, %v1024
    %vm1388 = vcmp.eq.f32.partialorder %v1387, 8.507059e+37
    %v1389 = vand.u32 %v1024, 2147483648
    %v1390 = vor.u32 1.1754944e-38, %v1389
    %v1391 = vsel %vm1388, %v1390, %v1386
    %v1392 = vmul.f32 1.0, %v1391
    %v1393 = vrcp.pop %v1025
    %v1394 = vmul.f32 %v1025, %v1393
    %v1395 = vsub.f32 1.0, %v1394
    %v1396 = vmul.f32 %v1393, %v1395
    %v1397 = vadd.f32 %v1393, %v1396
    %vm1398 = vweird.f32 %v1025
    %vm1399 = vweird.f32 %v1393
    %vm1400 = vmor %vm1398, %vm1399
    %v1401 = vsel %vm1400, %v1393, %v1397
    %v1402 = vand.u32 2147483647, %v1025
    %vm1403 = vcmp.eq.f32.partialorder %v1402, 8.507059e+37
    %v1404 = vand.u32 %v1025, 2147483648
    %v1405 = vor.u32 1.1754944e-38, %v1404
    %v1406 = vsel %vm1403, %v1405, %v1401
    %v1407 = vmul.f32 1.0, %v1406
    %v1408 = vrcp.pop %v1026
    %v1409 = vmul.f32 %v1026, %v1408
    %v1410 = vsub.f32 1.0, %v1409
    %v1411 = vmul.f32 %v1408, %v1410
    %v1412 = vadd.f32 %v1408, %v1411
    %vm1413 = vweird.f32 %v1026
    %vm1414 = vweird.f32 %v1408
    %vm1415 = vmor %vm1413, %vm1414
    %v1416 = vsel %vm1415, %v1408, %v1412
    %v1417 = vand.u32 2147483647, %v1026
    %vm1418 = vcmp.eq.f32.partialorder %v1417, 8.507059e+37
    %v1419 = vand.u32 %v1026, 2147483648
    %v1420 = vor.u32 1.1754944e-38, %v1419
    %v1421 = vsel %vm1418, %v1420, %v1416
    %v1422 = vmul.f32 1.0, %v1421
    %v1423 = vrcp.pop %v1027
    %v1424 = vmul.f32 %v1027, %v1423
    %v1425 = vsub.f32 1.0, %v1424
    %v1426 = vmul.f32 %v1423, %v1425
    %v1427 = vadd.f32 %v1423, %v1426
    %vm1428 = vweird.f32 %v1027
    %vm1429 = vweird.f32 %v1423
    %vm1430 = vmor %vm1428, %vm1429
    %v1431 = vsel %vm1430, %v1423, %v1427
    %v1432 = vand.u32 2147483647, %v1027
    %vm1433 = vcmp.eq.f32.partialorder %v1432, 8.507059e+37
    %v1434 = vand.u32 %v1027, 2147483648
    %v1435 = vor.u32 1.1754944e-38, %v1434
    %v1436 = vsel %vm1433, %v1435, %v1431
    %v1437 = vmul.f32 1.0, %v1436
    %v1438 = vrcp.pop %v1028
    %v1439 = vmul.f32 %v1028, %v1438
    %v1440 = vsub.f32 1.0, %v1439
    %v1441 = vmul.f32 %v1438, %v1440
    %v1442 = vadd.f32 %v1438, %v1441
    %vm1443 = vweird.f32 %v1028
    %vm1444 = vweird.f32 %v1438
    %vm1445 = vmor %vm1443, %vm1444
    %v1446 = vsel %vm1445, %v1438, %v1442
    %v1447 = vand.u32 2147483647, %v1028
    %vm1448 = vcmp.eq.f32.partialorder %v1447, 8.507059e+37
    %v1449 = vand.u32 %v1028, 2147483648
    %v1450 = vor.u32 1.1754944e-38, %v1449
    %v1451 = vsel %vm1448, %v1450, %v1446
    %v1452 = vmul.f32 1.0, %v1451
    %v1453 = vrcp.pop %v1029
    %v1454 = vmul.f32 %v1029, %v1453
    %v1455 = vsub.f32 1.0, %v1454
    %v1456 = vmul.f32 %v1453, %v1455
    %v1457 = vadd.f32 %v1453, %v1456
    %vm1458 = vweird.f32 %v1029
    %vm1459 = vweird.f32 %v1453
    %vm1460 = vmor %vm1458, %vm1459
    %v1461 = vsel %vm1460, %v1453, %v1457
    %v1462 = vand.u32 2147483647, %v1029
    %vm1463 = vcmp.eq.f32.partialorder %v1462, 8.507059e+37
    %v1464 = vand.u32 %v1029, 2147483648
    %v1465 = vor.u32 1.1754944e-38, %v1464
    %v1466 = vsel %vm1463, %v1465, %v1461
    %v1467 = vmul.f32 1.0, %v1466
    %v1468 = vrcp.pop %v1030
    %v1469 = vmul.f32 %v1030, %v1468
    %v1470 = vsub.f32 1.0, %v1469
    %v1471 = vmul.f32 %v1468, %v1470
    %v1472 = vadd.f32 %v1468, %v1471
    %vm1473 = vweird.f32 %v1030
    %vm1474 = vweird.f32 %v1468
    %vm1475 = vmor %vm1473, %vm1474
    %v1476 = vsel %vm1475, %v1468, %v1472
    %v1477 = vand.u32 2147483647, %v1030
    %vm1478 = vcmp.eq.f32.partialorder %v1477, 8.507059e+37
    %v1479 = vand.u32 %v1030, 2147483648
    %v1480 = vor.u32 1.1754944e-38, %v1479
    %v1481 = vsel %vm1478, %v1480, %v1476
    %v1482 = vmul.f32 1.0, %v1481
    %v1483 = vrcp.pop %v1031
    %v1484 = vmul.f32 %v1031, %v1483
    %v1485 = vsub.f32 1.0, %v1484
    %v1486 = vmul.f32 %v1483, %v1485
    %v1487 = vadd.f32 %v1483, %v1486
    %vm1488 = vweird.f32 %v1031
    %vm1489 = vweird.f32 %v1483
    %vm1490 = vmor %vm1488, %vm1489
    %v1491 = vsel %vm1490, %v1483, %v1487
    %v1492 = vand.u32 2147483647, %v1031
    %vm1493 = vcmp.eq.f32.partialorder %v1492, 8.507059e+37
    %v1494 = vand.u32 %v1031, 2147483648
    %v1495 = vor.u32 1.1754944e-38, %v1494
    %v1496 = vsel %vm1493, %v1495, %v1491
    %v1497 = vmul.f32 1.0, %v1496
    %v1498 = vrcp.pop %v1032
    %v1499 = vmul.f32 %v1032, %v1498
    %v1500 = vsub.f32 1.0, %v1499
    %v1501 = vmul.f32 %v1498, %v1500
    %v1502 = vadd.f32 %v1498, %v1501
    %vm1503 = vweird.f32 %v1032
    %vm1504 = vweird.f32 %v1498
    %vm1505 = vmor %vm1503, %vm1504
    %v1506 = vsel %vm1505, %v1498, %v1502
    %v1507 = vand.u32 2147483647, %v1032
    %vm1508 = vcmp.eq.f32.partialorder %v1507, 8.507059e+37
    %v1509 = vand.u32 %v1032, 2147483648
    %v1510 = vor.u32 1.1754944e-38, %v1509
    %v1511 = vsel %vm1508, %v1510, %v1506
    %v1512 = vmul.f32 1.0, %v1511
    %v1513 = vld [vmem:[%s7] sm:$0xf]
    %v1514 = vld [vmem:[%s7 + $0x4] sm:$0xf]
    %v1515 = vld [vmem:[%s7 + $0x8] sm:$0xf]
    %v1516 = vld [vmem:[%s7 + $0xc] sm:$0xf]
    %v1517 = vld [vmem:[%s7 + $0x10] sm:$0xf]
    %v1518 = vld [vmem:[%s7 + $0x14] sm:$0xf]
    %v1519 = vld [vmem:[%s7 + $0x18] sm:$0xf]
    %v1520 = vld [vmem:[%s7 + $0x1c] sm:$0xf]
    %v1521 = vld [vmem:[%s7 + $0x20] sm:$0xf]
    %v1522 = vld [vmem:[%s7 + $0x24] sm:$0xf]
    %v1523 = vld [vmem:[%s7 + $0x28] sm:$0xf]
    %v1524 = vld [vmem:[%s7 + $0x2c] sm:$0xf]
    %v1525 = vld [vmem:[%s7 + $0x30] sm:$0xf]
    %v1526 = vld [vmem:[%s7 + $0x34] sm:$0xf]
    %v1527 = vld [vmem:[%s7 + $0x38] sm:$0xf]
    %v1528 = vld [vmem:[%s7 + $0x3c] sm:$0xf]
    %v1529 = vld [vmem:[%s8] sm:$0x1]
    %v1531 = vperm.slane %v1529, 0
    %v1549 = vunpack.c.l.b16 %v1513
    %v1550 = vunpack.c.l.b16 %v1514
    %v1551 = vunpack.c.l.b16 %v1515
    %v1552 = vunpack.c.l.b16 %v1516
    %v1553 = vunpack.c.l.b16 %v1517
    %v1554 = vunpack.c.l.b16 %v1518
    %v1555 = vunpack.c.l.b16 %v1519
    %v1556 = vunpack.c.l.b16 %v1520
    %v1557 = vunpack.c.l.b16 %v1521
    %v1558 = vunpack.c.l.b16 %v1522
    %v1559 = vunpack.c.l.b16 %v1523
    %v1560 = vunpack.c.l.b16 %v1524
    %v1561 = vunpack.c.l.b16 %v1525
    %v1562 = vunpack.c.l.b16 %v1526
    %v1563 = vunpack.c.l.b16 %v1527
    %v1564 = vunpack.c.l.b16 %v1528
    %v1565 = vpack.c.b16 %v1550, %v1549
    %v1566 = vpack.c.b16 %v1552, %v1551
    %v1567 = vpack.c.b16 %v1554, %v1553
    %v1568 = vpack.c.b16 %v1556, %v1555
    %v1569 = vpack.c.b16 %v1558, %v1557
    %v1570 = vpack.c.b16 %v1560, %v1559
    %v1571 = vpack.c.b16 %v1562, %v1561
    %v1572 = vpack.c.b16 %v1564, %v1563
    %1581 = vmatpush.bf16.msra.mxu0 %v1572
    %1582 = vmatpush.bf16.msra.mxu0 %v1571
    %1583 = vmatpush.bf16.msra.mxu0 %v1570
    %1584 = vmatpush.bf16.msra.mxu0 %v1569
    %1585 = vmatpush.bf16.msra.mxu0 %v1568
    %1586 = vmatpush.bf16.msra.mxu0 %v1567
    %1587 = vmatpush.bf16.msra.mxu0 %v1566
    %1588 = vmatpush.bf16.msra.mxu0 %v1565
    %1589 = vmatmul.bf16.gmra.mxu0 %v471
    %v1590 = vpop.f32.mrf.mxu0
    %v1591 = vadd.f32 %v1531, %v1590
    %v1592 = vpop.f32.mrf.mxu0
    %v1593 = vadd.f32 %v1531, %v1592
    %1594 = vmatmul.bf16.gmra.mxu0 %v472
    %v1595 = vpop.f32.mrf.mxu0
    %v1596 = vadd.f32 %v1531, %v1595
    %v1597 = vpop.f32.mrf.mxu0
    %v1598 = vadd.f32 %v1531, %v1597
    %1599 = vmatmul.bf16.gmra.mxu0 %v473
    %v1600 = vpop.f32.mrf.mxu0
    %v1601 = vadd.f32 %v1531, %v1600
    %v1602 = vpop.f32.mrf.mxu0
    %v1603 = vadd.f32 %v1531, %v1602
    %1604 = vmatmul.bf16.gmra.mxu0 %v474
    %v1605 = vpop.f32.mrf.mxu0
    %v1606 = vadd.f32 %v1531, %v1605
    %v1607 = vpop.f32.mrf.mxu0
    %v1608 = vadd.f32 %v1531, %v1607
    %1609 = vmatmul.bf16.gmra.mxu0 %v475
    %v1610 = vpop.f32.mrf.mxu0
    %v1611 = vadd.f32 %v1531, %v1610
    %v1612 = vpop.f32.mrf.mxu0
    %v1613 = vadd.f32 %v1531, %v1612
    %1614 = vmatmul.bf16.gmra.mxu0 %v476
    %v1615 = vpop.f32.mrf.mxu0
    %v1616 = vadd.f32 %v1531, %v1615
    %v1617 = vpop.f32.mrf.mxu0
    %v1618 = vadd.f32 %v1531, %v1617
    %1619 = vmatmul.bf16.gmra.mxu0 %v477
    %v1620 = vpop.f32.mrf.mxu0
    %v1621 = vadd.f32 %v1531, %v1620
    %v1622 = vpop.f32.mrf.mxu0
    %v1623 = vadd.f32 %v1531, %v1622
    %1624 = vmatmul.bf16.gmra.mxu0 %v478
    %v1625 = vpop.f32.mrf.mxu0
    %v1626 = vadd.f32 %v1531, %v1625
    %v1627 = vpop.f32.mrf.mxu0
    %v1628 = vadd.f32 %v1531, %v1627
    %1629 = vdwg.mxu0
    %v1630 = vld [vmem:[%s9] sm:$0xf]
    %v1631 = vld [vmem:[%s9 + $0x4] sm:$0xf]
    %v1632 = vld [vmem:[%s9 + $0x8] sm:$0xf]
    %v1633 = vld [vmem:[%s9 + $0xc] sm:$0xf]
    %v1634 = vld [vmem:[%s9 + $0x10] sm:$0xf]
    %v1635 = vld [vmem:[%s9 + $0x14] sm:$0xf]
    %v1636 = vld [vmem:[%s9 + $0x18] sm:$0xf]
    %v1637 = vld [vmem:[%s9 + $0x1c] sm:$0xf]
    %v1638 = vld [vmem:[%s9 + $0x20] sm:$0xf]
    %v1639 = vld [vmem:[%s9 + $0x24] sm:$0xf]
    %v1640 = vld [vmem:[%s9 + $0x28] sm:$0xf]
    %v1641 = vld [vmem:[%s9 + $0x2c] sm:$0xf]
    %v1642 = vld [vmem:[%s9 + $0x30] sm:$0xf]
    %v1643 = vld [vmem:[%s9 + $0x34] sm:$0xf]
    %v1644 = vld [vmem:[%s9 + $0x38] sm:$0xf]
    %v1645 = vld [vmem:[%s9 + $0x3c] sm:$0xf]
    %v1646 = vld [vmem:[%s10] sm:$0x1]
    %v1648 = vperm.slane %v1646, 0
    %v1666 = vunpack.c.l.b16 %v1630
    %v1667 = vunpack.c.l.b16 %v1631
    %v1668 = vunpack.c.l.b16 %v1632
    %v1669 = vunpack.c.l.b16 %v1633
    %v1670 = vunpack.c.l.b16 %v1634
    %v1671 = vunpack.c.l.b16 %v1635
    %v1672 = vunpack.c.l.b16 %v1636
    %v1673 = vunpack.c.l.b16 %v1637
    %v1674 = vunpack.c.l.b16 %v1638
    %v1675 = vunpack.c.l.b16 %v1639
    %v1676 = vunpack.c.l.b16 %v1640
    %v1677 = vunpack.c.l.b16 %v1641
    %v1678 = vunpack.c.l.b16 %v1642
    %v1679 = vunpack.c.l.b16 %v1643
    %v1680 = vunpack.c.l.b16 %v1644
    %v1681 = vunpack.c.l.b16 %v1645
    %v1682 = vpack.c.b16 %v1667, %v1666
    %v1683 = vpack.c.b16 %v1669, %v1668
    %v1684 = vpack.c.b16 %v1671, %v1670
    %v1685 = vpack.c.b16 %v1673, %v1672
    %v1686 = vpack.c.b16 %v1675, %v1674
    %v1687 = vpack.c.b16 %v1677, %v1676
    %v1688 = vpack.c.b16 %v1679, %v1678
    %v1689 = vpack.c.b16 %v1681, %v1680
    %1698 = vmatpush.bf16.msra.mxu0 %v1689
    %1699 = vmatpush.bf16.msra.mxu0 %v1688
    %1700 = vmatpush.bf16.msra.mxu0 %v1687
    %1701 = vmatpush.bf16.msra.mxu0 %v1686
    %1702 = vmatpush.bf16.msra.mxu0 %v1685
    %1703 = vmatpush.bf16.msra.mxu0 %v1684
    %1704 = vmatpush.bf16.msra.mxu0 %v1683
    %1705 = vmatpush.bf16.msra.mxu0 %v1682
    %1706 = vmatmul.bf16.gmra.mxu0 %v326
    %v1707 = vpop.f32.mrf.mxu0
    %v1708 = vadd.f32 %v1648, %v1707
    %v1709 = vpop.f32.mrf.mxu0
    %v1710 = vadd.f32 %v1648, %v1709
    %1711 = vmatmul.bf16.gmra.mxu0 %v327
    %v1712 = vpop.f32.mrf.mxu0
    %v1713 = vadd.f32 %v1648, %v1712
    %v1714 = vpop.f32.mrf.mxu0
    %v1715 = vadd.f32 %v1648, %v1714
    %1716 = vmatmul.bf16.gmra.mxu0 %v328
    %v1717 = vpop.f32.mrf.mxu0
    %v1718 = vadd.f32 %v1648, %v1717
    %v1719 = vpop.f32.mrf.mxu0
    %v1720 = vadd.f32 %v1648, %v1719
    %1721 = vmatmul.bf16.gmra.mxu0 %v329
    %v1722 = vpop.f32.mrf.mxu0
    %v1723 = vadd.f32 %v1648, %v1722
    %v1724 = vpop.f32.mrf.mxu0
    %v1725 = vadd.f32 %v1648, %v1724
    %1726 = vmatmul.bf16.gmra.mxu0 %v330
    %v1727 = vpop.f32.mrf.mxu0
    %v1728 = vadd.f32 %v1648, %v1727
    %v1729 = vpop.f32.mrf.mxu0
    %v1730 = vadd.f32 %v1648, %v1729
    %1731 = vmatmul.bf16.gmra.mxu0 %v331
    %v1732 = vpop.f32.mrf.mxu0
    %v1733 = vadd.f32 %v1648, %v1732
    %v1734 = vpop.f32.mrf.mxu0
    %v1735 = vadd.f32 %v1648, %v1734
    %1736 = vmatmul.bf16.gmra.mxu0 %v332
    %v1737 = vpop.f32.mrf.mxu0
    %v1738 = vadd.f32 %v1648, %v1737
    %v1739 = vpop.f32.mrf.mxu0
    %v1740 = vadd.f32 %v1648, %v1739
    %1741 = vmatmul.bf16.gmra.mxu0 %v333
    %v1742 = vpop.f32.mrf.mxu0
    %v1743 = vadd.f32 %v1648, %v1742
    %v1744 = vpop.f32.mrf.mxu0
    %v1745 = vadd.f32 %v1648, %v1744
    %1746 = vdwg.mxu0
    %v1747 = vmul.f32 %v1047, %v1708
    %v1748 = vmul.f32 %v1077, %v1710
    %v1749 = vmul.f32 %v1107, %v1713
    %v1750 = vmul.f32 %v1137, %v1715
    %v1751 = vmul.f32 %v1167, %v1718
    %v1752 = vmul.f32 %v1197, %v1720
    %v1753 = vmul.f32 %v1227, %v1723
    %v1754 = vmul.f32 %v1257, %v1725
    %v1755 = vmul.f32 %v1287, %v1728
    %v1756 = vmul.f32 %v1317, %v1730
    %v1757 = vmul.f32 %v1347, %v1733
    %v1758 = vmul.f32 %v1377, %v1735
    %v1759 = vmul.f32 %v1407, %v1738
    %v1760 = vmul.f32 %v1437, %v1740
    %v1761 = vmul.f32 %v1467, %v1743
    %v1762 = vmul.f32 %v1497, %v1745
    %v1763 = vadd.f32 %v1591, %v1747
    %v1764 = vadd.f32 %v1593, %v1748
    %v1765 = vadd.f32 %v1596, %v1749
    %v1766 = vadd.f32 %v1598, %v1750
    %v1767 = vadd.f32 %v1601, %v1751
    %v1768 = vadd.f32 %v1603, %v1752
    %v1769 = vadd.f32 %v1606, %v1753
    %v1770 = vadd.f32 %v1608, %v1754
    %v1771 = vadd.f32 %v1611, %v1755
    %v1772 = vadd.f32 %v1613, %v1756
    %v1773 = vadd.f32 %v1616, %v1757
    %v1774 = vadd.f32 %v1618, %v1758
    %v1775 = vadd.f32 %v1621, %v1759
    %v1776 = vadd.f32 %v1623, %v1760
    %v1777 = vadd.f32 %v1626, %v1761
    %v1778 = vadd.f32 %v1628, %v1762
    %v1779 = vtanh.pop %v1763
    %v1780 = vtanh.pop %v1764
    %v1781 = vtanh.pop %v1765
    %v1782 = vtanh.pop %v1766
    %v1783 = vtanh.pop %v1767
    %v1784 = vtanh.pop %v1768
    %v1785 = vtanh.pop %v1769
    %v1786 = vtanh.pop %v1770
    %v1787 = vtanh.pop %v1771
    %v1788 = vtanh.pop %v1772
    %v1789 = vtanh.pop %v1773
    %v1790 = vtanh.pop %v1774
    %v1791 = vtanh.pop %v1775
    %v1792 = vtanh.pop %v1776
    %v1793 = vtanh.pop %v1777
    %v1794 = vtanh.pop %v1778
    %v1795 = vsub.f32 1.0, %v1062
    %v1796 = vsub.f32 1.0, %v1092
    %v1797 = vsub.f32 1.0, %v1122
    %v1798 = vsub.f32 1.0, %v1152
    %v1799 = vsub.f32 1.0, %v1182
    %v1800 = vsub.f32 1.0, %v1212
    %v1801 = vsub.f32 1.0, %v1242
    %v1802 = vsub.f32 1.0, %v1272
    %v1803 = vsub.f32 1.0, %v1302
    %v1804 = vsub.f32 1.0, %v1332
    %v1805 = vsub.f32 1.0, %v1362
    %v1806 = vsub.f32 1.0, %v1392
    %v1807 = vsub.f32 1.0, %v1422
    %v1808 = vsub.f32 1.0, %v1452
    %v1809 = vsub.f32 1.0, %v1482
    %v1810 = vsub.f32 1.0, %v1512
    %v1811 = vmul.f32 %v1795, %v1779
    %v1812 = vmul.f32 %v1796, %v1780
    %v1813 = vmul.f32 %v1797, %v1781
    %v1814 = vmul.f32 %v1798, %v1782
    %v1815 = vmul.f32 %v1799, %v1783
    %v1816 = vmul.f32 %v1800, %v1784
    %v1817 = vmul.f32 %v1801, %v1785
    %v1818 = vmul.f32 %v1802, %v1786
    %v1819 = vmul.f32 %v1803, %v1787
    %v1820 = vmul.f32 %v1804, %v1788
    %v1821 = vmul.f32 %v1805, %v1789
    %v1822 = vmul.f32 %v1806, %v1790
    %v1823 = vmul.f32 %v1807, %v1791
    %v1824 = vmul.f32 %v1808, %v1792
    %v1825 = vmul.f32 %v1809, %v1793
    %v1826 = vmul.f32 %v1810, %v1794
    %v1827 = vmul.f32 %v1062, %v310
    %v1828 = vmul.f32 %v1092, %v311
    %v1829 = vmul.f32 %v1122, %v312
    %v1830 = vmul.f32 %v1152, %v313
    %v1831 = vmul.f32 %v1182, %v314
    %v1832 = vmul.f32 %v1212, %v315
    %v1833 = vmul.f32 %v1242, %v316
    %v1834 = vmul.f32 %v1272, %v317
    %v1835 = vmul.f32 %v1302, %v318
    %v1836 = vmul.f32 %v1332, %v319
    %v1837 = vmul.f32 %v1362, %v320
    %v1838 = vmul.f32 %v1392, %v321
    %v1839 = vmul.f32 %v1422, %v322
    %v1840 = vmul.f32 %v1452, %v323
    %v1841 = vmul.f32 %v1482, %v324
    %v1842 = vmul.f32 %v1512, %v325
    %v1843 = vadd.f32 %v1811, %v1827
    %v1844 = vadd.f32 %v1812, %v1828
    %v1845 = vadd.f32 %v1813, %v1829
    %v1846 = vadd.f32 %v1814, %v1830
    %v1847 = vadd.f32 %v1815, %v1831
    %v1848 = vadd.f32 %v1816, %v1832
    %v1849 = vadd.f32 %v1817, %v1833
    %v1850 = vadd.f32 %v1818, %v1834
    %v1851 = vadd.f32 %v1819, %v1835
    %v1852 = vadd.f32 %v1820, %v1836
    %v1853 = vadd.f32 %v1821, %v1837
    %v1854 = vadd.f32 %v1822, %v1838
    %v1855 = vadd.f32 %v1823, %v1839
    %v1856 = vadd.f32 %v1824, %v1840
    %v1857 = vadd.f32 %v1825, %v1841
    %v1858 = vadd.f32 %v1826, %v1842
    %v1859 = vld [vmem:[%s14] sm:$0xff]
    %v1860 = vld [vmem:[%s14 + $0x8] sm:$0xff]
    %v1861 = vld [vmem:[%s14 + $0x10] sm:$0xff]
    %v1862 = vld [vmem:[%s14 + $0x18] sm:$0xff]
    %v1863 = vld [vmem:[%s14 + $0x20] sm:$0xff]
    %v1864 = vld [vmem:[%s14 + $0x28] sm:$0xff]
    %v1865 = vld [vmem:[%s14 + $0x30] sm:$0xff]
    %v1866 = vld [vmem:[%s14 + $0x38] sm:$0xff]
    %v1867 = vld [vmem:[%s14 + $0x40] sm:$0xff]
    %v1868 = vld [vmem:[%s14 + $0x48] sm:$0xff]
    %v1869 = vld [vmem:[%s14 + $0x50] sm:$0xff]
    %v1870 = vld [vmem:[%s14 + $0x58] sm:$0xff]
    %v1871 = vld [vmem:[%s14 + $0x60] sm:$0xff]
    %v1872 = vld [vmem:[%s14 + $0x68] sm:$0xff]
    %v1873 = vld [vmem:[%s14 + $0x70] sm:$0xff]
    %v1874 = vld [vmem:[%s14 + $0x78] sm:$0xff]
    %v1875 = vld [vmem:[%s15] sm:$0xff]
    %v1876 = vld [vmem:[%s15 + $0x8] sm:$0xff]
    %v1877 = vld [vmem:[%s15 + $0x10] sm:$0xff]
    %v1878 = vld [vmem:[%s15 + $0x18] sm:$0xff]
    %v1879 = vld [vmem:[%s15 + $0x20] sm:$0xff]
    %v1880 = vld [vmem:[%s15 + $0x28] sm:$0xff]
    %v1881 = vld [vmem:[%s15 + $0x30] sm:$0xff]
    %v1882 = vld [vmem:[%s15 + $0x38] sm:$0xff]
    %v1883 = vld [vmem:[%s15 + $0x40] sm:$0xff]
    %v1884 = vld [vmem:[%s15 + $0x48] sm:$0xff]
    %v1885 = vld [vmem:[%s15 + $0x50] sm:$0xff]
    %v1886 = vld [vmem:[%s15 + $0x58] sm:$0xff]
    %v1887 = vld [vmem:[%s15 + $0x60] sm:$0xff]
    %v1888 = vld [vmem:[%s15 + $0x68] sm:$0xff]
    %v1889 = vld [vmem:[%s15 + $0x70] sm:$0xff]
    %v1890 = vld [vmem:[%s15 + $0x78] sm:$0xff]
    %v1891 = vpack.c.bf16 %v1844, %v1843
    %v1892 = vpack.c.bf16 %v1846, %v1845
    %v1893 = vpack.c.bf16 %v1848, %v1847
    %v1894 = vpack.c.bf16 %v1850, %v1849
    %v1895 = vpack.c.bf16 %v1852, %v1851
    %v1896 = vpack.c.bf16 %v1854, %v1853
    %v1897 = vpack.c.bf16 %v1856, %v1855
    %v1898 = vpack.c.bf16 %v1858, %v1857
    %v1899 = vld [vmem:[%s11] sm:$0xff]
    %v1900 = vld [vmem:[%s11 + $0x8] sm:$0xff]
    %v1901 = vld [vmem:[%s11 + $0x10] sm:$0xff]
    %v1902 = vld [vmem:[%s11 + $0x18] sm:$0xff]
    %v1903 = vld [vmem:[%s11 + $0x20] sm:$0xff]
    %v1904 = vld [vmem:[%s11 + $0x28] sm:$0xff]
    %v1905 = vld [vmem:[%s11 + $0x30] sm:$0xff]
    %v1906 = vld [vmem:[%s11 + $0x38] sm:$0xff]
    %v1907 = vld [vmem:[%s11 + $0x40] sm:$0xff]
    %v1908 = vld [vmem:[%s11 + $0x48] sm:$0xff]
    %v1909 = vld [vmem:[%s11 + $0x50] sm:$0xff]
    %v1910 = vld [vmem:[%s11 + $0x58] sm:$0xff]
    %v1911 = vld [vmem:[%s11 + $0x60] sm:$0xff]
    %v1912 = vld [vmem:[%s11 + $0x68] sm:$0xff]
    %v1913 = vld [vmem:[%s11 + $0x70] sm:$0xff]
    %v1914 = vld [vmem:[%s11 + $0x78] sm:$0xff]
    %v1915 = vld [vmem:[%s11 + $0x80] sm:$0xff]
    %v1916 = vld [vmem:[%s11 + $0x88] sm:$0xff]
    %v1917 = vld [vmem:[%s11 + $0x90] sm:$0xff]
    %v1918 = vld [vmem:[%s11 + $0x98] sm:$0xff]
    %v1919 = vld [vmem:[%s11 + $0xa0] sm:$0xff]
    %v1920 = vld [vmem:[%s11 + $0xa8] sm:$0xff]
    %v1921 = vld [vmem:[%s11 + $0xb0] sm:$0xff]
    %v1922 = vld [vmem:[%s11 + $0xb8] sm:$0xff]
    %v1923 = vld [vmem:[%s11 + $0xc0] sm:$0xff]
    %v1924 = vld [vmem:[%s11 + $0xc8] sm:$0xff]
    %v1925 = vld [vmem:[%s11 + $0xd0] sm:$0xff]
    %v1926 = vld [vmem:[%s11 + $0xd8] sm:$0xff]
    %v1927 = vld [vmem:[%s11 + $0xe0] sm:$0xff]
    %v1928 = vld [vmem:[%s11 + $0xe8] sm:$0xff]
    %v1929 = vld [vmem:[%s11 + $0xf0] sm:$0xff]
    %v1930 = vld [vmem:[%s11 + $0xf8] sm:$0xff]
    %v1931 = vpack.c.bf16 %v1860, %v1859
    %v1932 = vpack.c.bf16 %v1862, %v1861
    %v1933 = vpack.c.bf16 %v1864, %v1863
    %v1934 = vpack.c.bf16 %v1866, %v1865
    %v1935 = vpack.c.bf16 %v1868, %v1867
    %v1936 = vpack.c.bf16 %v1870, %v1869
    %v1937 = vpack.c.bf16 %v1872, %v1871
    %v1938 = vpack.c.bf16 %v1874, %v1873
    %v1939 = vld [vmem:[%s12] sm:$0xff]
    %v1940 = vld [vmem:[%s12 + $0x8] sm:$0xff]
    %v1941 = vld [vmem:[%s12 + $0x10] sm:$0xff]
    %v1942 = vld [vmem:[%s12 + $0x18] sm:$0xff]
    %v1943 = vld [vmem:[%s12 + $0x20] sm:$0xff]
    %v1944 = vld [vmem:[%s12 + $0x28] sm:$0xff]
    %v1945 = vld [vmem:[%s12 + $0x30] sm:$0xff]
    %v1946 = vld [vmem:[%s12 + $0x38] sm:$0xff]
    %v1947 = vld [vmem:[%s12 + $0x40] sm:$0xff]
    %v1948 = vld [vmem:[%s12 + $0x48] sm:$0xff]
    %v1949 = vld [vmem:[%s12 + $0x50] sm:$0xff]
    %v1950 = vld [vmem:[%s12 + $0x58] sm:$0xff]
    %v1951 = vld [vmem:[%s12 + $0x60] sm:$0xff]
    %v1952 = vld [vmem:[%s12 + $0x68] sm:$0xff]
    %v1953 = vld [vmem:[%s12 + $0x70] sm:$0xff]
    %v1954 = vld [vmem:[%s12 + $0x78] sm:$0xff]
    %v1955 = vld [vmem:[%s12 + $0x80] sm:$0xff]
    %v1956 = vld [vmem:[%s12 + $0x88] sm:$0xff]
    %v1957 = vld [vmem:[%s12 + $0x90] sm:$0xff]
    %v1958 = vld [vmem:[%s12 + $0x98] sm:$0xff]
    %v1959 = vld [vmem:[%s12 + $0xa0] sm:$0xff]
    %v1960 = vld [vmem:[%s12 + $0xa8] sm:$0xff]
    %v1961 = vld [vmem:[%s12 + $0xb0] sm:$0xff]
    %v1962 = vld [vmem:[%s12 + $0xb8] sm:$0xff]
    %v1963 = vld [vmem:[%s12 + $0xc0] sm:$0xff]
    %v1964 = vld [vmem:[%s12 + $0xc8] sm:$0xff]
    %v1965 = vld [vmem:[%s12 + $0xd0] sm:$0xff]
    %v1966 = vld [vmem:[%s12 + $0xd8] sm:$0xff]
    %v1967 = vld [vmem:[%s12 + $0xe0] sm:$0xff]
    %v1968 = vld [vmem:[%s12 + $0xe8] sm:$0xff]
    %v1969 = vld [vmem:[%s12 + $0xf0] sm:$0xff]
    %v1970 = vld [vmem:[%s12 + $0xf8] sm:$0xff]
    %v2003 = vunpack.c.l.b16 %v1939
    %v2004 = vunpack.c.h.b16 %v1939
    %v2005 = vunpack.c.l.b16 %v1940
    %v2006 = vunpack.c.h.b16 %v1940
    %v2007 = vunpack.c.l.b16 %v1941
    %v2008 = vunpack.c.h.b16 %v1941
    %v2009 = vunpack.c.l.b16 %v1942
    %v2010 = vunpack.c.h.b16 %v1942
    %v2011 = vunpack.c.l.b16 %v1943
    %v2012 = vunpack.c.h.b16 %v1943
    %v2013 = vunpack.c.l.b16 %v1944
    %v2014 = vunpack.c.h.b16 %v1944
    %v2015 = vunpack.c.l.b16 %v1945
    %v2016 = vunpack.c.h.b16 %v1945
    %v2017 = vunpack.c.l.b16 %v1946
    %v2018 = vunpack.c.h.b16 %v1946
    %v2019 = vunpack.c.l.b16 %v1947
    %v2020 = vunpack.c.h.b16 %v1947
    %v2021 = vunpack.c.l.b16 %v1948
    %v2022 = vunpack.c.h.b16 %v1948
    %v2023 = vunpack.c.l.b16 %v1949
    %v2024 = vunpack.c.h.b16 %v1949
    %v2025 = vunpack.c.l.b16 %v1950
    %v2026 = vunpack.c.h.b16 %v1950
    %v2027 = vunpack.c.l.b16 %v1951
    %v2028 = vunpack.c.h.b16 %v1951
    %v2029 = vunpack.c.l.b16 %v1952
    %v2030 = vunpack.c.h.b16 %v1952
    %v2031 = vunpack.c.l.b16 %v1953
    %v2032 = vunpack.c.h.b16 %v1953
    %v2033 = vunpack.c.l.b16 %v1954
    %v2034 = vunpack.c.h.b16 %v1954
    %v2035 = vunpack.c.l.b16 %v1955
    %v2036 = vunpack.c.h.b16 %v1955
    %v2037 = vunpack.c.l.b16 %v1956
    %v2038 = vunpack.c.h.b16 %v1956
    %v2039 = vunpack.c.l.b16 %v1957
    %v2040 = vunpack.c.h.b16 %v1957
    %v2041 = vunpack.c.l.b16 %v1958
    %v2042 = vunpack.c.h.b16 %v1958
    %v2043 = vunpack.c.l.b16 %v1959
    %v2044 = vunpack.c.h.b16 %v1959
    %v2045 = vunpack.c.l.b16 %v1960
    %v2046 = vunpack.c.h.b16 %v1960
    %v2047 = vunpack.c.l.b16 %v1961
    %v2048 = vunpack.c.h.b16 %v1961
    %v2049 = vunpack.c.l.b16 %v1962
    %v2050 = vunpack.c.h.b16 %v1962
    %v2051 = vunpack.c.l.b16 %v1963
    %v2052 = vunpack.c.h.b16 %v1963
    %v2053 = vunpack.c.l.b16 %v1964
    %v2054 = vunpack.c.h.b16 %v1964
    %v2055 = vunpack.c.l.b16 %v1965
    %v2056 = vunpack.c.h.b16 %v1965
    %v2057 = vunpack.c.l.b16 %v1966
    %v2058 = vunpack.c.h.b16 %v1966
    %v2059 = vunpack.c.l.b16 %v1967
    %v2060 = vunpack.c.h.b16 %v1967
    %v2061 = vunpack.c.l.b16 %v1968
    %v2062 = vunpack.c.h.b16 %v1968
    %v2063 = vunpack.c.l.b16 %v1969
    %v2064 = vunpack.c.h.b16 %v1969
    %v2065 = vunpack.c.l.b16 %v1970
    %v2066 = vunpack.c.h.b16 %v1970
    %v2067 = vpack.c.b16 %v2007, %v2003
    %v2068 = vpack.c.b16 %v2008, %v2004
    %v2069 = vpack.c.b16 %v2009, %v2005
    %v2070 = vpack.c.b16 %v2010, %v2006
    %v2071 = vpack.c.b16 %v2015, %v2011
    %v2072 = vpack.c.b16 %v2016, %v2012
    %v2073 = vpack.c.b16 %v2017, %v2013
    %v2074 = vpack.c.b16 %v2018, %v2014
    %v2075 = vpack.c.b16 %v2023, %v2019
    %v2076 = vpack.c.b16 %v2024, %v2020
    %v2077 = vpack.c.b16 %v2025, %v2021
    %v2078 = vpack.c.b16 %v2026, %v2022
    %v2079 = vpack.c.b16 %v2031, %v2027
    %v2080 = vpack.c.b16 %v2032, %v2028
    %v2081 = vpack.c.b16 %v2033, %v2029
    %v2082 = vpack.c.b16 %v2034, %v2030
    %v2083 = vpack.c.b16 %v2039, %v2035
    %v2084 = vpack.c.b16 %v2040, %v2036
    %v2085 = vpack.c.b16 %v2041, %v2037
    %v2086 = vpack.c.b16 %v2042, %v2038
    %v2087 = vpack.c.b16 %v2047, %v2043
    %v2088 = vpack.c.b16 %v2048, %v2044
    %v2089 = vpack.c.b16 %v2049, %v2045
    %v2090 = vpack.c.b16 %v2050, %v2046
    %v2091 = vpack.c.b16 %v2055, %v2051
    %v2092 = vpack.c.b16 %v2056, %v2052
    %v2093 = vpack.c.b16 %v2057, %v2053
    %v2094 = vpack.c.b16 %v2058, %v2054
    %v2095 = vpack.c.b16 %v2063, %v2059
    %v2096 = vpack.c.b16 %v2064, %v2060
    %v2097 = vpack.c.b16 %v2065, %v2061
    %v2098 = vpack.c.b16 %v2066, %v2062
    %2131 = vmatpush.bf16.msra.mxu0 %v2095
    %2132 = vmatpush.bf16.msra.mxu0 %v2091
    %2133 = vmatpush.bf16.msra.mxu0 %v2087
    %2134 = vmatpush.bf16.msra.mxu0 %v2083
    %2135 = vmatpush.bf16.msra.mxu0 %v2079
    %2136 = vmatpush.bf16.msra.mxu0 %v2075
    %2137 = vmatpush.bf16.msra.mxu0 %v2071
    %2138 = vmatpush.bf16.msra.mxu0 %v2067
    %2139 = vmatmul.bf16.gmra.mxu0 %v1931
    %v2140 = vpop.f32.mrf.mxu0
    %v2141 = vadd.f32 0.0, %v2140
    %v2142 = vpop.f32.mrf.mxu0
    %v2143 = vadd.f32 0.0, %v2142
    %2144 = vmatmul.bf16.gmra.mxu0 %v1932
    %v2145 = vpop.f32.mrf.mxu0
    %v2146 = vadd.f32 0.0, %v2145
    %v2147 = vpop.f32.mrf.mxu0
    %v2148 = vadd.f32 0.0, %v2147
    %2149 = vmatmul.bf16.gmra.mxu0 %v1933
    %v2150 = vpop.f32.mrf.mxu0
    %v2151 = vadd.f32 0.0, %v2150
    %v2152 = vpop.f32.mrf.mxu0
    %v2153 = vadd.f32 0.0, %v2152
    %2154 = vmatmul.bf16.gmra.mxu0 %v1934
    %v2155 = vpop.f32.mrf.mxu0
    %v2156 = vadd.f32 0.0, %v2155
    %v2157 = vpop.f32.mrf.mxu0
    %v2158 = vadd.f32 0.0, %v2157
    %2159 = vmatmul.bf16.gmra.mxu0 %v1935
    %v2160 = vpop.f32.mrf.mxu0
    %v2161 = vadd.f32 0.0, %v2160
    %v2162 = vpop.f32.mrf.mxu0
    %v2163 = vadd.f32 0.0, %v2162
    %2164 = vmatmul.bf16.gmra.mxu0 %v1936
    %v2165 = vpop.f32.mrf.mxu0
    %v2166 = vadd.f32 0.0, %v2165
    %v2167 = vpop.f32.mrf.mxu0
    %v2168 = vadd.f32 0.0, %v2167
    %2169 = vmatmul.bf16.gmra.mxu0 %v1937
    %v2170 = vpop.f32.mrf.mxu0
    %v2171 = vadd.f32 0.0, %v2170
    %v2172 = vpop.f32.mrf.mxu0
    %v2173 = vadd.f32 0.0, %v2172
    %2174 = vmatmul.bf16.gmra.mxu0 %v1938
    %v2175 = vpop.f32.mrf.mxu0
    %v2176 = vadd.f32 0.0, %v2175
    %v2177 = vpop.f32.mrf.mxu0
    %v2178 = vadd.f32 0.0, %v2177
    %2179 = vdwg.mxu0
    %2180 = vmatpush.bf16.msra.mxu0 %v2096
    %2181 = vmatpush.bf16.msra.mxu0 %v2092
    %2182 = vmatpush.bf16.msra.mxu0 %v2088
    %2183 = vmatpush.bf16.msra.mxu0 %v2084
    %2184 = vmatpush.bf16.msra.mxu0 %v2080
    %2185 = vmatpush.bf16.msra.mxu0 %v2076
    %2186 = vmatpush.bf16.msra.mxu0 %v2072
    %2187 = vmatpush.bf16.msra.mxu0 %v2068
    %2188 = vmatmul.bf16.gmra.mxu0 %v1931
    %v2189 = vpop.f32.mrf.mxu0
    %v2190 = vadd.f32 0.0, %v2189
    %v2191 = vpop.f32.mrf.mxu0
    %v2192 = vadd.f32 0.0, %v2191
    %2193 = vmatmul.bf16.gmra.mxu0 %v1932
    %v2194 = vpop.f32.mrf.mxu0
    %v2195 = vadd.f32 0.0, %v2194
    %v2196 = vpop.f32.mrf.mxu0
    %v2197 = vadd.f32 0.0, %v2196
    %2198 = vmatmul.bf16.gmra.mxu0 %v1933
    %v2199 = vpop.f32.mrf.mxu0
    %v2200 = vadd.f32 0.0, %v2199
    %v2201 = vpop.f32.mrf.mxu0
    %v2202 = vadd.f32 0.0, %v2201
    %2203 = vmatmul.bf16.gmra.mxu0 %v1934
    %v2204 = vpop.f32.mrf.mxu0
    %v2205 = vadd.f32 0.0, %v2204
    %v2206 = vpop.f32.mrf.mxu0
    %v2207 = vadd.f32 0.0, %v2206
    %2208 = vmatmul.bf16.gmra.mxu0 %v1935
    %v2209 = vpop.f32.mrf.mxu0
    %v2210 = vadd.f32 0.0, %v2209
    %v2211 = vpop.f32.mrf.mxu0
    %v2212 = vadd.f32 0.0, %v2211
    %2213 = vmatmul.bf16.gmra.mxu0 %v1936
    %v2214 = vpop.f32.mrf.mxu0
    %v2215 = vadd.f32 0.0, %v2214
    %v2216 = vpop.f32.mrf.mxu0
    %v2217 = vadd.f32 0.0, %v2216
    %2218 = vmatmul.bf16.gmra.mxu0 %v1937
    %v2219 = vpop.f32.mrf.mxu0
    %v2220 = vadd.f32 0.0, %v2219
    %v2221 = vpop.f32.mrf.mxu0
    %v2222 = vadd.f32 0.0, %v2221
    %2223 = vmatmul.bf16.gmra.mxu0 %v1938
    %v2224 = vpop.f32.mrf.mxu0
    %v2225 = vadd.f32 0.0, %v2224
    %v2226 = vpop.f32.mrf.mxu0
    %v2227 = vadd.f32 0.0, %v2226
    %2228 = vdwg.mxu0
    %2229 = vmatpush.bf16.msra.mxu0 %v2097
    %2230 = vmatpush.bf16.msra.mxu0 %v2093
    %2231 = vmatpush.bf16.msra.mxu0 %v2089
    %2232 = vmatpush.bf16.msra.mxu0 %v2085
    %2233 = vmatpush.bf16.msra.mxu0 %v2081
    %2234 = vmatpush.bf16.msra.mxu0 %v2077
    %2235 = vmatpush.bf16.msra.mxu0 %v2073
    %2236 = vmatpush.bf16.msra.mxu0 %v2069
    %2237 = vmatmul.bf16.gmra.mxu0 %v1931
    %v2238 = vpop.f32.mrf.mxu0
    %v2239 = vadd.f32 0.0, %v2238
    %v2240 = vpop.f32.mrf.mxu0
    %v2241 = vadd.f32 0.0, %v2240
    %2242 = vmatmul.bf16.gmra.mxu0 %v1932
    %v2243 = vpop.f32.mrf.mxu0
    %v2244 = vadd.f32 0.0, %v2243
    %v2245 = vpop.f32.mrf.mxu0
    %v2246 = vadd.f32 0.0, %v2245
    %2247 = vmatmul.bf16.gmra.mxu0 %v1933
    %v2248 = vpop.f32.mrf.mxu0
    %v2249 = vadd.f32 0.0, %v2248
    %v2250 = vpop.f32.mrf.mxu0
    %v2251 = vadd.f32 0.0, %v2250
    %2252 = vmatmul.bf16.gmra.mxu0 %v1934
    %v2253 = vpop.f32.mrf.mxu0
    %v2254 = vadd.f32 0.0, %v2253
    %v2255 = vpop.f32.mrf.mxu0
    %v2256 = vadd.f32 0.0, %v2255
    %2257 = vmatmul.bf16.gmra.mxu0 %v1935
    %v2258 = vpop.f32.mrf.mxu0
    %v2259 = vadd.f32 0.0, %v2258
    %v2260 = vpop.f32.mrf.mxu0
    %v2261 = vadd.f32 0.0, %v2260
    %2262 = vmatmul.bf16.gmra.mxu0 %v1936
    %v2263 = vpop.f32.mrf.mxu0
    %v2264 = vadd.f32 0.0, %v2263
    %v2265 = vpop.f32.mrf.mxu0
    %v2266 = vadd.f32 0.0, %v2265
    %2267 = vmatmul.bf16.gmra.mxu0 %v1937
    %v2268 = vpop.f32.mrf.mxu0
    %v2269 = vadd.f32 0.0, %v2268
    %v2270 = vpop.f32.mrf.mxu0
    %v2271 = vadd.f32 0.0, %v2270
    %2272 = vmatmul.bf16.gmra.mxu0 %v1938
    %v2273 = vpop.f32.mrf.mxu0
    %v2274 = vadd.f32 0.0, %v2273
    %v2275 = vpop.f32.mrf.mxu0
    %v2276 = vadd.f32 0.0, %v2275
    %2277 = vdwg.mxu0
    %2278 = vmatpush.bf16.msra.mxu0 %v2098
    %2279 = vmatpush.bf16.msra.mxu0 %v2094
    %2280 = vmatpush.bf16.msra.mxu0 %v2090
    %2281 = vmatpush.bf16.msra.mxu0 %v2086
    %2282 = vmatpush.bf16.msra.mxu0 %v2082
    %2283 = vmatpush.bf16.msra.mxu0 %v2078
    %2284 = vmatpush.bf16.msra.mxu0 %v2074
    %2285 = vmatpush.bf16.msra.mxu0 %v2070
    %2286 = vmatmul.bf16.gmra.mxu0 %v1931
    %v2287 = vpop.f32.mrf.mxu0
    %v2288 = vadd.f32 0.0, %v2287
    %v2289 = vpop.f32.mrf.mxu0
    %v2290 = vadd.f32 0.0, %v2289
    %2291 = vmatmul.bf16.gmra.mxu0 %v1932
    %v2292 = vpop.f32.mrf.mxu0
    %v2293 = vadd.f32 0.0, %v2292
    %v2294 = vpop.f32.mrf.mxu0
    %v2295 = vadd.f32 0.0, %v2294
    %2296 = vmatmul.bf16.gmra.mxu0 %v1933
    %v2297 = vpop.f32.mrf.mxu0
    %v2298 = vadd.f32 0.0, %v2297
    %v2299 = vpop.f32.mrf.mxu0
    %v2300 = vadd.f32 0.0, %v2299
    %2301 = vmatmul.bf16.gmra.mxu0 %v1934
    %v2302 = vpop.f32.mrf.mxu0
    %v2303 = vadd.f32 0.0, %v2302
    %v2304 = vpop.f32.mrf.mxu0
    %v2305 = vadd.f32 0.0, %v2304
    %2306 = vmatmul.bf16.gmra.mxu0 %v1935
    %v2307 = vpop.f32.mrf.mxu0
    %v2308 = vadd.f32 0.0, %v2307
    %v2309 = vpop.f32.mrf.mxu0
    %v2310 = vadd.f32 0.0, %v2309
    %2311 = vmatmul.bf16.gmra.mxu0 %v1936
    %v2312 = vpop.f32.mrf.mxu0
    %v2313 = vadd.f32 0.0, %v2312
    %v2314 = vpop.f32.mrf.mxu0
    %v2315 = vadd.f32 0.0, %v2314
    %2316 = vmatmul.bf16.gmra.mxu0 %v1937
    %v2317 = vpop.f32.mrf.mxu0
    %v2318 = vadd.f32 0.0, %v2317
    %v2319 = vpop.f32.mrf.mxu0
    %v2320 = vadd.f32 0.0, %v2319
    %2321 = vmatmul.bf16.gmra.mxu0 %v1938
    %v2322 = vpop.f32.mrf.mxu0
    %v2323 = vadd.f32 0.0, %v2322
    %v2324 = vpop.f32.mrf.mxu0
    %v2325 = vadd.f32 0.0, %v2324
    %2326 = vdwg.mxu0
    %v2359 = vunpack.c.l.b16 %v1899
    %v2360 = vunpack.c.h.b16 %v1899
    %v2361 = vunpack.c.l.b16 %v1900
    %v2362 = vunpack.c.h.b16 %v1900
    %v2363 = vunpack.c.l.b16 %v1901
    %v2364 = vunpack.c.h.b16 %v1901
    %v2365 = vunpack.c.l.b16 %v1902
    %v2366 = vunpack.c.h.b16 %v1902
    %v2367 = vunpack.c.l.b16 %v1903
    %v2368 = vunpack.c.h.b16 %v1903
    %v2369 = vunpack.c.l.b16 %v1904
    %v2370 = vunpack.c.h.b16 %v1904
    %v2371 = vunpack.c.l.b16 %v1905
    %v2372 = vunpack.c.h.b16 %v1905
    %v2373 = vunpack.c.l.b16 %v1906
    %v2374 = vunpack.c.h.b16 %v1906
    %v2375 = vunpack.c.l.b16 %v1907
    %v2376 = vunpack.c.h.b16 %v1907
    %v2377 = vunpack.c.l.b16 %v1908
    %v2378 = vunpack.c.h.b16 %v1908
    %v2379 = vunpack.c.l.b16 %v1909
    %v2380 = vunpack.c.h.b16 %v1909
    %v2381 = vunpack.c.l.b16 %v1910
    %v2382 = vunpack.c.h.b16 %v1910
    %v2383 = vunpack.c.l.b16 %v1911
    %v2384 = vunpack.c.h.b16 %v1911
    %v2385 = vunpack.c.l.b16 %v1912
    %v2386 = vunpack.c.h.b16 %v1912
    %v2387 = vunpack.c.l.b16 %v1913
    %v2388 = vunpack.c.h.b16 %v1913
    %v2389 = vunpack.c.l.b16 %v1914
    %v2390 = vunpack.c.h.b16 %v1914
    %v2391 = vunpack.c.l.b16 %v1915
    %v2392 = vunpack.c.h.b16 %v1915
    %v2393 = vunpack.c.l.b16 %v1916
    %v2394 = vunpack.c.h.b16 %v1916
    %v2395 = vunpack.c.l.b16 %v1917
    %v2396 = vunpack.c.h.b16 %v1917
    %v2397 = vunpack.c.l.b16 %v1918
    %v2398 = vunpack.c.h.b16 %v1918
    %v2399 = vunpack.c.l.b16 %v1919
    %v2400 = vunpack.c.h.b16 %v1919
    %v2401 = vunpack.c.l.b16 %v1920
    %v2402 = vunpack.c.h.b16 %v1920
    %v2403 = vunpack.c.l.b16 %v1921
    %v2404 = vunpack.c.h.b16 %v1921
    %v2405 = vunpack.c.l.b16 %v1922
    %v2406 = vunpack.c.h.b16 %v1922
    %v2407 = vunpack.c.l.b16 %v1923
    %v2408 = vunpack.c.h.b16 %v1923
    %v2409 = vunpack.c.l.b16 %v1924
    %v2410 = vunpack.c.h.b16 %v1924
    %v2411 = vunpack.c.l.b16 %v1925
    %v2412 = vunpack.c.h.b16 %v1925
    %v2413 = vunpack.c.l.b16 %v1926
    %v2414 = vunpack.c.h.b16 %v1926
    %v2415 = vunpack.c.l.b16 %v1927
    %v2416 = vunpack.c.h.b16 %v1927
    %v2417 = vunpack.c.l.b16 %v1928
    %v2418 = vunpack.c.h.b16 %v1928
    %v2419 = vunpack.c.l.b16 %v1929
    %v2420 = vunpack.c.h.b16 %v1929
    %v2421 = vunpack.c.l.b16 %v1930
    %v2422 = vunpack.c.h.b16 %v1930
    %v2423 = vpack.c.b16 %v2363, %v2359
    %v2424 = vpack.c.b16 %v2364, %v2360
    %v2425 = vpack.c.b16 %v2365, %v2361
    %v2426 = vpack.c.b16 %v2366, %v2362
    %v2427 = vpack.c.b16 %v2371, %v2367
    %v2428 = vpack.c.b16 %v2372, %v2368
    %v2429 = vpack.c.b16 %v2373, %v2369
    %v2430 = vpack.c.b16 %v2374, %v2370
    %v2431 = vpack.c.b16 %v2379, %v2375
    %v2432 = vpack.c.b16 %v2380, %v2376
    %v2433 = vpack.c.b16 %v2381, %v2377
    %v2434 = vpack.c.b16 %v2382, %v2378
    %v2435 = vpack.c.b16 %v2387, %v2383
    %v2436 = vpack.c.b16 %v2388, %v2384
    %v2437 = vpack.c.b16 %v2389, %v2385
    %v2438 = vpack.c.b16 %v2390, %v2386
    %v2439 = vpack.c.b16 %v2395, %v2391
    %v2440 = vpack.c.b16 %v2396, %v2392
    %v2441 = vpack.c.b16 %v2397, %v2393
    %v2442 = vpack.c.b16 %v2398, %v2394
    %v2443 = vpack.c.b16 %v2403, %v2399
    %v2444 = vpack.c.b16 %v2404, %v2400
    %v2445 = vpack.c.b16 %v2405, %v2401
    %v2446 = vpack.c.b16 %v2406, %v2402
    %v2447 = vpack.c.b16 %v2411, %v2407
    %v2448 = vpack.c.b16 %v2412, %v2408
    %v2449 = vpack.c.b16 %v2413, %v2409
    %v2450 = vpack.c.b16 %v2414, %v2410
    %v2451 = vpack.c.b16 %v2419, %v2415
    %v2452 = vpack.c.b16 %v2420, %v2416
    %v2453 = vpack.c.b16 %v2421, %v2417
    %v2454 = vpack.c.b16 %v2422, %v2418
    %2487 = vmatpush.bf16.msra.mxu0 %v2451
    %2488 = vmatpush.bf16.msra.mxu0 %v2447
    %2489 = vmatpush.bf16.msra.mxu0 %v2443
    %2490 = vmatpush.bf16.msra.mxu0 %v2439
    %2491 = vmatpush.bf16.msra.mxu0 %v2435
    %2492 = vmatpush.bf16.msra.mxu0 %v2431
    %2493 = vmatpush.bf16.msra.mxu0 %v2427
    %2494 = vmatpush.bf16.msra.mxu0 %v2423
    %2495 = vmatmul.bf16.gmra.mxu0 %v1891
    %v2496 = vpop.f32.mrf.mxu0
    %v2497 = vadd.f32 %v2141, %v2496
    %v2498 = vpop.f32.mrf.mxu0
    %v2499 = vadd.f32 %v2143, %v2498
    %2500 = vmatmul.bf16.gmra.mxu0 %v1892
    %v2501 = vpop.f32.mrf.mxu0
    %v2502 = vadd.f32 %v2146, %v2501
    %v2503 = vpop.f32.mrf.mxu0
    %v2504 = vadd.f32 %v2148, %v2503
    %2505 = vmatmul.bf16.gmra.mxu0 %v1893
    %v2506 = vpop.f32.mrf.mxu0
    %v2507 = vadd.f32 %v2151, %v2506
    %v2508 = vpop.f32.mrf.mxu0
    %v2509 = vadd.f32 %v2153, %v2508
    %2510 = vmatmul.bf16.gmra.mxu0 %v1894
    %v2511 = vpop.f32.mrf.mxu0
    %v2512 = vadd.f32 %v2156, %v2511
    %v2513 = vpop.f32.mrf.mxu0
    %v2514 = vadd.f32 %v2158, %v2513
    %2515 = vmatmul.bf16.gmra.mxu0 %v1895
    %v2516 = vpop.f32.mrf.mxu0
    %v2517 = vadd.f32 %v2161, %v2516
    %v2518 = vpop.f32.mrf.mxu0
    %v2519 = vadd.f32 %v2163, %v2518
    %2520 = vmatmul.bf16.gmra.mxu0 %v1896
    %v2521 = vpop.f32.mrf.mxu0
    %v2522 = vadd.f32 %v2166, %v2521
    %v2523 = vpop.f32.mrf.mxu0
    %v2524 = vadd.f32 %v2168, %v2523
    %2525 = vmatmul.bf16.gmra.mxu0 %v1897
    %v2526 = vpop.f32.mrf.mxu0
    %v2527 = vadd.f32 %v2171, %v2526
    %v2528 = vpop.f32.mrf.mxu0
    %v2529 = vadd.f32 %v2173, %v2528
    %2530 = vmatmul.bf16.gmra.mxu0 %v1898
    %v2531 = vpop.f32.mrf.mxu0
    %v2532 = vadd.f32 %v2176, %v2531
    %v2533 = vpop.f32.mrf.mxu0
    %v2534 = vadd.f32 %v2178, %v2533
    %2535 = vdwg.mxu0
    %2536 = vmatpush.bf16.msra.mxu0 %v2452
    %2537 = vmatpush.bf16.msra.mxu0 %v2448
    %2538 = vmatpush.bf16.msra.mxu0 %v2444
    %2539 = vmatpush.bf16.msra.mxu0 %v2440
    %2540 = vmatpush.bf16.msra.mxu0 %v2436
    %2541 = vmatpush.bf16.msra.mxu0 %v2432
    %2542 = vmatpush.bf16.msra.mxu0 %v2428
    %2543 = vmatpush.bf16.msra.mxu0 %v2424
    %2544 = vmatmul.bf16.gmra.mxu0 %v1891
    %v2545 = vpop.f32.mrf.mxu0
    %v2546 = vadd.f32 %v2190, %v2545
    %v2547 = vpop.f32.mrf.mxu0
    %v2548 = vadd.f32 %v2192, %v2547
    %2549 = vmatmul.bf16.gmra.mxu0 %v1892
    %v2550 = vpop.f32.mrf.mxu0
    %v2551 = vadd.f32 %v2195, %v2550
    %v2552 = vpop.f32.mrf.mxu0
    %v2553 = vadd.f32 %v2197, %v2552
    %2554 = vmatmul.bf16.gmra.mxu0 %v1893
    %v2555 = vpop.f32.mrf.mxu0
    %v2556 = vadd.f32 %v2200, %v2555
    %v2557 = vpop.f32.mrf.mxu0
    %v2558 = vadd.f32 %v2202, %v2557
    %2559 = vmatmul.bf16.gmra.mxu0 %v1894
    %v2560 = vpop.f32.mrf.mxu0
    %v2561 = vadd.f32 %v2205, %v2560
    %v2562 = vpop.f32.mrf.mxu0
    %v2563 = vadd.f32 %v2207, %v2562
    %2564 = vmatmul.bf16.gmra.mxu0 %v1895
    %v2565 = vpop.f32.mrf.mxu0
    %v2566 = vadd.f32 %v2210, %v2565
    %v2567 = vpop.f32.mrf.mxu0
    %v2568 = vadd.f32 %v2212, %v2567
    %2569 = vmatmul.bf16.gmra.mxu0 %v1896
    %v2570 = vpop.f32.mrf.mxu0
    %v2571 = vadd.f32 %v2215, %v2570
    %v2572 = vpop.f32.mrf.mxu0
    %v2573 = vadd.f32 %v2217, %v2572
    %2574 = vmatmul.bf16.gmra.mxu0 %v1897
    %v2575 = vpop.f32.mrf.mxu0
    %v2576 = vadd.f32 %v2220, %v2575
    %v2577 = vpop.f32.mrf.mxu0
    %v2578 = vadd.f32 %v2222, %v2577
    %2579 = vmatmul.bf16.gmra.mxu0 %v1898
    %v2580 = vpop.f32.mrf.mxu0
    %v2581 = vadd.f32 %v2225, %v2580
    %v2582 = vpop.f32.mrf.mxu0
    %v2583 = vadd.f32 %v2227, %v2582
    %2584 = vdwg.mxu0
    %2585 = vmatpush.bf16.msra.mxu0 %v2453
    %2586 = vmatpush.bf16.msra.mxu0 %v2449
    %2587 = vmatpush.bf16.msra.mxu0 %v2445
    %2588 = vmatpush.bf16.msra.mxu0 %v2441
    %2589 = vmatpush.bf16.msra.mxu0 %v2437
    %2590 = vmatpush.bf16.msra.mxu0 %v2433
    %2591 = vmatpush.bf16.msra.mxu0 %v2429
    %2592 = vmatpush.bf16.msra.mxu0 %v2425
    %2593 = vmatmul.bf16.gmra.mxu0 %v1891
    %v2594 = vpop.f32.mrf.mxu0
    %v2595 = vadd.f32 %v2239, %v2594
    %v2596 = vpop.f32.mrf.mxu0
    %v2597 = vadd.f32 %v2241, %v2596
    %2598 = vmatmul.bf16.gmra.mxu0 %v1892
    %v2599 = vpop.f32.mrf.mxu0
    %v2600 = vadd.f32 %v2244, %v2599
    %v2601 = vpop.f32.mrf.mxu0
    %v2602 = vadd.f32 %v2246, %v2601
    %2603 = vmatmul.bf16.gmra.mxu0 %v1893
    %v2604 = vpop.f32.mrf.mxu0
    %v2605 = vadd.f32 %v2249, %v2604
    %v2606 = vpop.f32.mrf.mxu0
    %v2607 = vadd.f32 %v2251, %v2606
    %2608 = vmatmul.bf16.gmra.mxu0 %v1894
    %v2609 = vpop.f32.mrf.mxu0
    %v2610 = vadd.f32 %v2254, %v2609
    %v2611 = vpop.f32.mrf.mxu0
    %v2612 = vadd.f32 %v2256, %v2611
    %2613 = vmatmul.bf16.gmra.mxu0 %v1895
    %v2614 = vpop.f32.mrf.mxu0
    %v2615 = vadd.f32 %v2259, %v2614
    %v2616 = vpop.f32.mrf.mxu0
    %v2617 = vadd.f32 %v2261, %v2616
    %2618 = vmatmul.bf16.gmra.mxu0 %v1896
    %v2619 = vpop.f32.mrf.mxu0
    %v2620 = vadd.f32 %v2264, %v2619
    %v2621 = vpop.f32.mrf.mxu0
    %v2622 = vadd.f32 %v2266, %v2621
    %2623 = vmatmul.bf16.gmra.mxu0 %v1897
    %v2624 = vpop.f32.mrf.mxu0
    %v2625 = vadd.f32 %v2269, %v2624
    %v2626 = vpop.f32.mrf.mxu0
    %v2627 = vadd.f32 %v2271, %v2626
    %2628 = vmatmul.bf16.gmra.mxu0 %v1898
    %v2629 = vpop.f32.mrf.mxu0
    %v2630 = vadd.f32 %v2274, %v2629
    %v2631 = vpop.f32.mrf.mxu0
    %v2632 = vadd.f32 %v2276, %v2631
    %2633 = vdwg.mxu0
    %2634 = vmatpush.bf16.msra.mxu0 %v2454
    %2635 = vmatpush.bf16.msra.mxu0 %v2450
    %2636 = vmatpush.bf16.msra.mxu0 %v2446
    %2637 = vmatpush.bf16.msra.mxu0 %v2442
    %2638 = vmatpush.bf16.msra.mxu0 %v2438
    %2639 = vmatpush.bf16.msra.mxu0 %v2434
    %2640 = vmatpush.bf16.msra.mxu0 %v2430
    %2641 = vmatpush.bf16.msra.mxu0 %v2426
    %2642 = vmatmul.bf16.gmra.mxu0 %v1891
    %v2643 = vpop.f32.mrf.mxu0
    %v2644 = vadd.f32 %v2288, %v2643
    %v2645 = vpop.f32.mrf.mxu0
    %v2646 = vadd.f32 %v2290, %v2645
    %2647 = vmatmul.bf16.gmra.mxu0 %v1892
    %v2648 = vpop.f32.mrf.mxu0
    %v2649 = vadd.f32 %v2293, %v2648
    %v2650 = vpop.f32.mrf.mxu0
    %v2651 = vadd.f32 %v2295, %v2650
    %2652 = vmatmul.bf16.gmra.mxu0 %v1893
    %v2653 = vpop.f32.mrf.mxu0
    %v2654 = vadd.f32 %v2298, %v2653
    %v2655 = vpop.f32.mrf.mxu0
    %v2656 = vadd.f32 %v2300, %v2655
    %2657 = vmatmul.bf16.gmra.mxu0 %v1894
    %v2658 = vpop.f32.mrf.mxu0
    %v2659 = vadd.f32 %v2303, %v2658
    %v2660 = vpop.f32.mrf.mxu0
    %v2661 = vadd.f32 %v2305, %v2660
    %2662 = vmatmul.bf16.gmra.mxu0 %v1895
    %v2663 = vpop.f32.mrf.mxu0
    %v2664 = vadd.f32 %v2308, %v2663
    %v2665 = vpop.f32.mrf.mxu0
    %v2666 = vadd.f32 %v2310, %v2665
    %2667 = vmatmul.bf16.gmra.mxu0 %v1896
    %v2668 = vpop.f32.mrf.mxu0
    %v2669 = vadd.f32 %v2313, %v2668
    %v2670 = vpop.f32.mrf.mxu0
    %v2671 = vadd.f32 %v2315, %v2670
    %2672 = vmatmul.bf16.gmra.mxu0 %v1897
    %v2673 = vpop.f32.mrf.mxu0
    %v2674 = vadd.f32 %v2318, %v2673
    %v2675 = vpop.f32.mrf.mxu0
    %v2676 = vadd.f32 %v2320, %v2675
    %2677 = vmatmul.bf16.gmra.mxu0 %v1898
    %v2678 = vpop.f32.mrf.mxu0
    %v2679 = vadd.f32 %v2323, %v2678
    %v2680 = vpop.f32.mrf.mxu0
    %v2681 = vadd.f32 %v2325, %v2680
    %2682 = vdwg.mxu0
    %v2683 = vld [vmem:[%s13] sm:$0xf]
    %v2685 = vperm.slane %v2683, 0
    %v2686 = vperm.slane %v2683, 1
    %v2687 = vperm.slane %v2683, 2
    %v2688 = vperm.slane %v2683, 3
    %v2693 = vadd.f32 %v2497, %v2685
    %v2694 = vadd.f32 %v2546, %v2686
    %v2695 = vadd.f32 %v2595, %v2687
    %v2696 = vadd.f32 %v2644, %v2688
    %v2697 = vadd.f32 %v2499, %v2685
    %v2698 = vadd.f32 %v2548, %v2686
    %v2699 = vadd.f32 %v2597, %v2687
    %v2700 = vadd.f32 %v2646, %v2688
    %v2701 = vadd.f32 %v2502, %v2685
    %v2702 = vadd.f32 %v2551, %v2686
    %v2703 = vadd.f32 %v2600, %v2687
    %v2704 = vadd.f32 %v2649, %v2688
    %v2705 = vadd.f32 %v2504, %v2685
    %v2706 = vadd.f32 %v2553, %v2686
    %v2707 = vadd.f32 %v2602, %v2687
    %v2708 = vadd.f32 %v2651, %v2688
    %v2709 = vadd.f32 %v2507, %v2685
    %v2710 = vadd.f32 %v2556, %v2686
    %v2711 = vadd.f32 %v2605, %v2687
    %v2712 = vadd.f32 %v2654, %v2688
    %v2713 = vadd.f32 %v2509, %v2685
    %v2714 = vadd.f32 %v2558, %v2686
    %v2715 = vadd.f32 %v2607, %v2687
    %v2716 = vadd.f32 %v2656, %v2688
    %v2717 = vadd.f32 %v2512, %v2685
    %v2718 = vadd.f32 %v2561, %v2686
    %v2719 = vadd.f32 %v2610, %v2687
    %v2720 = vadd.f32 %v2659, %v2688
    %v2721 = vadd.f32 %v2514, %v2685
    %v2722 = vadd.f32 %v2563, %v2686
    %v2723 = vadd.f32 %v2612, %v2687
    %v2724 = vadd.f32 %v2661, %v2688
    %v2725 = vadd.f32 %v2517, %v2685
    %v2726 = vadd.f32 %v2566, %v2686
    %v2727 = vadd.f32 %v2615, %v2687
    %v2728 = vadd.f32 %v2664, %v2688
    %v2729 = vadd.f32 %v2519, %v2685
    %v2730 = vadd.f32 %v2568, %v2686
    %v2731 = vadd.f32 %v2617, %v2687
    %v2732 = vadd.f32 %v2666, %v2688
    %v2733 = vadd.f32 %v2522, %v2685
    %v2734 = vadd.f32 %v2571, %v2686
    %v2735 = vadd.f32 %v2620, %v2687
    %v2736 = vadd.f32 %v2669, %v2688
    %v2737 = vadd.f32 %v2524, %v2685
    %v2738 = vadd.f32 %v2573, %v2686
    %v2739 = vadd.f32 %v2622, %v2687
    %v2740 = vadd.f32 %v2671, %v2688
    %v2741 = vadd.f32 %v2527, %v2685
    %v2742 = vadd.f32 %v2576, %v2686
    %v2743 = vadd.f32 %v2625, %v2687
    %v2744 = vadd.f32 %v2674, %v2688
    %v2745 = vadd.f32 %v2529, %v2685
    %v2746 = vadd.f32 %v2578, %v2686
    %v2747 = vadd.f32 %v2627, %v2687
    %v2748 = vadd.f32 %v2676, %v2688
    %v2749 = vadd.f32 %v2532, %v2685
    %v2750 = vadd.f32 %v2581, %v2686
    %v2751 = vadd.f32 %v2630, %v2687
    %v2752 = vadd.f32 %v2679, %v2688
    %v2753 = vadd.f32 %v2534, %v2685
    %v2754 = vadd.f32 %v2583, %v2686
    %v2755 = vadd.f32 %v2632, %v2687
    %v2756 = vadd.f32 %v2681, %v2688
    %v2757 = vxor.u32 %v2693, 2147483648
    %v2758 = vxor.u32 %v2697, 2147483648
    %v2759 = vxor.u32 %v2701, 2147483648
    %v2760 = vxor.u32 %v2705, 2147483648
    %v2761 = vxor.u32 %v2709, 2147483648
    %v2762 = vxor.u32 %v2713, 2147483648
    %v2763 = vxor.u32 %v2717, 2147483648
    %v2764 = vxor.u32 %v2721, 2147483648
    %v2765 = vxor.u32 %v2725, 2147483648
    %v2766 = vxor.u32 %v2729, 2147483648
    %v2767 = vxor.u32 %v2733, 2147483648
    %v2768 = vxor.u32 %v2737, 2147483648
    %v2769 = vxor.u32 %v2741, 2147483648
    %v2770 = vxor.u32 %v2745, 2147483648
    %v2771 = vxor.u32 %v2749, 2147483648
    %v2772 = vxor.u32 %v2753, 2147483648
    %v2773 = vmul.f32 %v2757, 1.442695
    %v2774 = vpow.pop %v2773
    %v2775 = vmul.f32 %v2758, 1.442695
    %v2776 = vpow.pop %v2775
    %v2777 = vmul.f32 %v2759, 1.442695
    %v2778 = vpow.pop %v2777
    %v2779 = vmul.f32 %v2760, 1.442695
    %v2780 = vpow.pop %v2779
    %v2781 = vmul.f32 %v2761, 1.442695
    %v2782 = vpow.pop %v2781
    %v2783 = vmul.f32 %v2762, 1.442695
    %v2784 = vpow.pop %v2783
    %v2785 = vmul.f32 %v2763, 1.442695
    %v2786 = vpow.pop %v2785
    %v2787 = vmul.f32 %v2764, 1.442695
    %v2788 = vpow.pop %v2787
    %v2789 = vmul.f32 %v2765, 1.442695
    %v2790 = vpow.pop %v2789
    %v2791 = vmul.f32 %v2766, 1.442695
    %v2792 = vpow.pop %v2791
    %v2793 = vmul.f32 %v2767, 1.442695
    %v2794 = vpow.pop %v2793
    %v2795 = vmul.f32 %v2768, 1.442695
    %v2796 = vpow.pop %v2795
    %v2797 = vmul.f32 %v2769, 1.442695
    %v2798 = vpow.pop %v2797
    %v2799 = vmul.f32 %v2770, 1.442695
    %v2800 = vpow.pop %v2799
    %v2801 = vmul.f32 %v2771, 1.442695
    %v2802 = vpow.pop %v2801
    %v2803 = vmul.f32 %v2772, 1.442695
    %v2804 = vpow.pop %v2803
    %v2805 = vadd.f32 %v2774, 1.0
    %v2806 = vadd.f32 %v2776, 1.0
    %v2807 = vadd.f32 %v2778, 1.0
    %v2808 = vadd.f32 %v2780, 1.0
    %v2809 = vadd.f32 %v2782, 1.0
    %v2810 = vadd.f32 %v2784, 1.0
    %v2811 = vadd.f32 %v2786, 1.0
    %v2812 = vadd.f32 %v2788, 1.0
    %v2813 = vadd.f32 %v2790, 1.0
    %v2814 = vadd.f32 %v2792, 1.0
    %v2815 = vadd.f32 %v2794, 1.0
    %v2816 = vadd.f32 %v2796, 1.0
    %v2817 = vadd.f32 %v2798, 1.0
    %v2818 = vadd.f32 %v2800, 1.0
    %v2819 = vadd.f32 %v2802, 1.0
    %v2820 = vadd.f32 %v2804, 1.0
    %v2821 = vrcp.pop %v2805
    %v2822 = vmul.f32 %v2805, %v2821
    %v2823 = vsub.f32 1.0, %v2822
    %v2824 = vmul.f32 %v2821, %v2823
    %v2825 = vadd.f32 %v2821, %v2824
    %vm2826 = vweird.f32 %v2805
    %vm2827 = vweird.f32 %v2821
    %vm2828 = vmor %vm2826, %vm2827
    %v2829 = vsel %vm2828, %v2821, %v2825
    %v2830 = vand.u32 2147483647, %v2805
    %vm2831 = vcmp.eq.f32.partialorder %v2830, 8.507059e+37
    %v2832 = vand.u32 %v2805, 2147483648
    %v2833 = vor.u32 1.1754944e-38, %v2832
    %v2834 = vsel %vm2831, %v2833, %v2829
    %v2835 = vmul.f32 1.0, %v2834
    %v2836 = vrcp.pop %v2806
    %v2837 = vmul.f32 %v2806, %v2836
    %v2838 = vsub.f32 1.0, %v2837
    %v2839 = vmul.f32 %v2836, %v2838
    %v2840 = vadd.f32 %v2836, %v2839
    %vm2841 = vweird.f32 %v2806
    %vm2842 = vweird.f32 %v2836
    %vm2843 = vmor %vm2841, %vm2842
    %v2844 = vsel %vm2843, %v2836, %v2840
    %v2845 = vand.u32 2147483647, %v2806
    %vm2846 = vcmp.eq.f32.partialorder %v2845, 8.507059e+37
    %v2847 = vand.u32 %v2806, 2147483648
    %v2848 = vor.u32 1.1754944e-38, %v2847
    %v2849 = vsel %vm2846, %v2848, %v2844
    %v2850 = vmul.f32 1.0, %v2849
    %v2851 = vrcp.pop %v2807
    %v2852 = vmul.f32 %v2807, %v2851
    %v2853 = vsub.f32 1.0, %v2852
    %v2854 = vmul.f32 %v2851, %v2853
    %v2855 = vadd.f32 %v2851, %v2854
    %vm2856 = vweird.f32 %v2807
    %vm2857 = vweird.f32 %v2851
    %vm2858 = vmor %vm2856, %vm2857
    %v2859 = vsel %vm2858, %v2851, %v2855
    %v2860 = vand.u32 2147483647, %v2807
    %vm2861 = vcmp.eq.f32.partialorder %v2860, 8.507059e+37
    %v2862 = vand.u32 %v2807, 2147483648
    %v2863 = vor.u32 1.1754944e-38, %v2862
    %v2864 = vsel %vm2861, %v2863, %v2859
    %v2865 = vmul.f32 1.0, %v2864
    %v2866 = vrcp.pop %v2808
    %v2867 = vmul.f32 %v2808, %v2866
    %v2868 = vsub.f32 1.0, %v2867
    %v2869 = vmul.f32 %v2866, %v2868
    %v2870 = vadd.f32 %v2866, %v2869
    %vm2871 = vweird.f32 %v2808
    %vm2872 = vweird.f32 %v2866
    %vm2873 = vmor %vm2871, %vm2872
    %v2874 = vsel %vm2873, %v2866, %v2870
    %v2875 = vand.u32 2147483647, %v2808
    %vm2876 = vcmp.eq.f32.partialorder %v2875, 8.507059e+37
    %v2877 = vand.u32 %v2808, 2147483648
    %v2878 = vor.u32 1.1754944e-38, %v2877
    %v2879 = vsel %vm2876, %v2878, %v2874
    %v2880 = vmul.f32 1.0, %v2879
    %v2881 = vrcp.pop %v2809
    %v2882 = vmul.f32 %v2809, %v2881
    %v2883 = vsub.f32 1.0, %v2882
    %v2884 = vmul.f32 %v2881, %v2883
    %v2885 = vadd.f32 %v2881, %v2884
    %vm2886 = vweird.f32 %v2809
    %vm2887 = vweird.f32 %v2881
    %vm2888 = vmor %vm2886, %vm2887
    %v2889 = vsel %vm2888, %v2881, %v2885
    %v2890 = vand.u32 2147483647, %v2809
    %vm2891 = vcmp.eq.f32.partialorder %v2890, 8.507059e+37
    %v2892 = vand.u32 %v2809, 2147483648
    %v2893 = vor.u32 1.1754944e-38, %v2892
    %v2894 = vsel %vm2891, %v2893, %v2889
    %v2895 = vmul.f32 1.0, %v2894
    %v2896 = vrcp.pop %v2810
    %v2897 = vmul.f32 %v2810, %v2896
    %v2898 = vsub.f32 1.0, %v2897
    %v2899 = vmul.f32 %v2896, %v2898
    %v2900 = vadd.f32 %v2896, %v2899
    %vm2901 = vweird.f32 %v2810
    %vm2902 = vweird.f32 %v2896
    %vm2903 = vmor %vm2901, %vm2902
    %v2904 = vsel %vm2903, %v2896, %v2900
    %v2905 = vand.u32 2147483647, %v2810
    %vm2906 = vcmp.eq.f32.partialorder %v2905, 8.507059e+37
    %v2907 = vand.u32 %v2810, 2147483648
    %v2908 = vor.u32 1.1754944e-38, %v2907
    %v2909 = vsel %vm2906, %v2908, %v2904
    %v2910 = vmul.f32 1.0, %v2909
    %v2911 = vrcp.pop %v2811
    %v2912 = vmul.f32 %v2811, %v2911
    %v2913 = vsub.f32 1.0, %v2912
    %v2914 = vmul.f32 %v2911, %v2913
    %v2915 = vadd.f32 %v2911, %v2914
    %vm2916 = vweird.f32 %v2811
    %vm2917 = vweird.f32 %v2911
    %vm2918 = vmor %vm2916, %vm2917
    %v2919 = vsel %vm2918, %v2911, %v2915
    %v2920 = vand.u32 2147483647, %v2811
    %vm2921 = vcmp.eq.f32.partialorder %v2920, 8.507059e+37
    %v2922 = vand.u32 %v2811, 2147483648
    %v2923 = vor.u32 1.1754944e-38, %v2922
    %v2924 = vsel %vm2921, %v2923, %v2919
    %v2925 = vmul.f32 1.0, %v2924
    %v2926 = vrcp.pop %v2812
    %v2927 = vmul.f32 %v2812, %v2926
    %v2928 = vsub.f32 1.0, %v2927
    %v2929 = vmul.f32 %v2926, %v2928
    %v2930 = vadd.f32 %v2926, %v2929
    %vm2931 = vweird.f32 %v2812
    %vm2932 = vweird.f32 %v2926
    %vm2933 = vmor %vm2931, %vm2932
    %v2934 = vsel %vm2933, %v2926, %v2930
    %v2935 = vand.u32 2147483647, %v2812
    %vm2936 = vcmp.eq.f32.partialorder %v2935, 8.507059e+37
    %v2937 = vand.u32 %v2812, 2147483648
    %v2938 = vor.u32 1.1754944e-38, %v2937
    %v2939 = vsel %vm2936, %v2938, %v2934
    %v2940 = vmul.f32 1.0, %v2939
    %v2941 = vrcp.pop %v2813
    %v2942 = vmul.f32 %v2813, %v2941
    %v2943 = vsub.f32 1.0, %v2942
    %v2944 = vmul.f32 %v2941, %v2943
    %v2945 = vadd.f32 %v2941, %v2944
    %vm2946 = vweird.f32 %v2813
    %vm2947 = vweird.f32 %v2941
    %vm2948 = vmor %vm2946, %vm2947
    %v2949 = vsel %vm2948, %v2941, %v2945
    %v2950 = vand.u32 2147483647, %v2813
    %vm2951 = vcmp.eq.f32.partialorder %v2950, 8.507059e+37
    %v2952 = vand.u32 %v2813, 2147483648
    %v2953 = vor.u32 1.1754944e-38, %v2952
    %v2954 = vsel %vm2951, %v2953, %v2949
    %v2955 = vmul.f32 1.0, %v2954
    %v2956 = vrcp.pop %v2814
    %v2957 = vmul.f32 %v2814, %v2956
    %v2958 = vsub.f32 1.0, %v2957
    %v2959 = vmul.f32 %v2956, %v2958
    %v2960 = vadd.f32 %v2956, %v2959
    %vm2961 = vweird.f32 %v2814
    %vm2962 = vweird.f32 %v2956
    %vm2963 = vmor %vm2961, %vm2962
    %v2964 = vsel %vm2963, %v2956, %v2960
    %v2965 = vand.u32 2147483647, %v2814
    %vm2966 = vcmp.eq.f32.partialorder %v2965, 8.507059e+37
    %v2967 = vand.u32 %v2814, 2147483648
    %v2968 = vor.u32 1.1754944e-38, %v2967
    %v2969 = vsel %vm2966, %v2968, %v2964
    %v2970 = vmul.f32 1.0, %v2969
    %v2971 = vrcp.pop %v2815
    %v2972 = vmul.f32 %v2815, %v2971
    %v2973 = vsub.f32 1.0, %v2972
    %v2974 = vmul.f32 %v2971, %v2973
    %v2975 = vadd.f32 %v2971, %v2974
    %vm2976 = vweird.f32 %v2815
    %vm2977 = vweird.f32 %v2971
    %vm2978 = vmor %vm2976, %vm2977
    %v2979 = vsel %vm2978, %v2971, %v2975
    %v2980 = vand.u32 2147483647, %v2815
    %vm2981 = vcmp.eq.f32.partialorder %v2980, 8.507059e+37
    %v2982 = vand.u32 %v2815, 2147483648
    %v2983 = vor.u32 1.1754944e-38, %v2982
    %v2984 = vsel %vm2981, %v2983, %v2979
    %v2985 = vmul.f32 1.0, %v2984
    %v2986 = vrcp.pop %v2816
    %v2987 = vmul.f32 %v2816, %v2986
    %v2988 = vsub.f32 1.0, %v2987
    %v2989 = vmul.f32 %v2986, %v2988
    %v2990 = vadd.f32 %v2986, %v2989
    %vm2991 = vweird.f32 %v2816
    %vm2992 = vweird.f32 %v2986
    %vm2993 = vmor %vm2991, %vm2992
    %v2994 = vsel %vm2993, %v2986, %v2990
    %v2995 = vand.u32 2147483647, %v2816
    %vm2996 = vcmp.eq.f32.partialorder %v2995, 8.507059e+37
    %v2997 = vand.u32 %v2816, 2147483648
    %v2998 = vor.u32 1.1754944e-38, %v2997
    %v2999 = vsel %vm2996, %v2998, %v2994
    %v3000 = vmul.f32 1.0, %v2999
    %v3001 = vrcp.pop %v2817
    %v3002 = vmul.f32 %v2817, %v3001
    %v3003 = vsub.f32 1.0, %v3002
    %v3004 = vmul.f32 %v3001, %v3003
    %v3005 = vadd.f32 %v3001, %v3004
    %vm3006 = vweird.f32 %v2817
    %vm3007 = vweird.f32 %v3001
    %vm3008 = vmor %vm3006, %vm3007
    %v3009 = vsel %vm3008, %v3001, %v3005
    %v3010 = vand.u32 2147483647, %v2817
    %vm3011 = vcmp.eq.f32.partialorder %v3010, 8.507059e+37
    %v3012 = vand.u32 %v2817, 2147483648
    %v3013 = vor.u32 1.1754944e-38, %v3012
    %v3014 = vsel %vm3011, %v3013, %v3009
    %v3015 = vmul.f32 1.0, %v3014
    %v3016 = vrcp.pop %v2818
    %v3017 = vmul.f32 %v2818, %v3016
    %v3018 = vsub.f32 1.0, %v3017
    %v3019 = vmul.f32 %v3016, %v3018
    %v3020 = vadd.f32 %v3016, %v3019
    %vm3021 = vweird.f32 %v2818
    %vm3022 = vweird.f32 %v3016
    %vm3023 = vmor %vm3021, %vm3022
    %v3024 = vsel %vm3023, %v3016, %v3020
    %v3025 = vand.u32 2147483647, %v2818
    %vm3026 = vcmp.eq.f32.partialorder %v3025, 8.507059e+37
    %v3027 = vand.u32 %v2818, 2147483648
    %v3028 = vor.u32 1.1754944e-38, %v3027
    %v3029 = vsel %vm3026, %v3028, %v3024
    %v3030 = vmul.f32 1.0, %v3029
    %v3031 = vrcp.pop %v2819
    %v3032 = vmul.f32 %v2819, %v3031
    %v3033 = vsub.f32 1.0, %v3032
    %v3034 = vmul.f32 %v3031, %v3033
    %v3035 = vadd.f32 %v3031, %v3034
    %vm3036 = vweird.f32 %v2819
    %vm3037 = vweird.f32 %v3031
    %vm3038 = vmor %vm3036, %vm3037
    %v3039 = vsel %vm3038, %v3031, %v3035
    %v3040 = vand.u32 2147483647, %v2819
    %vm3041 = vcmp.eq.f32.partialorder %v3040, 8.507059e+37
    %v3042 = vand.u32 %v2819, 2147483648
    %v3043 = vor.u32 1.1754944e-38, %v3042
    %v3044 = vsel %vm3041, %v3043, %v3039
    %v3045 = vmul.f32 1.0, %v3044
    %v3046 = vrcp.pop %v2820
    %v3047 = vmul.f32 %v2820, %v3046
    %v3048 = vsub.f32 1.0, %v3047
    %v3049 = vmul.f32 %v3046, %v3048
    %v3050 = vadd.f32 %v3046, %v3049
    %vm3051 = vweird.f32 %v2820
    %vm3052 = vweird.f32 %v3046
    %vm3053 = vmor %vm3051, %vm3052
    %v3054 = vsel %vm3053, %v3046, %v3050
    %v3055 = vand.u32 2147483647, %v2820
    %vm3056 = vcmp.eq.f32.partialorder %v3055, 8.507059e+37
    %v3057 = vand.u32 %v2820, 2147483648
    %v3058 = vor.u32 1.1754944e-38, %v3057
    %v3059 = vsel %vm3056, %v3058, %v3054
    %v3060 = vmul.f32 1.0, %v3059
    %v3061 = vxor.u32 %v2694, 2147483648
    %v3062 = vxor.u32 %v2698, 2147483648
    %v3063 = vxor.u32 %v2702, 2147483648
    %v3064 = vxor.u32 %v2706, 2147483648
    %v3065 = vxor.u32 %v2710, 2147483648
    %v3066 = vxor.u32 %v2714, 2147483648
    %v3067 = vxor.u32 %v2718, 2147483648
    %v3068 = vxor.u32 %v2722, 2147483648
    %v3069 = vxor.u32 %v2726, 2147483648
    %v3070 = vxor.u32 %v2730, 2147483648
    %v3071 = vxor.u32 %v2734, 2147483648
    %v3072 = vxor.u32 %v2738, 2147483648
    %v3073 = vxor.u32 %v2742, 2147483648
    %v3074 = vxor.u32 %v2746, 2147483648
    %v3075 = vxor.u32 %v2750, 2147483648
    %v3076 = vxor.u32 %v2754, 2147483648
    %v3077 = vmul.f32 %v3061, 1.442695
    %v3078 = vpow.pop %v3077
    %v3079 = vmul.f32 %v3062, 1.442695
    %v3080 = vpow.pop %v3079
    %v3081 = vmul.f32 %v3063, 1.442695
    %v3082 = vpow.pop %v3081
    %v3083 = vmul.f32 %v3064, 1.442695
    %v3084 = vpow.pop %v3083
    %v3085 = vmul.f32 %v3065, 1.442695
    %v3086 = vpow.pop %v3085
    %v3087 = vmul.f32 %v3066, 1.442695
    %v3088 = vpow.pop %v3087
    %v3089 = vmul.f32 %v3067, 1.442695
    %v3090 = vpow.pop %v3089
    %v3091 = vmul.f32 %v3068, 1.442695
    %v3092 = vpow.pop %v3091
    %v3093 = vmul.f32 %v3069, 1.442695
    %v3094 = vpow.pop %v3093
    %v3095 = vmul.f32 %v3070, 1.442695
    %v3096 = vpow.pop %v3095
    %v3097 = vmul.f32 %v3071, 1.442695
    %v3098 = vpow.pop %v3097
    %v3099 = vmul.f32 %v3072, 1.442695
    %v3100 = vpow.pop %v3099
    %v3101 = vmul.f32 %v3073, 1.442695
    %v3102 = vpow.pop %v3101
    %v3103 = vmul.f32 %v3074, 1.442695
    %v3104 = vpow.pop %v3103
    %v3105 = vmul.f32 %v3075, 1.442695
    %v3106 = vpow.pop %v3105
    %v3107 = vmul.f32 %v3076, 1.442695
    %v3108 = vpow.pop %v3107
    %v3109 = vadd.f32 %v3078, 1.0
    %v3110 = vadd.f32 %v3080, 1.0
    %v3111 = vadd.f32 %v3082, 1.0
    %v3112 = vadd.f32 %v3084, 1.0
    %v3113 = vadd.f32 %v3086, 1.0
    %v3114 = vadd.f32 %v3088, 1.0
    %v3115 = vadd.f32 %v3090, 1.0
    %v3116 = vadd.f32 %v3092, 1.0
    %v3117 = vadd.f32 %v3094, 1.0
    %v3118 = vadd.f32 %v3096, 1.0
    %v3119 = vadd.f32 %v3098, 1.0
    %v3120 = vadd.f32 %v3100, 1.0
    %v3121 = vadd.f32 %v3102, 1.0
    %v3122 = vadd.f32 %v3104, 1.0
    %v3123 = vadd.f32 %v3106, 1.0
    %v3124 = vadd.f32 %v3108, 1.0
    %v3125 = vrcp.pop %v3109
    %v3126 = vmul.f32 %v3109, %v3125
    %v3127 = vsub.f32 1.0, %v3126
    %v3128 = vmul.f32 %v3125, %v3127
    %v3129 = vadd.f32 %v3125, %v3128
    %vm3130 = vweird.f32 %v3109
    %vm3131 = vweird.f32 %v3125
    %vm3132 = vmor %vm3130, %vm3131
    %v3133 = vsel %vm3132, %v3125, %v3129
    %v3134 = vand.u32 2147483647, %v3109
    %vm3135 = vcmp.eq.f32.partialorder %v3134, 8.507059e+37
    %v3136 = vand.u32 %v3109, 2147483648
    %v3137 = vor.u32 1.1754944e-38, %v3136
    %v3138 = vsel %vm3135, %v3137, %v3133
    %v3139 = vmul.f32 1.0, %v3138
    %v3140 = vrcp.pop %v3110
    %v3141 = vmul.f32 %v3110, %v3140
    %v3142 = vsub.f32 1.0, %v3141
    %v3143 = vmul.f32 %v3140, %v3142
    %v3144 = vadd.f32 %v3140, %v3143
    %vm3145 = vweird.f32 %v3110
    %vm3146 = vweird.f32 %v3140
    %vm3147 = vmor %vm3145, %vm3146
    %v3148 = vsel %vm3147, %v3140, %v3144
    %v3149 = vand.u32 2147483647, %v3110
    %vm3150 = vcmp.eq.f32.partialorder %v3149, 8.507059e+37
    %v3151 = vand.u32 %v3110, 2147483648
    %v3152 = vor.u32 1.1754944e-38, %v3151
    %v3153 = vsel %vm3150, %v3152, %v3148
    %v3154 = vmul.f32 1.0, %v3153
    %v3155 = vrcp.pop %v3111
    %v3156 = vmul.f32 %v3111, %v3155
    %v3157 = vsub.f32 1.0, %v3156
    %v3158 = vmul.f32 %v3155, %v3157
    %v3159 = vadd.f32 %v3155, %v3158
    %vm3160 = vweird.f32 %v3111
    %vm3161 = vweird.f32 %v3155
    %vm3162 = vmor %vm3160, %vm3161
    %v3163 = vsel %vm3162, %v3155, %v3159
    %v3164 = vand.u32 2147483647, %v3111
    %vm3165 = vcmp.eq.f32.partialorder %v3164, 8.507059e+37
    %v3166 = vand.u32 %v3111, 2147483648
    %v3167 = vor.u32 1.1754944e-38, %v3166
    %v3168 = vsel %vm3165, %v3167, %v3163
    %v3169 = vmul.f32 1.0, %v3168
    %v3170 = vrcp.pop %v3112
    %v3171 = vmul.f32 %v3112, %v3170
    %v3172 = vsub.f32 1.0, %v3171
    %v3173 = vmul.f32 %v3170, %v3172
    %v3174 = vadd.f32 %v3170, %v3173
    %vm3175 = vweird.f32 %v3112
    %vm3176 = vweird.f32 %v3170
    %vm3177 = vmor %vm3175, %vm3176
    %v3178 = vsel %vm3177, %v3170, %v3174
    %v3179 = vand.u32 2147483647, %v3112
    %vm3180 = vcmp.eq.f32.partialorder %v3179, 8.507059e+37
    %v3181 = vand.u32 %v3112, 2147483648
    %v3182 = vor.u32 1.1754944e-38, %v3181
    %v3183 = vsel %vm3180, %v3182, %v3178
    %v3184 = vmul.f32 1.0, %v3183
    %v3185 = vrcp.pop %v3113
    %v3186 = vmul.f32 %v3113, %v3185
    %v3187 = vsub.f32 1.0, %v3186
    %v3188 = vmul.f32 %v3185, %v3187
    %v3189 = vadd.f32 %v3185, %v3188
    %vm3190 = vweird.f32 %v3113
    %vm3191 = vweird.f32 %v3185
    %vm3192 = vmor %vm3190, %vm3191
    %v3193 = vsel %vm3192, %v3185, %v3189
    %v3194 = vand.u32 2147483647, %v3113
    %vm3195 = vcmp.eq.f32.partialorder %v3194, 8.507059e+37
    %v3196 = vand.u32 %v3113, 2147483648
    %v3197 = vor.u32 1.1754944e-38, %v3196
    %v3198 = vsel %vm3195, %v3197, %v3193
    %v3199 = vmul.f32 1.0, %v3198
    %v3200 = vrcp.pop %v3114
    %v3201 = vmul.f32 %v3114, %v3200
    %v3202 = vsub.f32 1.0, %v3201
    %v3203 = vmul.f32 %v3200, %v3202
    %v3204 = vadd.f32 %v3200, %v3203
    %vm3205 = vweird.f32 %v3114
    %vm3206 = vweird.f32 %v3200
    %vm3207 = vmor %vm3205, %vm3206
    %v3208 = vsel %vm3207, %v3200, %v3204
    %v3209 = vand.u32 2147483647, %v3114
    %vm3210 = vcmp.eq.f32.partialorder %v3209, 8.507059e+37
    %v3211 = vand.u32 %v3114, 2147483648
    %v3212 = vor.u32 1.1754944e-38, %v3211
    %v3213 = vsel %vm3210, %v3212, %v3208
    %v3214 = vmul.f32 1.0, %v3213
    %v3215 = vrcp.pop %v3115
    %v3216 = vmul.f32 %v3115, %v3215
    %v3217 = vsub.f32 1.0, %v3216
    %v3218 = vmul.f32 %v3215, %v3217
    %v3219 = vadd.f32 %v3215, %v3218
    %vm3220 = vweird.f32 %v3115
    %vm3221 = vweird.f32 %v3215
    %vm3222 = vmor %vm3220, %vm3221
    %v3223 = vsel %vm3222, %v3215, %v3219
    %v3224 = vand.u32 2147483647, %v3115
    %vm3225 = vcmp.eq.f32.partialorder %v3224, 8.507059e+37
    %v3226 = vand.u32 %v3115, 2147483648
    %v3227 = vor.u32 1.1754944e-38, %v3226
    %v3228 = vsel %vm3225, %v3227, %v3223
    %v3229 = vmul.f32 1.0, %v3228
    %v3230 = vrcp.pop %v3116
    %v3231 = vmul.f32 %v3116, %v3230
    %v3232 = vsub.f32 1.0, %v3231
    %v3233 = vmul.f32 %v3230, %v3232
    %v3234 = vadd.f32 %v3230, %v3233
    %vm3235 = vweird.f32 %v3116
    %vm3236 = vweird.f32 %v3230
    %vm3237 = vmor %vm3235, %vm3236
    %v3238 = vsel %vm3237, %v3230, %v3234
    %v3239 = vand.u32 2147483647, %v3116
    %vm3240 = vcmp.eq.f32.partialorder %v3239, 8.507059e+37
    %v3241 = vand.u32 %v3116, 2147483648
    %v3242 = vor.u32 1.1754944e-38, %v3241
    %v3243 = vsel %vm3240, %v3242, %v3238
    %v3244 = vmul.f32 1.0, %v3243
    %v3245 = vrcp.pop %v3117
    %v3246 = vmul.f32 %v3117, %v3245
    %v3247 = vsub.f32 1.0, %v3246
    %v3248 = vmul.f32 %v3245, %v3247
    %v3249 = vadd.f32 %v3245, %v3248
    %vm3250 = vweird.f32 %v3117
    %vm3251 = vweird.f32 %v3245
    %vm3252 = vmor %vm3250, %vm3251
    %v3253 = vsel %vm3252, %v3245, %v3249
    %v3254 = vand.u32 2147483647, %v3117
    %vm3255 = vcmp.eq.f32.partialorder %v3254, 8.507059e+37
    %v3256 = vand.u32 %v3117, 2147483648
    %v3257 = vor.u32 1.1754944e-38, %v3256
    %v3258 = vsel %vm3255, %v3257, %v3253
    %v3259 = vmul.f32 1.0, %v3258
    %v3260 = vrcp.pop %v3118
    %v3261 = vmul.f32 %v3118, %v3260
    %v3262 = vsub.f32 1.0, %v3261
    %v3263 = vmul.f32 %v3260, %v3262
    %v3264 = vadd.f32 %v3260, %v3263
    %vm3265 = vweird.f32 %v3118
    %vm3266 = vweird.f32 %v3260
    %vm3267 = vmor %vm3265, %vm3266
    %v3268 = vsel %vm3267, %v3260, %v3264
    %v3269 = vand.u32 2147483647, %v3118
    %vm3270 = vcmp.eq.f32.partialorder %v3269, 8.507059e+37
    %v3271 = vand.u32 %v3118, 2147483648
    %v3272 = vor.u32 1.1754944e-38, %v3271
    %v3273 = vsel %vm3270, %v3272, %v3268
    %v3274 = vmul.f32 1.0, %v3273
    %v3275 = vrcp.pop %v3119
    %v3276 = vmul.f32 %v3119, %v3275
    %v3277 = vsub.f32 1.0, %v3276
    %v3278 = vmul.f32 %v3275, %v3277
    %v3279 = vadd.f32 %v3275, %v3278
    %vm3280 = vweird.f32 %v3119
    %vm3281 = vweird.f32 %v3275
    %vm3282 = vmor %vm3280, %vm3281
    %v3283 = vsel %vm3282, %v3275, %v3279
    %v3284 = vand.u32 2147483647, %v3119
    %vm3285 = vcmp.eq.f32.partialorder %v3284, 8.507059e+37
    %v3286 = vand.u32 %v3119, 2147483648
    %v3287 = vor.u32 1.1754944e-38, %v3286
    %v3288 = vsel %vm3285, %v3287, %v3283
    %v3289 = vmul.f32 1.0, %v3288
    %v3290 = vrcp.pop %v3120
    %v3291 = vmul.f32 %v3120, %v3290
    %v3292 = vsub.f32 1.0, %v3291
    %v3293 = vmul.f32 %v3290, %v3292
    %v3294 = vadd.f32 %v3290, %v3293
    %vm3295 = vweird.f32 %v3120
    %vm3296 = vweird.f32 %v3290
    %vm3297 = vmor %vm3295, %vm3296
    %v3298 = vsel %vm3297, %v3290, %v3294
    %v3299 = vand.u32 2147483647, %v3120
    %vm3300 = vcmp.eq.f32.partialorder %v3299, 8.507059e+37
    %v3301 = vand.u32 %v3120, 2147483648
    %v3302 = vor.u32 1.1754944e-38, %v3301
    %v3303 = vsel %vm3300, %v3302, %v3298
    %v3304 = vmul.f32 1.0, %v3303
    %v3305 = vrcp.pop %v3121
    %v3306 = vmul.f32 %v3121, %v3305
    %v3307 = vsub.f32 1.0, %v3306
    %v3308 = vmul.f32 %v3305, %v3307
    %v3309 = vadd.f32 %v3305, %v3308
    %vm3310 = vweird.f32 %v3121
    %vm3311 = vweird.f32 %v3305
    %vm3312 = vmor %vm3310, %vm3311
    %v3313 = vsel %vm3312, %v3305, %v3309
    %v3314 = vand.u32 2147483647, %v3121
    %vm3315 = vcmp.eq.f32.partialorder %v3314, 8.507059e+37
    %v3316 = vand.u32 %v3121, 2147483648
    %v3317 = vor.u32 1.1754944e-38, %v3316
    %v3318 = vsel %vm3315, %v3317, %v3313
    %v3319 = vmul.f32 1.0, %v3318
    %v3320 = vrcp.pop %v3122
    %v3321 = vmul.f32 %v3122, %v3320
    %v3322 = vsub.f32 1.0, %v3321
    %v3323 = vmul.f32 %v3320, %v3322
    %v3324 = vadd.f32 %v3320, %v3323
    %vm3325 = vweird.f32 %v3122
    %vm3326 = vweird.f32 %v3320
    %vm3327 = vmor %vm3325, %vm3326
    %v3328 = vsel %vm3327, %v3320, %v3324
    %v3329 = vand.u32 2147483647, %v3122
    %vm3330 = vcmp.eq.f32.partialorder %v3329, 8.507059e+37
    %v3331 = vand.u32 %v3122, 2147483648
    %v3332 = vor.u32 1.1754944e-38, %v3331
    %v3333 = vsel %vm3330, %v3332, %v3328
    %v3334 = vmul.f32 1.0, %v3333
    %v3335 = vrcp.pop %v3123
    %v3336 = vmul.f32 %v3123, %v3335
    %v3337 = vsub.f32 1.0, %v3336
    %v3338 = vmul.f32 %v3335, %v3337
    %v3339 = vadd.f32 %v3335, %v3338
    %vm3340 = vweird.f32 %v3123
    %vm3341 = vweird.f32 %v3335
    %vm3342 = vmor %vm3340, %vm3341
    %v3343 = vsel %vm3342, %v3335, %v3339
    %v3344 = vand.u32 2147483647, %v3123
    %vm3345 = vcmp.eq.f32.partialorder %v3344, 8.507059e+37
    %v3346 = vand.u32 %v3123, 2147483648
    %v3347 = vor.u32 1.1754944e-38, %v3346
    %v3348 = vsel %vm3345, %v3347, %v3343
    %v3349 = vmul.f32 1.0, %v3348
    %v3350 = vrcp.pop %v3124
    %v3351 = vmul.f32 %v3124, %v3350
    %v3352 = vsub.f32 1.0, %v3351
    %v3353 = vmul.f32 %v3350, %v3352
    %v3354 = vadd.f32 %v3350, %v3353
    %vm3355 = vweird.f32 %v3124
    %vm3356 = vweird.f32 %v3350
    %vm3357 = vmor %vm3355, %vm3356
    %v3358 = vsel %vm3357, %v3350, %v3354
    %v3359 = vand.u32 2147483647, %v3124
    %vm3360 = vcmp.eq.f32.partialorder %v3359, 8.507059e+37
    %v3361 = vand.u32 %v3124, 2147483648
    %v3362 = vor.u32 1.1754944e-38, %v3361
    %v3363 = vsel %vm3360, %v3362, %v3358
    %v3364 = vmul.f32 1.0, %v3363
    %v3365 = vtanh.pop %v2695
    %v3366 = vtanh.pop %v2699
    %v3367 = vtanh.pop %v2703
    %v3368 = vtanh.pop %v2707
    %v3369 = vtanh.pop %v2711
    %v3370 = vtanh.pop %v2715
    %v3371 = vtanh.pop %v2719
    %v3372 = vtanh.pop %v2723
    %v3373 = vtanh.pop %v2727
    %v3374 = vtanh.pop %v2731
    %v3375 = vtanh.pop %v2735
    %v3376 = vtanh.pop %v2739
    %v3377 = vtanh.pop %v2743
    %v3378 = vtanh.pop %v2747
    %v3379 = vtanh.pop %v2751
    %v3380 = vtanh.pop %v2755
    %v3381 = vxor.u32 %v2696, 2147483648
    %v3382 = vxor.u32 %v2700, 2147483648
    %v3383 = vxor.u32 %v2704, 2147483648
    %v3384 = vxor.u32 %v2708, 2147483648
    %v3385 = vxor.u32 %v2712, 2147483648
    %v3386 = vxor.u32 %v2716, 2147483648
    %v3387 = vxor.u32 %v2720, 2147483648
    %v3388 = vxor.u32 %v2724, 2147483648
    %v3389 = vxor.u32 %v2728, 2147483648
    %v3390 = vxor.u32 %v2732, 2147483648
    %v3391 = vxor.u32 %v2736, 2147483648
    %v3392 = vxor.u32 %v2740, 2147483648
    %v3393 = vxor.u32 %v2744, 2147483648
    %v3394 = vxor.u32 %v2748, 2147483648
    %v3395 = vxor.u32 %v2752, 2147483648
    %v3396 = vxor.u32 %v2756, 2147483648
    %v3397 = vmul.f32 %v3381, 1.442695
    %v3398 = vpow.pop %v3397
    %v3399 = vmul.f32 %v3382, 1.442695
    %v3400 = vpow.pop %v3399
    %v3401 = vmul.f32 %v3383, 1.442695
    %v3402 = vpow.pop %v3401
    %v3403 = vmul.f32 %v3384, 1.442695
    %v3404 = vpow.pop %v3403
    %v3405 = vmul.f32 %v3385, 1.442695
    %v3406 = vpow.pop %v3405
    %v3407 = vmul.f32 %v3386, 1.442695
    %v3408 = vpow.pop %v3407
    %v3409 = vmul.f32 %v3387, 1.442695
    %v3410 = vpow.pop %v3409
    %v3411 = vmul.f32 %v3388, 1.442695
    %v3412 = vpow.pop %v3411
    %v3413 = vmul.f32 %v3389, 1.442695
    %v3414 = vpow.pop %v3413
    %v3415 = vmul.f32 %v3390, 1.442695
    %v3416 = vpow.pop %v3415
    %v3417 = vmul.f32 %v3391, 1.442695
    %v3418 = vpow.pop %v3417
    %v3419 = vmul.f32 %v3392, 1.442695
    %v3420 = vpow.pop %v3419
    %v3421 = vmul.f32 %v3393, 1.442695
    %v3422 = vpow.pop %v3421
    %v3423 = vmul.f32 %v3394, 1.442695
    %v3424 = vpow.pop %v3423
    %v3425 = vmul.f32 %v3395, 1.442695
    %v3426 = vpow.pop %v3425
    %v3427 = vmul.f32 %v3396, 1.442695
    %v3428 = vpow.pop %v3427
    %v3429 = vadd.f32 %v3398, 1.0
    %v3430 = vadd.f32 %v3400, 1.0
    %v3431 = vadd.f32 %v3402, 1.0
    %v3432 = vadd.f32 %v3404, 1.0
    %v3433 = vadd.f32 %v3406, 1.0
    %v3434 = vadd.f32 %v3408, 1.0
    %v3435 = vadd.f32 %v3410, 1.0
    %v3436 = vadd.f32 %v3412, 1.0
    %v3437 = vadd.f32 %v3414, 1.0
    %v3438 = vadd.f32 %v3416, 1.0
    %v3439 = vadd.f32 %v3418, 1.0
    %v3440 = vadd.f32 %v3420, 1.0
    %v3441 = vadd.f32 %v3422, 1.0
    %v3442 = vadd.f32 %v3424, 1.0
    %v3443 = vadd.f32 %v3426, 1.0
    %v3444 = vadd.f32 %v3428, 1.0
    %v3445 = vrcp.pop %v3429
    %v3446 = vmul.f32 %v3429, %v3445
    %v3447 = vsub.f32 1.0, %v3446
    %v3448 = vmul.f32 %v3445, %v3447
    %v3449 = vadd.f32 %v3445, %v3448
    %vm3450 = vweird.f32 %v3429
    %vm3451 = vweird.f32 %v3445
    %vm3452 = vmor %vm3450, %vm3451
    %v3453 = vsel %vm3452, %v3445, %v3449
    %v3454 = vand.u32 2147483647, %v3429
    %vm3455 = vcmp.eq.f32.partialorder %v3454, 8.507059e+37
    %v3456 = vand.u32 %v3429, 2147483648
    %v3457 = vor.u32 1.1754944e-38, %v3456
    %v3458 = vsel %vm3455, %v3457, %v3453
    %v3459 = vmul.f32 1.0, %v3458
    %v3460 = vrcp.pop %v3430
    %v3461 = vmul.f32 %v3430, %v3460
    %v3462 = vsub.f32 1.0, %v3461
    %v3463 = vmul.f32 %v3460, %v3462
    %v3464 = vadd.f32 %v3460, %v3463
    %vm3465 = vweird.f32 %v3430
    %vm3466 = vweird.f32 %v3460
    %vm3467 = vmor %vm3465, %vm3466
    %v3468 = vsel %vm3467, %v3460, %v3464
    %v3469 = vand.u32 2147483647, %v3430
    %vm3470 = vcmp.eq.f32.partialorder %v3469, 8.507059e+37
    %v3471 = vand.u32 %v3430, 2147483648
    %v3472 = vor.u32 1.1754944e-38, %v3471
    %v3473 = vsel %vm3470, %v3472, %v3468
    %v3474 = vmul.f32 1.0, %v3473
    %v3475 = vrcp.pop %v3431
    %v3476 = vmul.f32 %v3431, %v3475
    %v3477 = vsub.f32 1.0, %v3476
    %v3478 = vmul.f32 %v3475, %v3477
    %v3479 = vadd.f32 %v3475, %v3478
    %vm3480 = vweird.f32 %v3431
    %vm3481 = vweird.f32 %v3475
    %vm3482 = vmor %vm3480, %vm3481
    %v3483 = vsel %vm3482, %v3475, %v3479
    %v3484 = vand.u32 2147483647, %v3431
    %vm3485 = vcmp.eq.f32.partialorder %v3484, 8.507059e+37
    %v3486 = vand.u32 %v3431, 2147483648
    %v3487 = vor.u32 1.1754944e-38, %v3486
    %v3488 = vsel %vm3485, %v3487, %v3483
    %v3489 = vmul.f32 1.0, %v3488
    %v3490 = vrcp.pop %v3432
    %v3491 = vmul.f32 %v3432, %v3490
    %v3492 = vsub.f32 1.0, %v3491
    %v3493 = vmul.f32 %v3490, %v3492
    %v3494 = vadd.f32 %v3490, %v3493
    %vm3495 = vweird.f32 %v3432
    %vm3496 = vweird.f32 %v3490
    %vm3497 = vmor %vm3495, %vm3496
    %v3498 = vsel %vm3497, %v3490, %v3494
    %v3499 = vand.u32 2147483647, %v3432
    %vm3500 = vcmp.eq.f32.partialorder %v3499, 8.507059e+37
    %v3501 = vand.u32 %v3432, 2147483648
    %v3502 = vor.u32 1.1754944e-38, %v3501
    %v3503 = vsel %vm3500, %v3502, %v3498
    %v3504 = vmul.f32 1.0, %v3503
    %v3505 = vrcp.pop %v3433
    %v3506 = vmul.f32 %v3433, %v3505
    %v3507 = vsub.f32 1.0, %v3506
    %v3508 = vmul.f32 %v3505, %v3507
    %v3509 = vadd.f32 %v3505, %v3508
    %vm3510 = vweird.f32 %v3433
    %vm3511 = vweird.f32 %v3505
    %vm3512 = vmor %vm3510, %vm3511
    %v3513 = vsel %vm3512, %v3505, %v3509
    %v3514 = vand.u32 2147483647, %v3433
    %vm3515 = vcmp.eq.f32.partialorder %v3514, 8.507059e+37
    %v3516 = vand.u32 %v3433, 2147483648
    %v3517 = vor.u32 1.1754944e-38, %v3516
    %v3518 = vsel %vm3515, %v3517, %v3513
    %v3519 = vmul.f32 1.0, %v3518
    %v3520 = vrcp.pop %v3434
    %v3521 = vmul.f32 %v3434, %v3520
    %v3522 = vsub.f32 1.0, %v3521
    %v3523 = vmul.f32 %v3520, %v3522
    %v3524 = vadd.f32 %v3520, %v3523
    %vm3525 = vweird.f32 %v3434
    %vm3526 = vweird.f32 %v3520
    %vm3527 = vmor %vm3525, %vm3526
    %v3528 = vsel %vm3527, %v3520, %v3524
    %v3529 = vand.u32 2147483647, %v3434
    %vm3530 = vcmp.eq.f32.partialorder %v3529, 8.507059e+37
    %v3531 = vand.u32 %v3434, 2147483648
    %v3532 = vor.u32 1.1754944e-38, %v3531
    %v3533 = vsel %vm3530, %v3532, %v3528
    %v3534 = vmul.f32 1.0, %v3533
    %v3535 = vrcp.pop %v3435
    %v3536 = vmul.f32 %v3435, %v3535
    %v3537 = vsub.f32 1.0, %v3536
    %v3538 = vmul.f32 %v3535, %v3537
    %v3539 = vadd.f32 %v3535, %v3538
    %vm3540 = vweird.f32 %v3435
    %vm3541 = vweird.f32 %v3535
    %vm3542 = vmor %vm3540, %vm3541
    %v3543 = vsel %vm3542, %v3535, %v3539
    %v3544 = vand.u32 2147483647, %v3435
    %vm3545 = vcmp.eq.f32.partialorder %v3544, 8.507059e+37
    %v3546 = vand.u32 %v3435, 2147483648
    %v3547 = vor.u32 1.1754944e-38, %v3546
    %v3548 = vsel %vm3545, %v3547, %v3543
    %v3549 = vmul.f32 1.0, %v3548
    %v3550 = vrcp.pop %v3436
    %v3551 = vmul.f32 %v3436, %v3550
    %v3552 = vsub.f32 1.0, %v3551
    %v3553 = vmul.f32 %v3550, %v3552
    %v3554 = vadd.f32 %v3550, %v3553
    %vm3555 = vweird.f32 %v3436
    %vm3556 = vweird.f32 %v3550
    %vm3557 = vmor %vm3555, %vm3556
    %v3558 = vsel %vm3557, %v3550, %v3554
    %v3559 = vand.u32 2147483647, %v3436
    %vm3560 = vcmp.eq.f32.partialorder %v3559, 8.507059e+37
    %v3561 = vand.u32 %v3436, 2147483648
    %v3562 = vor.u32 1.1754944e-38, %v3561
    %v3563 = vsel %vm3560, %v3562, %v3558
    %v3564 = vmul.f32 1.0, %v3563
    %v3565 = vrcp.pop %v3437
    %v3566 = vmul.f32 %v3437, %v3565
    %v3567 = vsub.f32 1.0, %v3566
    %v3568 = vmul.f32 %v3565, %v3567
    %v3569 = vadd.f32 %v3565, %v3568
    %vm3570 = vweird.f32 %v3437
    %vm3571 = vweird.f32 %v3565
    %vm3572 = vmor %vm3570, %vm3571
    %v3573 = vsel %vm3572, %v3565, %v3569
    %v3574 = vand.u32 2147483647, %v3437
    %vm3575 = vcmp.eq.f32.partialorder %v3574, 8.507059e+37
    %v3576 = vand.u32 %v3437, 2147483648
    %v3577 = vor.u32 1.1754944e-38, %v3576
    %v3578 = vsel %vm3575, %v3577, %v3573
    %v3579 = vmul.f32 1.0, %v3578
    %v3580 = vrcp.pop %v3438
    %v3581 = vmul.f32 %v3438, %v3580
    %v3582 = vsub.f32 1.0, %v3581
    %v3583 = vmul.f32 %v3580, %v3582
    %v3584 = vadd.f32 %v3580, %v3583
    %vm3585 = vweird.f32 %v3438
    %vm3586 = vweird.f32 %v3580
    %vm3587 = vmor %vm3585, %vm3586
    %v3588 = vsel %vm3587, %v3580, %v3584
    %v3589 = vand.u32 2147483647, %v3438
    %vm3590 = vcmp.eq.f32.partialorder %v3589, 8.507059e+37
    %v3591 = vand.u32 %v3438, 2147483648
    %v3592 = vor.u32 1.1754944e-38, %v3591
    %v3593 = vsel %vm3590, %v3592, %v3588
    %v3594 = vmul.f32 1.0, %v3593
    %v3595 = vrcp.pop %v3439
    %v3596 = vmul.f32 %v3439, %v3595
    %v3597 = vsub.f32 1.0, %v3596
    %v3598 = vmul.f32 %v3595, %v3597
    %v3599 = vadd.f32 %v3595, %v3598
    %vm3600 = vweird.f32 %v3439
    %vm3601 = vweird.f32 %v3595
    %vm3602 = vmor %vm3600, %vm3601
    %v3603 = vsel %vm3602, %v3595, %v3599
    %v3604 = vand.u32 2147483647, %v3439
    %vm3605 = vcmp.eq.f32.partialorder %v3604, 8.507059e+37
    %v3606 = vand.u32 %v3439, 2147483648
    %v3607 = vor.u32 1.1754944e-38, %v3606
    %v3608 = vsel %vm3605, %v3607, %v3603
    %v3609 = vmul.f32 1.0, %v3608
    %v3610 = vrcp.pop %v3440
    %v3611 = vmul.f32 %v3440, %v3610
    %v3612 = vsub.f32 1.0, %v3611
    %v3613 = vmul.f32 %v3610, %v3612
    %v3614 = vadd.f32 %v3610, %v3613
    %vm3615 = vweird.f32 %v3440
    %vm3616 = vweird.f32 %v3610
    %vm3617 = vmor %vm3615, %vm3616
    %v3618 = vsel %vm3617, %v3610, %v3614
    %v3619 = vand.u32 2147483647, %v3440
    %vm3620 = vcmp.eq.f32.partialorder %v3619, 8.507059e+37
    %v3621 = vand.u32 %v3440, 2147483648
    %v3622 = vor.u32 1.1754944e-38, %v3621
    %v3623 = vsel %vm3620, %v3622, %v3618
    %v3624 = vmul.f32 1.0, %v3623
    %v3625 = vrcp.pop %v3441
    %v3626 = vmul.f32 %v3441, %v3625
    %v3627 = vsub.f32 1.0, %v3626
    %v3628 = vmul.f32 %v3625, %v3627
    %v3629 = vadd.f32 %v3625, %v3628
    %vm3630 = vweird.f32 %v3441
    %vm3631 = vweird.f32 %v3625
    %vm3632 = vmor %vm3630, %vm3631
    %v3633 = vsel %vm3632, %v3625, %v3629
    %v3634 = vand.u32 2147483647, %v3441
    %vm3635 = vcmp.eq.f32.partialorder %v3634, 8.507059e+37
    %v3636 = vand.u32 %v3441, 2147483648
    %v3637 = vor.u32 1.1754944e-38, %v3636
    %v3638 = vsel %vm3635, %v3637, %v3633
    %v3639 = vmul.f32 1.0, %v3638
    %v3640 = vrcp.pop %v3442
    %v3641 = vmul.f32 %v3442, %v3640
    %v3642 = vsub.f32 1.0, %v3641
    %v3643 = vmul.f32 %v3640, %v3642
    %v3644 = vadd.f32 %v3640, %v3643
    %vm3645 = vweird.f32 %v3442
    %vm3646 = vweird.f32 %v3640
    %vm3647 = vmor %vm3645, %vm3646
    %v3648 = vsel %vm3647, %v3640, %v3644
    %v3649 = vand.u32 2147483647, %v3442
    %vm3650 = vcmp.eq.f32.partialorder %v3649, 8.507059e+37
    %v3651 = vand.u32 %v3442, 2147483648
    %v3652 = vor.u32 1.1754944e-38, %v3651
    %v3653 = vsel %vm3650, %v3652, %v3648
    %v3654 = vmul.f32 1.0, %v3653
    %v3655 = vrcp.pop %v3443
    %v3656 = vmul.f32 %v3443, %v3655
    %v3657 = vsub.f32 1.0, %v3656
    %v3658 = vmul.f32 %v3655, %v3657
    %v3659 = vadd.f32 %v3655, %v3658
    %vm3660 = vweird.f32 %v3443
    %vm3661 = vweird.f32 %v3655
    %vm3662 = vmor %vm3660, %vm3661
    %v3663 = vsel %vm3662, %v3655, %v3659
    %v3664 = vand.u32 2147483647, %v3443
    %vm3665 = vcmp.eq.f32.partialorder %v3664, 8.507059e+37
    %v3666 = vand.u32 %v3443, 2147483648
    %v3667 = vor.u32 1.1754944e-38, %v3666
    %v3668 = vsel %vm3665, %v3667, %v3663
    %v3669 = vmul.f32 1.0, %v3668
    %v3670 = vrcp.pop %v3444
    %v3671 = vmul.f32 %v3444, %v3670
    %v3672 = vsub.f32 1.0, %v3671
    %v3673 = vmul.f32 %v3670, %v3672
    %v3674 = vadd.f32 %v3670, %v3673
    %vm3675 = vweird.f32 %v3444
    %vm3676 = vweird.f32 %v3670
    %vm3677 = vmor %vm3675, %vm3676
    %v3678 = vsel %vm3677, %v3670, %v3674
    %v3679 = vand.u32 2147483647, %v3444
    %vm3680 = vcmp.eq.f32.partialorder %v3679, 8.507059e+37
    %v3681 = vand.u32 %v3444, 2147483648
    %v3682 = vor.u32 1.1754944e-38, %v3681
    %v3683 = vsel %vm3680, %v3682, %v3678
    %v3684 = vmul.f32 1.0, %v3683
    %v3685 = vmul.f32 %v3139, %v1875
    %v3686 = vmul.f32 %v3154, %v1876
    %v3687 = vmul.f32 %v3169, %v1877
    %v3688 = vmul.f32 %v3184, %v1878
    %v3689 = vmul.f32 %v3199, %v1879
    %v3690 = vmul.f32 %v3214, %v1880
    %v3691 = vmul.f32 %v3229, %v1881
    %v3692 = vmul.f32 %v3244, %v1882
    %v3693 = vmul.f32 %v3259, %v1883
    %v3694 = vmul.f32 %v3274, %v1884
    %v3695 = vmul.f32 %v3289, %v1885
    %v3696 = vmul.f32 %v3304, %v1886
    %v3697 = vmul.f32 %v3319, %v1887
    %v3698 = vmul.f32 %v3334, %v1888
    %v3699 = vmul.f32 %v3349, %v1889
    %v3700 = vmul.f32 %v3364, %v1890
    %v3701 = vmul.f32 %v2835, %v3365
    %v3702 = vmul.f32 %v2850, %v3366
    %v3703 = vmul.f32 %v2865, %v3367
    %v3704 = vmul.f32 %v2880, %v3368
    %v3705 = vmul.f32 %v2895, %v3369
    %v3706 = vmul.f32 %v2910, %v3370
    %v3707 = vmul.f32 %v2925, %v3371
    %v3708 = vmul.f32 %v2940, %v3372
    %v3709 = vmul.f32 %v2955, %v3373
    %v3710 = vmul.f32 %v2970, %v3374
    %v3711 = vmul.f32 %v2985, %v3375
    %v3712 = vmul.f32 %v3000, %v3376
    %v3713 = vmul.f32 %v3015, %v3377
    %v3714 = vmul.f32 %v3030, %v3378
    %v3715 = vmul.f32 %v3045, %v3379
    %v3716 = vmul.f32 %v3060, %v3380
    %v3717 = vadd.f32 %v3685, %v3701
    %v3718 = vadd.f32 %v3686, %v3702
    %v3719 = vadd.f32 %v3687, %v3703
    %v3720 = vadd.f32 %v3688, %v3704
    %v3721 = vadd.f32 %v3689, %v3705
    %v3722 = vadd.f32 %v3690, %v3706
    %v3723 = vadd.f32 %v3691, %v3707
    %v3724 = vadd.f32 %v3692, %v3708
    %v3725 = vadd.f32 %v3693, %v3709
    %v3726 = vadd.f32 %v3694, %v3710
    %v3727 = vadd.f32 %v3695, %v3711
    %v3728 = vadd.f32 %v3696, %v3712
    %v3729 = vadd.f32 %v3697, %v3713
    %v3730 = vadd.f32 %v3698, %v3714
    %v3731 = vadd.f32 %v3699, %v3715
    %v3732 = vadd.f32 %v3700, %v3716
    %v3733 = vtanh.pop %v3717
    %v3734 = vtanh.pop %v3718
    %v3735 = vtanh.pop %v3719
    %v3736 = vtanh.pop %v3720
    %v3737 = vtanh.pop %v3721
    %v3738 = vtanh.pop %v3722
    %v3739 = vtanh.pop %v3723
    %v3740 = vtanh.pop %v3724
    %v3741 = vtanh.pop %v3725
    %v3742 = vtanh.pop %v3726
    %v3743 = vtanh.pop %v3727
    %v3744 = vtanh.pop %v3728
    %v3745 = vtanh.pop %v3729
    %v3746 = vtanh.pop %v3730
    %v3747 = vtanh.pop %v3731
    %v3748 = vtanh.pop %v3732
    %v3749 = vmul.f32 %v3459, %v3733
    %v3750 = vmul.f32 %v3474, %v3734
    %v3751 = vmul.f32 %v3489, %v3735
    %v3752 = vmul.f32 %v3504, %v3736
    %v3753 = vmul.f32 %v3519, %v3737
    %v3754 = vmul.f32 %v3534, %v3738
    %v3755 = vmul.f32 %v3549, %v3739
    %v3756 = vmul.f32 %v3564, %v3740
    %v3757 = vmul.f32 %v3579, %v3741
    %v3758 = vmul.f32 %v3594, %v3742
    %v3759 = vmul.f32 %v3609, %v3743
    %v3760 = vmul.f32 %v3624, %v3744
    %v3761 = vmul.f32 %v3639, %v3745
    %v3762 = vmul.f32 %v3654, %v3746
    %v3763 = vmul.f32 %v3669, %v3747
    %v3764 = vmul.f32 %v3684, %v3748
    %3765 = vst [vmem:[%s19] sm:$0xff] %v3749
    %3766 = vst [vmem:[%s19 + $0x8] sm:$0xff] %v3750
    %3767 = vst [vmem:[%s19 + $0x10] sm:$0xff] %v3751
    %3768 = vst [vmem:[%s19 + $0x18] sm:$0xff] %v3752
    %3769 = vst [vmem:[%s19 + $0x20] sm:$0xff] %v3753
    %3770 = vst [vmem:[%s19 + $0x28] sm:$0xff] %v3754
    %3771 = vst [vmem:[%s19 + $0x30] sm:$0xff] %v3755
    %3772 = vst [vmem:[%s19 + $0x38] sm:$0xff] %v3756
    %3773 = vst [vmem:[%s19 + $0x40] sm:$0xff] %v3757
    %3774 = vst [vmem:[%s19 + $0x48] sm:$0xff] %v3758
    %3775 = vst [vmem:[%s19 + $0x50] sm:$0xff] %v3759
    %3776 = vst [vmem:[%s19 + $0x58] sm:$0xff] %v3760
    %3777 = vst [vmem:[%s19 + $0x60] sm:$0xff] %v3761
    %3778 = vst [vmem:[%s19 + $0x68] sm:$0xff] %v3762
    %3779 = vst [vmem:[%s19 + $0x70] sm:$0xff] %v3763
    %3780 = vst [vmem:[%s19 + $0x78] sm:$0xff] %v3764
    %3781 = vst [vmem:[%s20] sm:$0xff] %v3717
    %3782 = vst [vmem:[%s20 + $0x8] sm:$0xff] %v3718
    %3783 = vst [vmem:[%s20 + $0x10] sm:$0xff] %v3719
    %3784 = vst [vmem:[%s20 + $0x18] sm:$0xff] %v3720
    %3785 = vst [vmem:[%s20 + $0x20] sm:$0xff] %v3721
    %3786 = vst [vmem:[%s20 + $0x28] sm:$0xff] %v3722
    %3787 = vst [vmem:[%s20 + $0x30] sm:$0xff] %v3723
    %3788 = vst [vmem:[%s20 + $0x38] sm:$0xff] %v3724
    %3789 = vst [vmem:[%s20 + $0x40] sm:$0xff] %v3725
    %3790 = vst [vmem:[%s20 + $0x48] sm:$0xff] %v3726
    %3791 = vst [vmem:[%s20 + $0x50] sm:$0xff] %v3727
    %3792 = vst [vmem:[%s20 + $0x58] sm:$0xff] %v3728
    %3793 = vst [vmem:[%s20 + $0x60] sm:$0xff] %v3729
    %3794 = vst [vmem:[%s20 + $0x68] sm:$0xff] %v3730
    %3795 = vst [vmem:[%s20 + $0x70] sm:$0xff] %v3731
    %3796 = vst [vmem:[%s20 + $0x78] sm:$0xff] %v3732
    %v3797 = vmax.f32 %v3749, 0.0
    %v3798 = vmax.f32 %v3750, 0.0
    %v3799 = vmax.f32 %v3751, 0.0
    %v3800 = vmax.f32 %v3752, 0.0
    %v3801 = vmax.f32 %v3753, 0.0
    %v3802 = vmax.f32 %v3754, 0.0
    %v3803 = vmax.f32 %v3755, 0.0
    %v3804 = vmax.f32 %v3756, 0.0
    %v3805 = vmax.f32 %v3757, 0.0
    %v3806 = vmax.f32 %v3758, 0.0
    %v3807 = vmax.f32 %v3759, 0.0
    %v3808 = vmax.f32 %v3760, 0.0
    %v3809 = vmax.f32 %v3761, 0.0
    %v3810 = vmax.f32 %v3762, 0.0
    %v3811 = vmax.f32 %v3763, 0.0
    %v3812 = vmax.f32 %v3764, 0.0
    %v3813 = vpack.c.bf16 %v3798, %v3797
    %v3814 = vpack.c.bf16 %v3800, %v3799
    %v3815 = vpack.c.bf16 %v3802, %v3801
    %v3816 = vpack.c.bf16 %v3804, %v3803
    %v3817 = vpack.c.bf16 %v3806, %v3805
    %v3818 = vpack.c.bf16 %v3808, %v3807
    %v3819 = vpack.c.bf16 %v3810, %v3809
    %v3820 = vpack.c.bf16 %v3812, %v3811
    %v3821 = vld [vmem:[%s16] sm:$0xf]
    %v3822 = vld [vmem:[%s16 + $0x4] sm:$0xf]
    %v3823 = vld [vmem:[%s16 + $0x8] sm:$0xf]
    %v3824 = vld [vmem:[%s16 + $0xc] sm:$0xf]
    %v3825 = vld [vmem:[%s16 + $0x10] sm:$0xf]
    %v3826 = vld [vmem:[%s16 + $0x14] sm:$0xf]
    %v3827 = vld [vmem:[%s16 + $0x18] sm:$0xf]
    %v3828 = vld [vmem:[%s16 + $0x1c] sm:$0xf]
    %v3829 = vld [vmem:[%s16 + $0x20] sm:$0xf]
    %v3830 = vld [vmem:[%s16 + $0x24] sm:$0xf]
    %v3831 = vld [vmem:[%s16 + $0x28] sm:$0xf]
    %v3832 = vld [vmem:[%s16 + $0x2c] sm:$0xf]
    %v3833 = vld [vmem:[%s16 + $0x30] sm:$0xf]
    %v3834 = vld [vmem:[%s16 + $0x34] sm:$0xf]
    %v3835 = vld [vmem:[%s16 + $0x38] sm:$0xf]
    %v3836 = vld [vmem:[%s16 + $0x3c] sm:$0xf]
    %v3837 = vld [vmem:[%s17] sm:$0x1]
    %v3839 = vperm.slane %v3837, 0
    %v3857 = vunpack.c.l.b16 %v3821
    %v3858 = vunpack.c.l.b16 %v3822
    %v3859 = vunpack.c.l.b16 %v3823
    %v3860 = vunpack.c.l.b16 %v3824
    %v3861 = vunpack.c.l.b16 %v3825
    %v3862 = vunpack.c.l.b16 %v3826
    %v3863 = vunpack.c.l.b16 %v3827
    %v3864 = vunpack.c.l.b16 %v3828
    %v3865 = vunpack.c.l.b16 %v3829
    %v3866 = vunpack.c.l.b16 %v3830
    %v3867 = vunpack.c.l.b16 %v3831
    %v3868 = vunpack.c.l.b16 %v3832
    %v3869 = vunpack.c.l.b16 %v3833
    %v3870 = vunpack.c.l.b16 %v3834
    %v3871 = vunpack.c.l.b16 %v3835
    %v3872 = vunpack.c.l.b16 %v3836
    %v3873 = vpack.c.b16 %v3858, %v3857
    %v3874 = vpack.c.b16 %v3860, %v3859
    %v3875 = vpack.c.b16 %v3862, %v3861
    %v3876 = vpack.c.b16 %v3864, %v3863
    %v3877 = vpack.c.b16 %v3866, %v3865
    %v3878 = vpack.c.b16 %v3868, %v3867
    %v3879 = vpack.c.b16 %v3870, %v3869
    %v3880 = vpack.c.b16 %v3872, %v3871
    %3889 = vmatpush.bf16.msra.mxu0 %v3880
    %3890 = vmatpush.bf16.msra.mxu0 %v3879
    %3891 = vmatpush.bf16.msra.mxu0 %v3878
    %3892 = vmatpush.bf16.msra.mxu0 %v3877
    %3893 = vmatpush.bf16.msra.mxu0 %v3876
    %3894 = vmatpush.bf16.msra.mxu0 %v3875
    %3895 = vmatpush.bf16.msra.mxu0 %v3874
    %3896 = vmatpush.bf16.msra.mxu0 %v3873
    %3897 = vmatmul.bf16.gmra.mxu0 %v3813
    %v3898 = vpop.f32.mrf.mxu0
    %v3899 = vadd.f32 %v3839, %v3898
    %v3900 = vpop.f32.mrf.mxu0
    %v3901 = vadd.f32 %v3839, %v3900
    %3902 = vmatmul.bf16.gmra.mxu0 %v3814
    %v3903 = vpop.f32.mrf.mxu0
    %v3904 = vadd.f32 %v3839, %v3903
    %v3905 = vpop.f32.mrf.mxu0
    %v3906 = vadd.f32 %v3839, %v3905
    %3907 = vmatmul.bf16.gmra.mxu0 %v3815
    %v3908 = vpop.f32.mrf.mxu0
    %v3909 = vadd.f32 %v3839, %v3908
    %v3910 = vpop.f32.mrf.mxu0
    %v3911 = vadd.f32 %v3839, %v3910
    %3912 = vmatmul.bf16.gmra.mxu0 %v3816
    %v3913 = vpop.f32.mrf.mxu0
    %v3914 = vadd.f32 %v3839, %v3913
    %v3915 = vpop.f32.mrf.mxu0
    %v3916 = vadd.f32 %v3839, %v3915
    %3917 = vmatmul.bf16.gmra.mxu0 %v3817
    %v3918 = vpop.f32.mrf.mxu0
    %v3919 = vadd.f32 %v3839, %v3918
    %v3920 = vpop.f32.mrf.mxu0
    %v3921 = vadd.f32 %v3839, %v3920
    %3922 = vmatmul.bf16.gmra.mxu0 %v3818
    %v3923 = vpop.f32.mrf.mxu0
    %v3924 = vadd.f32 %v3839, %v3923
    %v3925 = vpop.f32.mrf.mxu0
    %v3926 = vadd.f32 %v3839, %v3925
    %3927 = vmatmul.bf16.gmra.mxu0 %v3819
    %v3928 = vpop.f32.mrf.mxu0
    %v3929 = vadd.f32 %v3839, %v3928
    %v3930 = vpop.f32.mrf.mxu0
    %v3931 = vadd.f32 %v3839, %v3930
    %3932 = vmatmul.bf16.gmra.mxu0 %v3820
    %v3933 = vpop.f32.mrf.mxu0
    %v3934 = vadd.f32 %v3839, %v3933
    %v3935 = vpop.f32.mrf.mxu0
    %v3936 = vadd.f32 %v3839, %v3935
    %3937 = vdwg.mxu0
    %3938 = vst [vmem:[%s18] sm:$0xff] %v3899
    %3939 = vst [vmem:[%s18 + $0x8] sm:$0xff] %v3901
    %3940 = vst [vmem:[%s18 + $0x10] sm:$0xff] %v3904
    %3941 = vst [vmem:[%s18 + $0x18] sm:$0xff] %v3906
    %3942 = vst [vmem:[%s18 + $0x20] sm:$0xff] %v3909
    %3943 = vst [vmem:[%s18 + $0x28] sm:$0xff] %v3911
    %3944 = vst [vmem:[%s18 + $0x30] sm:$0xff] %v3914
    %3945 = vst [vmem:[%s18 + $0x38] sm:$0xff] %v3916
    %3946 = vst [vmem:[%s18 + $0x40] sm:$0xff] %v3919
    %3947 = vst [vmem:[%s18 + $0x48] sm:$0xff] %v3921
    %3948 = vst [vmem:[%s18 + $0x50] sm:$0xff] %v3924
    %3949 = vst [vmem:[%s18 + $0x58] sm:$0xff] %v3926
    %3950 = vst [vmem:[%s18 + $0x60] sm:$0xff] %v3929
    %3951 = vst [vmem:[%s18 + $0x68] sm:$0xff] %v3931
    %3952 = vst [vmem:[%s18 + $0x70] sm:$0xff] %v3934
    %3953 = vst [vmem:[%s18 + $0x78] sm:$0xff] %v3936
  $region81: #{dygr_encoder_forward.1} parent=0 // pred_fallthru
    _
  // Predicated region
  $region82: #{dygr_encoder_forward.1} parent=0 // pred_check
    _
  $region83: #{dygr_encoder_forward.1} parent=0 // pred_check_branch
    %3955 = sbr.rel (0) target = $region85
  $region84: #{dygr_encoder_forward.1} parent=0 // pred_region
    _
  $region85: #{dygr_encoder_forward.1} parent=0 // pred_fallthru
    _
  // Predicated region
  $region86: #{dygr_encoder_forward.1} parent=0 // pred_check
    _
  $region87: #{dygr_encoder_forward.1} parent=0 // pred_check_branch
    %3957 = sbr.rel (0) target = $region89
  $region88: #{dygr_encoder_forward.1} parent=0 // pred_region
    _
  $region89: #{dygr_encoder_forward.1} parent=0 // pred_fallthru
    _
  // Predicated region
  $region90: #{dygr_encoder_forward.1} parent=0 // pred_check
    _
  $region91: #{dygr_encoder_forward.1} parent=0 // pred_check_branch
    %3959 = sbr.rel (0) target = $region93
  $region92: #{dygr_encoder_forward.1} parent=0 // pred_region
    _
  $region93: #{dygr_encoder_forward.1} parent=0 // pred_fallthru
    _
  // Predicated region
  $region94: #{dygr_encoder_forward.1} parent=0 // pred_check
    _
  $region95: #{dygr_encoder_forward.1} parent=0 // pred_check_branch
    %3961 = sbr.rel (0) target = $region97
  $region96: #{dygr_encoder_forward.1} parent=0 // pred_region
    _
  $region97: #{dygr_encoder_forward.1} parent=0 // pred_fallthru
    _
  // Predicated region
  $region98: #{dygr_encoder_forward.1} parent=0 // pred_check
    _
  $region99: #{dygr_encoder_forward.1} parent=0 // pred_check_branch
    %3963 = sbr.rel (0) target = $region101
  $region100: #{dygr_encoder_forward.1} parent=0 // pred_region
    _
  $region101: #{dygr_encoder_forward.1} parent=0 // pred_fallthru
    _
  // Predicated region
  $region102: #{dygr_encoder_forward.1} parent=0 // pred_check
    _
  $region103: #{dygr_encoder_forward.1} parent=0 // pred_check_branch
    %3965 = sbr.rel (0) target = $region105
  $region104: #{dygr_encoder_forward.1} parent=0 // pred_region
    _
  $region105: #{dygr_encoder_forward.1} parent=0 // pred_fallthru
    _

</llo_original>
